<compile_context>
chip_gen: v5e
topology: v5e:2x2
jax: 0.10.0
libtpu: 0.0.40
codegen_flags: <defaults>
</compile_context>

<pallas_src>
import functools

import numpy as np
import jax
import jax.numpy as jnp
from jax import lax
from jax.experimental import pallas as pl
from jax.experimental.pallas import tpu as pltpu


def _atan_abs(x):
    """arctan(x) for x >= 0 using only mul/add/select/div (minimax poly, |err| ~1e-7)."""
    big = x > 1.0
    inv = 1.0 / jnp.maximum(x, 1.0)          # exact divide; selected only when x > 1
    z = jnp.where(big, inv, x)                # z in [0, 1]
    z2 = z * z
    p = jnp.float32(0.0028662257)
    p = p * z2 - 0.0161657367
    p = p * z2 + 0.0429096138
    p = p * z2 - 0.0752896400
    p = p * z2 + 0.1065626393
    p = p * z2 - 0.1420889944
    p = p * z2 + 0.1999355085
    p = p * z2 - 0.3333314528
    p = p * z2 + 1.0
    at = z * p
    return jnp.where(big, (jnp.pi / 2.0) - at, at)


def _bbox_loss_kernel(*refs, reg_max, use_dfl, strip, n_strips):
    if use_dfl:
        geom_ref, pd_ref, liou_ref, ldfl_ref, acc_ref = refs
    else:
        geom_ref, liou_ref, ldfl_ref, acc_ref = refs
        pd_ref = None

    step = pl.program_id(1)                   # inner reduction over anchor tiles ("arbitrary")
    n_steps = pl.num_programs(1)
    eps = 1e-7
    K = reg_max + 1

    @pl.when(step == 0)
    def _init():
        acc_ref[...] = jnp.zeros_like(acc_ref)

    def strip_losses(off):
        # -------- lane-dense (strip, 128) channel tiles --------
        g = lambda c: geom_ref[c, pl.ds(off, strip), :]
        b1_x1, b1_y1, b1_x2, b1_y2 = g(0), g(1), g(2), g(3)
        b2_x1, b2_y1, b2_x2, b2_y2 = g(4), g(5), g(6), g(7)
        ax, ay = g(8), g(9)
        w = g(10)                             # target_scores.sum(-1) * fg_mask (precomputed)
        fg = w > 0.0                          # bg / padded rows have w == 0

        # ------------------------------ CIoU ------------------------------
        w1 = b1_x2 - b1_x1
        h1 = b1_y2 - b1_y1 + eps
        w2 = b2_x2 - b2_x1
        h2 = b2_y2 - b2_y1 + eps

        inter = (jnp.maximum(jnp.minimum(b1_x2, b2_x2) - jnp.maximum(b1_x1, b2_x1), 0.0) *
                 jnp.maximum(jnp.minimum(b1_y2, b2_y2) - jnp.maximum(b1_y1, b2_y1), 0.0))
        union = w1 * h1 + w2 * h2 - inter + eps
        iou = inter * pl.reciprocal(union, approx=True)

        cw = jnp.maximum(b1_x2, b2_x2) - jnp.minimum(b1_x1, b2_x1)
        ch = jnp.maximum(b1_y2, b2_y2) - jnp.minimum(b1_y1, b2_y1)
        c2 = cw * cw + ch * ch + eps
        rho2 = ((b2_x1 + b2_x2 - b1_x1 - b1_x2) ** 2 +
                (b2_y1 + b2_y2 - b1_y1 - b1_y2) ** 2) * 0.25
        # atan(w2/h2) - atan(w1/h1) == atan((w2*h1 - w1*h2)/(h1*h2 + w1*w2)) for w,h >= 0
        # (denominator > 0 for YOLOv8's non-negative dist2bbox decode; bg rows are masked).
        # The result is squared, so the sign of the argument is irrelevant.
        num = w2 * h1 - w1 * h2
        den = h1 * h2 + w1 * w2
        dtheta = _atan_abs(jnp.abs(num) / den)
        v = (4.0 / (jnp.pi ** 2)) * dtheta * dtheta
        alpha = v * pl.reciprocal(v - iou + (1.0 + eps), approx=True)
        ciou = iou - (rho2 * pl.reciprocal(c2, approx=True) + v * alpha)

        iou_part = jnp.where(fg, (1.0 - ciou) * w, 0.0)

        # ------------------------------- DFL -------------------------------
        dfl_part = jnp.zeros_like(w)
        if use_dfl:
            tgt = (ax - b2_x1, ay - b2_y1, b2_x2 - ax, b2_y2 - ay)      # l, t, r, b
            for c in range(4):
                t = jnp.clip(tgt[c], 0.0, reg_max - 0.01)
                # stable log-sum-exp over K bins; each bin is a lane-dense (strip,128) plane
                m = pd_ref[c, 0, pl.ds(off, strip), :].astype(jnp.float32)
                for k in range(1, K):
                    m = jnp.maximum(m, pd_ref[c, k, pl.ds(off, strip), :].astype(jnp.float32))
                s = jnp.zeros_like(m)
                sel = jnp.zeros_like(m)
                for k in range(K):
                    x = pd_ref[c, k, pl.ds(off, strip), :].astype(jnp.float32)
                    s = s + jnp.exp(x - m)
                    # wl*logit[tl] + wr*logit[tr] == sum_k logit_k * relu(1 - |k - t|)
                    sel = sel + x * jnp.maximum(1.0 - jnp.abs(t - k), 0.0)
                dfl_part = dfl_part + (m + jnp.log(s) - sel)            # = wl*CE_l + wr*CE_r
            dfl_part = jnp.where(fg, dfl_part * (0.25 * w), 0.0)
        return iou_part, dfl_part

    if n_strips == 1:
        iou_tot, dfl_tot = strip_losses(0)
    else:
        def body(si, carry):
            i_acc, d_acc = carry
            off = pl.multiple_of(si * strip, strip)
            iou_p, dfl_p = strip_losses(off)
            return (i_acc + iou_p, d_acc + dfl_p)
        zeros = jnp.zeros((strip, 128), jnp.float32)
        iou_tot, dfl_tot = lax.fori_loop(0, n_strips, body, (zeros, zeros), unroll=2)

    acc_ref[0] += iou_tot
    if use_dfl:
        acc_ref[1] += dfl_tot

    # ------------------- write per-part, per-lane partial sums -------------------
    @pl.when(step == n_steps - 1)
    def _finalize():
        liou_ref[0] = jnp.sum(acc_ref[0], axis=0, keepdims=True)
        ldfl_ref[0] = jnp.sum(acc_ref[1], axis=0, keepdims=True)


def bbox_loss(pred_dist, pred_bboxes, anchor_points, target_bboxes,
              target_scores, target_scores_sum, fg_mask, *,
              reg_max, use_dfl, anchors_per_tile=8192, num_parts=1,
              pd_dtype=jnp.bfloat16):
    """Returns (loss_iou, loss_dfl) — same semantics as the PyTorch BboxLoss.forward.

    num_parts: outer "parallel" grid axis; set 2 on v7x (megacore), 1 on v5e/v6e.
    """
    B, A, _ = pred_bboxes.shape
    C = target_scores.shape[-1]
    K = reg_max + 1
    N = B * A

    assert anchors_per_tile % 2048 == 0, "tile must be a multiple of 16*128 anchors"
    # Don't pad tiny problems up to a huge tile: cap the tile at the padded problem size.
    n_min = -(-N // (num_parts * 2048)) * num_parts * 2048
    tile = min(anchors_per_tile, n_min // num_parts)
    steps = max(1, -(-N // (num_parts * tile)))          # ceil
    n_pad = num_parts * steps * tile
    R = n_pad // 128                                     # total anchor rows (sublanes)
    TR = tile // 128                                     # rows per grid step (multiple of 16)
    strip = 16 if TR >= 16 else TR                       # compute strip (vreg-pressure control)
    n_strips = TR // strip

    f32 = jnp.float32
    pb = pred_bboxes.reshape(N, 4).astype(f32)
    tb = target_bboxes.reshape(N, 4).astype(f32)
    ap = jnp.broadcast_to(anchor_points.astype(f32)[None], (B, A, 2)).reshape(N, 2)
    fg = fg_mask.reshape(N)
    # weight precomputed outside the kernel (bg rows zeroed) — the (N, C) scores and the
    # fg mask never enter kernel VMEM.
    w = jnp.where(fg, target_scores.astype(f32).reshape(N, C).sum(axis=-1), 0.0)

    chans = [pb[:, 0], pb[:, 1], pb[:, 2], pb[:, 3],
             tb[:, 0], tb[:, 1], tb[:, 2], tb[:, 3],
             ap[:, 0], ap[:, 1], w]
    geom = jnp.stack(chans, axis=0)                                  # (11, N) f32
    geom = jnp.pad(geom, ((0, 0), (0, n_pad - N))).reshape(11, R, 128)

    inputs = [geom]
    in_specs = [pl.BlockSpec((11, TR, 128), lambda p, s: (0, p * steps + s, 0))]
    if use_dfl:
        # (N, 4*K) -> (4, K, N) lane-dense planes; cast to bf16 BEFORE the transpose so the
        # relayout moves half the bytes. Kernel upcasts each plane to f32 for the LSE.
        pd = pred_dist.reshape(N, 4, K).astype(pd_dtype).transpose(1, 2, 0)
        pd = jnp.pad(pd, ((0, 0), (0, 0), (0, n_pad - N))).reshape(4, K, R, 128)
        inputs.append(pd)
        in_specs.append(pl.BlockSpec((4, K, TR, 128),
                                     lambda p, s: (0, 0, p * steps + s, 0)))

    out_shape = (jax.ShapeDtypeStruct((num_parts, 1, 128), f32),
                 jax.ShapeDtypeStruct((num_parts, 1, 128), f32))
    out_specs = [pl.BlockSpec((1, 1, 128), lambda p, s: (p, 0, 0)),
                 pl.BlockSpec((1, 1, 128), lambda p, s: (p, 0, 0))]

    kernel = functools.partial(_bbox_loss_kernel, reg_max=reg_max, use_dfl=use_dfl,
                               strip=strip, n_strips=n_strips)

    liou_p, ldfl_p = pl.pallas_call(
        kernel,
        out_shape=out_shape,
        grid_spec=pltpu.PrefetchScalarGridSpec(
            num_scalar_prefetch=0,
            grid=(num_parts, steps),
            in_specs=in_specs,
            out_specs=out_specs,
            scratch_shapes=[pltpu.VMEM((2, strip, 128), jnp.float32)]),
        compiler_params=pltpu.CompilerParams(
            dimension_semantics=("parallel", "arbitrary"),
            vmem_limit_bytes=32 * 1024 * 1024),
    )(*inputs)

    tss = jnp.asarray(target_scores_sum, f32)
    loss_iou = jnp.sum(liou_p) / tss
    loss_dfl = jnp.sum(ldfl_p) / tss
    return loss_iou, loss_dfl


# ---------------- pure-numpy reference (mirrors the PyTorch code) ----------------
def ref_bbox_loss(pred_dist, pred_bboxes, anchor_points, target_bboxes,
                  target_scores, target_scores_sum, fg_mask, reg_max, use_dfl):
    eps = 1e-7
    pd = np.asarray(pred_dist, np.float32)
    pb = np.asarray(pred_bboxes, np.float32)
    ap = np.asarray(anchor_points, np.float32)
    tb = np.asarray(target_bboxes, np.float32)
    ts = np.asarray(target_scores, np.float32)
    tss = np.float32(target_scores_sum)
    m = np.asarray(fg_mask, bool)

    weight = ts.sum(-1)[m][:, None]
    b1, b2 = pb[m], tb[m]
    b1_x1, b1_y1, b1_x2, b1_y2 = [b1[:, i:i + 1] for i in range(4)]
    b2_x1, b2_y1, b2_x2, b2_y2 = [b2[:, i:i + 1] for i in range(4)]
    w1, h1 = b1_x2 - b1_x1, b1_y2 - b1_y1 + eps
    w2, h2 = b2_x2 - b2_x1, b2_y2 - b2_y1 + eps
    inter = (np.clip(np.minimum(b1_x2, b2_x2) - np.maximum(b1_x1, b2_x1), 0, None) *
             np.clip(np.minimum(b1_y2, b2_y2) - np.maximum(b1_y1, b2_y1), 0, None))
    union = w1 * h1 + w2 * h2 - inter + eps
    iou = inter / union
    cw = np.maximum(b1_x2, b2_x2) - np.minimum(b1_x1, b2_x1)
    ch = np.maximum(b1_y2, b2_y2) - np.minimum(b1_y1, b2_y1)
    c2 = cw ** 2 + ch ** 2 + eps
    rho2 = ((b2_x1 + b2_x2 - b1_x1 - b1_x2) ** 2 +
            (b2_y1 + b2_y2 - b1_y1 - b1_y2) ** 2) / 4.0
    v = (4 / np.pi ** 2) * (np.arctan(w2 / h2) - np.arctan(w1 / h1)) ** 2
    alpha = v / (v - iou + (1 + eps))
    ciou = iou - (rho2 / c2 + v * alpha)
    loss_iou = float(((1.0 - ciou) * weight).sum() / tss)

    loss_dfl = 0.0
    if use_dfl:
        K = reg_max + 1
        ap_b = np.broadcast_to(ap[None], tb.shape[:2] + (2,))
        target_ltrb = np.concatenate([ap_b - tb[..., :2], tb[..., 2:] - ap_b], -1)
        target_ltrb = np.clip(target_ltrb, 0, reg_max - 0.01)
        t = target_ltrb[m]
        logits = pd[m].reshape(-1, K)
        tl = t.astype(np.int64)
        tr = tl + 1
        wl = tr - t
        wr = t - tl
        mx = np.max(logits, -1, keepdims=True)
        logp = logits - (mx + np.log(np.exp(logits - mx).sum(-1, keepdims=True)))
        rows = np.arange(logits.shape[0])
        l_loss = -logp[rows, tl.reshape(-1)].reshape(tl.shape)
        r_loss = -logp[rows, tr.reshape(-1)].reshape(tl.shape)
        dfl = (l_loss * wl + r_loss * wr).mean(-1, keepdims=True)
        loss_dfl = float((dfl * weight).sum() / tss)
    return loss_iou, loss_dfl


if __name__ == "__main__":
    B, A, C = 2, 16, 8
    reg_max = 16
    K = reg_max + 1

    key = jax.random.PRNGKey(0)
    k1, k2, k3, k4, k5, k6 = jax.random.split(key, 6)

    anchor_points = jax.random.uniform(k1, (A, 2), minval=2.0, maxval=14.0)
    half = jax.random.uniform(k2, (B, A, 2), minval=1.0, maxval=4.0)
    ctr = anchor_points[None] + jax.random.uniform(k3, (B, A, 2), minval=-1.0, maxval=1.0)
    target_bboxes = jnp.concatenate([ctr - half, ctr + half], axis=-1)            # (B, A, 4) xyxy
    pred_bboxes = target_bboxes + jax.random.uniform(k4, (B, A, 4), minval=-0.4, maxval=0.4)
    pred_dist = jax.random.normal(k5, (B, A, 4 * K), dtype=jnp.float32)
    target_scores = jax.random.uniform(k6, (B, A, C))
    fg_mask = (jnp.arange(B * A).reshape(B, A) % 3 != 0)                          # mixed fg/bg
    target_scores_sum = jnp.maximum(target_scores.sum(), 1.0)

    run_dfl = jax.jit(functools.partial(bbox_loss, reg_max=reg_max, use_dfl=True))
    run_nodfl = jax.jit(functools.partial(bbox_loss, reg_max=reg_max, use_dfl=False))

    liou, ldfl = run_dfl(pred_dist, pred_bboxes, anchor_points, target_bboxes,
                         target_scores, target_scores_sum, fg_mask)
    liou0, ldfl0 = run_nodfl(pred_dist, pred_bboxes, anchor_points, target_bboxes,
                             target_scores, target_scores_sum, fg_mask)
    jax.block_until_ready((liou, ldfl, liou0, ldfl0))

    ref_liou, ref_ldfl = ref_bbox_loss(pred_dist, pred_bboxes, anchor_points, target_bboxes,
                                       target_scores, target_scores_sum, fg_mask,
                                       reg_max, True)
    # Tolerance 5e-3: bf16 pred_dist quantization + approx-EUP reciprocals (documented perf trade).
    assert np.allclose(float(liou), ref_liou, rtol=5e-3, atol=5e-3), (float(liou), ref_liou)
    assert np.allclose(float(ldfl), ref_ldfl, rtol=5e-3, atol=5e-3), (float(ldfl), ref_ldfl)
    assert np.allclose(float(liou0), ref_liou, rtol=5e-3, atol=5e-3), (float(liou0), ref_liou)
    assert float(ldfl0) == 0.0
    print("KERNEL_OK")
</pallas_src>

<mosaic_0001>
module attributes {stable_mosaic.version = 11 : i64} {
  func.func @_bbox_loss_kernel(%arg0: i32, %arg1: i32, %arg2: memref<11x16x128xf32, #tpu.memory_space<vmem>>, %arg3: memref<4x17x16x128xbf16, #tpu.memory_space<vmem>>, %arg4: memref<1x1x128xf32, #tpu.memory_space<vmem>>, %arg5: memref<1x1x128xf32, #tpu.memory_space<vmem>>, %arg6: memref<2x16x128xf32, #tpu.memory_space<vmem>>) attributes {dimension_semantics = [#tpu.dimension_semantics<parallel>, #tpu.dimension_semantics<arbitrary>], iteration_bounds = array<i64: 1, 1>, scalar_prefetch = 0 : i64, scratch_operands = 1 : i64, tpu.core_type = #tpu.core_type<tc>, window_params = [{transform_indices = @transform_0, window_bounds = array<i64: 11, 16, 128>}, {transform_indices = @transform_1, window_bounds = array<i64: 4, 17, 16, 128>}, {transform_indices = @transform_2, window_bounds = array<i64: 1, 1, 128>}, {transform_indices = @transform_3, window_bounds = array<i64: 1, 1, 128>}]} {
    %c0_i32 = arith.constant 0 : i32
    %0 = arith.cmpi eq, %arg1, %c0_i32 : i32
    %1 = arith.extui %0 : i1 to i32
    %c0_i32_0 = arith.constant 0 : i32
    %2 = arith.cmpi ne, %1, %c0_i32_0 : i32
    scf.if %2 {
      %cst_822 = arith.constant 0.000000e+00 : f32
      %1492 = vector.broadcast %cst_822 : f32 to vector<2x16x128xf32>
      %c0_823 = arith.constant 0 : index
      %c0_824 = arith.constant 0 : index
      %c0_825 = arith.constant 0 : index
      %1493 = vector.load %arg6[%c0_823, %c0_824, %c0_825] : memref<2x16x128xf32, #tpu.memory_space<vmem>>, vector<2x16x128xf32>
      tpu.vector_store %arg6[%c0_823, %c0_824, %c0_825], %1492 {strides = array<i32>} : memref<2x16x128xf32, #tpu.memory_space<vmem>>, vector<2x16x128xf32>,
    } else {
    }
    %c0 = arith.constant 0 : index
    %c0_1 = arith.constant 0 : index
    %c0_2 = arith.constant 0 : index
    %3 = vector.load %arg2[%c0, %c0_1, %c0_2] : memref<11x16x128xf32, #tpu.memory_space<vmem>>, vector<1x16x128xf32>
    %4 = vector.shape_cast %3 : vector<1x16x128xf32> to vector<16x128xf32>
    %c1 = arith.constant 1 : index
    %c0_3 = arith.constant 0 : index
    %c0_4 = arith.constant 0 : index
    %5 = vector.load %arg2[%c1, %c0_3, %c0_4] : memref<11x16x128xf32, #tpu.memory_space<vmem>>, vector<1x16x128xf32>
    %6 = vector.shape_cast %5 : vector<1x16x128xf32> to vector<16x128xf32>
    %c2 = arith.constant 2 : index
    %c0_5 = arith.constant 0 : index
    %c0_6 = arith.constant 0 : index
    %7 = vector.load %arg2[%c2, %c0_5, %c0_6] : memref<11x16x128xf32, #tpu.memory_space<vmem>>, vector<1x16x128xf32>
    %8 = vector.shape_cast %7 : vector<1x16x128xf32> to vector<16x128xf32>
    %c3 = arith.constant 3 : index
    %c0_7 = arith.constant 0 : index
    %c0_8 = arith.constant 0 : index
    %9 = vector.load %arg2[%c3, %c0_7, %c0_8] : memref<11x16x128xf32, #tpu.memory_space<vmem>>, vector<1x16x128xf32>
    %10 = vector.shape_cast %9 : vector<1x16x128xf32> to vector<16x128xf32>
    %c4 = arith.constant 4 : index
    %c0_9 = arith.constant 0 : index
    %c0_10 = arith.constant 0 : index
    %11 = vector.load %arg2[%c4, %c0_9, %c0_10] : memref<11x16x128xf32, #tpu.memory_space<vmem>>, vector<1x16x128xf32>
    %12 = vector.shape_cast %11 : vector<1x16x128xf32> to vector<16x128xf32>
    %c5 = arith.constant 5 : index
    %c0_11 = arith.constant 0 : index
    %c0_12 = arith.constant 0 : index
    %13 = vector.load %arg2[%c5, %c0_11, %c0_12] : memref<11x16x128xf32, #tpu.memory_space<vmem>>, vector<1x16x128xf32>
    %14 = vector.shape_cast %13 : vector<1x16x128xf32> to vector<16x128xf32>
    %c6 = arith.constant 6 : index
    %c0_13 = arith.constant 0 : index
    %c0_14 = arith.constant 0 : index
    %15 = vector.load %arg2[%c6, %c0_13, %c0_14] : memref<11x16x128xf32, #tpu.memory_space<vmem>>, vector<1x16x128xf32>
    %16 = vector.shape_cast %15 : vector<1x16x128xf32> to vector<16x128xf32>
    %c7 = arith.constant 7 : index
    %c0_15 = arith.constant 0 : index
    %c0_16 = arith.constant 0 : index
    %17 = vector.load %arg2[%c7, %c0_15, %c0_16] : memref<11x16x128xf32, #tpu.memory_space<vmem>>, vector<1x16x128xf32>
    %18 = vector.shape_cast %17 : vector<1x16x128xf32> to vector<16x128xf32>
    %c8 = arith.constant 8 : index
    %c0_17 = arith.constant 0 : index
    %c0_18 = arith.constant 0 : index
    %19 = vector.load %arg2[%c8, %c0_17, %c0_18] : memref<11x16x128xf32, #tpu.memory_space<vmem>>, vector<1x16x128xf32>
    %20 = vector.shape_cast %19 : vector<1x16x128xf32> to vector<16x128xf32>
    %c9 = arith.constant 9 : index
    %c0_19 = arith.constant 0 : index
    %c0_20 = arith.constant 0 : index
    %21 = vector.load %arg2[%c9, %c0_19, %c0_20] : memref<11x16x128xf32, #tpu.memory_space<vmem>>, vector<1x16x128xf32>
    %22 = vector.shape_cast %21 : vector<1x16x128xf32> to vector<16x128xf32>
    %c10 = arith.constant 10 : index
    %c0_21 = arith.constant 0 : index
    %c0_22 = arith.constant 0 : index
    %23 = vector.load %arg2[%c10, %c0_21, %c0_22] : memref<11x16x128xf32, #tpu.memory_space<vmem>>, vector<1x16x128xf32>
    %24 = vector.shape_cast %23 : vector<1x16x128xf32> to vector<16x128xf32>
    %cst = arith.constant 0.000000e+00 : f32
    %25 = vector.broadcast %cst : f32 to vector<16x128xf32>
    %26 = arith.cmpf ogt, %24, %25 : vector<16x128xf32>
    %27 = arith.subf %8, %4 : vector<16x128xf32>
    %28 = arith.subf %10, %6 : vector<16x128xf32>
    %cst_23 = arith.constant 1.000000e-07 : f32
    %29 = vector.broadcast %cst_23 : f32 to vector<16x128xf32>
    %30 = arith.addf %28, %29 : vector<16x128xf32>
    %31 = arith.subf %16, %12 : vector<16x128xf32>
    %32 = arith.subf %18, %14 : vector<16x128xf32>
    %cst_24 = arith.constant 1.000000e-07 : f32
    %33 = vector.broadcast %cst_24 : f32 to vector<16x128xf32>
    %34 = arith.addf %32, %33 : vector<16x128xf32>
    %35 = arith.minimumf %8, %16 : vector<16x128xf32>
    %36 = arith.maximumf %4, %12 : vector<16x128xf32>
    %37 = arith.subf %35, %36 : vector<16x128xf32>
    %cst_25 = arith.constant 0.000000e+00 : f32
    %38 = vector.broadcast %cst_25 : f32 to vector<16x128xf32>
    %39 = arith.maximumf %37, %38 : vector<16x128xf32>
    %40 = arith.minimumf %10, %18 : vector<16x128xf32>
    %41 = arith.maximumf %6, %14 : vector<16x128xf32>
    %42 = arith.subf %40, %41 : vector<16x128xf32>
    %cst_26 = arith.constant 0.000000e+00 : f32
    %43 = vector.broadcast %cst_26 : f32 to vector<16x128xf32>
    %44 = arith.maximumf %42, %43 : vector<16x128xf32>
    %45 = arith.mulf %39, %44 : vector<16x128xf32>
    %46 = arith.mulf %27, %30 : vector<16x128xf32>
    %47 = arith.mulf %31, %34 : vector<16x128xf32>
    %48 = arith.addf %46, %47 : vector<16x128xf32>
    %49 = arith.subf %48, %45 : vector<16x128xf32>
    %cst_27 = arith.constant 1.000000e-07 : f32
    %50 = vector.broadcast %cst_27 : f32 to vector<16x128xf32>
    %51 = arith.addf %49, %50 : vector<16x128xf32>
    %52 = tpu.reciprocal %51 {approx = true} : vector<16x128xf32> -> vector<16x128xf32>
    %53 = arith.mulf %45, %52 : vector<16x128xf32>
    %54 = arith.maximumf %8, %16 : vector<16x128xf32>
    %55 = arith.minimumf %4, %12 : vector<16x128xf32>
    %56 = arith.subf %54, %55 : vector<16x128xf32>
    %57 = arith.maximumf %10, %18 : vector<16x128xf32>
    %58 = arith.minimumf %6, %14 : vector<16x128xf32>
    %59 = arith.subf %57, %58 : vector<16x128xf32>
    %60 = arith.mulf %56, %56 : vector<16x128xf32>
    %61 = arith.mulf %59, %59 : vector<16x128xf32>
    %62 = arith.addf %60, %61 : vector<16x128xf32>
    %cst_28 = arith.constant 1.000000e-07 : f32
    %63 = vector.broadcast %cst_28 : f32 to vector<16x128xf32>
    %64 = arith.addf %62, %63 : vector<16x128xf32>
    %65 = arith.addf %12, %16 : vector<16x128xf32>
    %66 = arith.subf %65, %4 : vector<16x128xf32>
    %67 = arith.subf %66, %8 : vector<16x128xf32>
    %68 = arith.mulf %67, %67 : vector<16x128xf32>
    %69 = arith.addf %14, %18 : vector<16x128xf32>
    %70 = arith.subf %69, %6 : vector<16x128xf32>
    %71 = arith.subf %70, %10 : vector<16x128xf32>
    %72 = arith.mulf %71, %71 : vector<16x128xf32>
    %73 = arith.addf %68, %72 : vector<16x128xf32>
    %cst_29 = arith.constant 2.500000e-01 : f32
    %74 = vector.broadcast %cst_29 : f32 to vector<16x128xf32>
    %75 = arith.mulf %73, %74 : vector<16x128xf32>
    %76 = arith.mulf %31, %30 : vector<16x128xf32>
    %77 = arith.mulf %27, %34 : vector<16x128xf32>
    %78 = arith.subf %76, %77 : vector<16x128xf32>
    %79 = arith.mulf %30, %34 : vector<16x128xf32>
    %80 = arith.mulf %27, %31 : vector<16x128xf32>
    %81 = arith.addf %79, %80 : vector<16x128xf32>
    %82 = math.absf %78 : vector<16x128xf32>
    %83 = arith.divf %82, %81 : vector<16x128xf32>
    %cst_30 = arith.constant 1.000000e+00 : f32
    %84 = vector.broadcast %cst_30 : f32 to vector<16x128xf32>
    %85 = arith.cmpf ogt, %83, %84 : vector<16x128xf32>
    %cst_31 = arith.constant 1.000000e+00 : f32
    %86 = vector.broadcast %cst_31 : f32 to vector<16x128xf32>
    %87 = arith.maximumf %83, %86 : vector<16x128xf32>
    %cst_32 = arith.constant 1.000000e+00 : f32
    %88 = vector.broadcast %cst_32 : f32 to vector<16x128xf32>
    %89 = arith.divf %88, %87 : vector<16x128xf32>
    %90 = arith.select %85, %89, %83 : vector<16x128xi1>, vector<16x128xf32>
    %91 = arith.mulf %90, %90 : vector<16x128xf32>
    %cst_33 = arith.constant 0.00286622578 : f32
    %92 = vector.broadcast %cst_33 : f32 to vector<16x128xf32>
    %93 = arith.mulf %92, %91 : vector<16x128xf32>
    %cst_34 = arith.constant 0.0161657371 : f32
    %94 = vector.broadcast %cst_34 : f32 to vector<16x128xf32>
    %95 = arith.subf %93, %94 : vector<16x128xf32>
    %96 = arith.mulf %95, %91 : vector<16x128xf32>
    %cst_35 = arith.constant 0.0429096147 : f32
    %97 = vector.broadcast %cst_35 : f32 to vector<16x128xf32>
    %98 = arith.addf %96, %97 : vector<16x128xf32>
    %99 = arith.mulf %98, %91 : vector<16x128xf32>
    %cst_36 = arith.constant 0.0752896368 : f32
    %100 = vector.broadcast %cst_36 : f32 to vector<16x128xf32>
    %101 = arith.subf %99, %100 : vector<16x128xf32>
    %102 = arith.mulf %101, %91 : vector<16x128xf32>
    %cst_37 = arith.constant 0.106562637 : f32
    %103 = vector.broadcast %cst_37 : f32 to vector<16x128xf32>
    %104 = arith.addf %102, %103 : vector<16x128xf32>
    %105 = arith.mulf %104, %91 : vector<16x128xf32>
    %cst_38 = arith.constant 1.420890e-01 : f32
    %106 = vector.broadcast %cst_38 : f32 to vector<16x128xf32>
    %107 = arith.subf %105, %106 : vector<16x128xf32>
    %108 = arith.mulf %107, %91 : vector<16x128xf32>
    %cst_39 = arith.constant 0.199935511 : f32
    %109 = vector.broadcast %cst_39 : f32 to vector<16x128xf32>
    %110 = arith.addf %108, %109 : vector<16x128xf32>
    %111 = arith.mulf %110, %91 : vector<16x128xf32>
    %cst_40 = arith.constant 0.333331466 : f32
    %112 = vector.broadcast %cst_40 : f32 to vector<16x128xf32>
    %113 = arith.subf %111, %112 : vector<16x128xf32>
    %114 = arith.mulf %113, %91 : vector<16x128xf32>
    %cst_41 = arith.constant 1.000000e+00 : f32
    %115 = vector.broadcast %cst_41 : f32 to vector<16x128xf32>
    %116 = arith.addf %114, %115 : vector<16x128xf32>
    %117 = arith.mulf %90, %116 : vector<16x128xf32>
    %cst_42 = arith.constant 1.57079637 : f32
    %118 = vector.broadcast %cst_42 : f32 to vector<16x128xf32>
    %119 = arith.subf %118, %117 : vector<16x128xf32>
    %120 = arith.select %85, %119, %117 : vector<16x128xi1>, vector<16x128xf32>
    %cst_43 = arith.constant 0.405284733 : f32
    %121 = vector.broadcast %cst_43 : f32 to vector<16x128xf32>
    %122 = arith.mulf %121, %120 : vector<16x128xf32>
    %123 = arith.mulf %122, %120 : vector<16x128xf32>
    %124 = arith.subf %123, %53 : vector<16x128xf32>
    %cst_44 = arith.constant 1.00000012 : f32
    %125 = vector.broadcast %cst_44 : f32 to vector<16x128xf32>
    %126 = arith.addf %124, %125 : vector<16x128xf32>
    %127 = tpu.reciprocal %126 {approx = true} : vector<16x128xf32> -> vector<16x128xf32>
    %128 = arith.mulf %123, %127 : vector<16x128xf32>
    %129 = tpu.reciprocal %64 {approx = true} : vector<16x128xf32> -> vector<16x128xf32>
    %130 = arith.mulf %75, %129 : vector<16x128xf32>
    %131 = arith.mulf %123, %128 : vector<16x128xf32>
    %132 = arith.addf %130, %131 : vector<16x128xf32>
    %133 = arith.subf %53, %132 : vector<16x128xf32>
    %cst_45 = arith.constant 1.000000e+00 : f32
    %134 = vector.broadcast %cst_45 : f32 to vector<16x128xf32>
    %135 = arith.subf %134, %133 : vector<16x128xf32>
    %136 = arith.mulf %135, %24 : vector<16x128xf32>
    %cst_46 = arith.constant 0.000000e+00 : f32
    %137 = vector.broadcast %cst_46 : f32 to vector<16x128xf32>
    %138 = arith.select %26, %136, %137 : vector<16x128xi1>, vector<16x128xf32>
    %cst_47 = arith.constant 0.000000e+00 : f32
    %139 = vector.broadcast %cst_47 : f32 to vector<16x128xf32>
    %140 = arith.subf %20, %12 : vector<16x128xf32>
    %141 = arith.subf %22, %14 : vector<16x128xf32>
    %142 = arith.subf %16, %20 : vector<16x128xf32>
    %143 = arith.subf %18, %22 : vector<16x128xf32>
    %cst_48 = arith.constant 0.000000e+00 : f32
    %cst_49 = arith.constant 1.599000e+01 : f32
    %144 = vector.broadcast %cst_48 : f32 to vector<16x128xf32>
    %145 = arith.maximumf %144, %140 : vector<16x128xf32>
    %146 = vector.broadcast %cst_49 : f32 to vector<16x128xf32>
    %147 = arith.minimumf %146, %145 : vector<16x128xf32>
    %c0_50 = arith.constant 0 : index
    %c0_51 = arith.constant 0 : index
    %c0_52 = arith.constant 0 : index
    %c0_53 = arith.constant 0 : index
    %148 = vector.load %arg3[%c0_50, %c0_51, %c0_52, %c0_53] : memref<4x17x16x128xbf16, #tpu.memory_space<vmem>>, vector<1x1x16x128xbf16>
    %149 = vector.shape_cast %148 : vector<1x1x16x128xbf16> to vector<16x128xbf16>
    %150 = arith.extf %149 : vector<16x128xbf16> to vector<16x128xf32>
    %c0_54 = arith.constant 0 : index
    %c1_55 = arith.constant 1 : index
    %c0_56 = arith.constant 0 : index
    %c0_57 = arith.constant 0 : index
    %151 = vector.load %arg3[%c0_54, %c1_55, %c0_56, %c0_57] : memref<4x17x16x128xbf16, #tpu.memory_space<vmem>>, vector<1x1x16x128xbf16>
    %152 = vector.shape_cast %151 : vector<1x1x16x128xbf16> to vector<16x128xbf16>
    %153 = arith.extf %152 : vector<16x128xbf16> to vector<16x128xf32>
    %154 = arith.maximumf %150, %153 : vector<16x128xf32>
    %c0_58 = arith.constant 0 : index
    %c2_59 = arith.constant 2 : index
    %c0_60 = arith.constant 0 : index
    %c0_61 = arith.constant 0 : index
    %155 = vector.load %arg3[%c0_58, %c2_59, %c0_60, %c0_61] : memref<4x17x16x128xbf16, #tpu.memory_space<vmem>>, vector<1x1x16x128xbf16>
    %156 = vector.shape_cast %155 : vector<1x1x16x128xbf16> to vector<16x128xbf16>
    %157 = arith.extf %156 : vector<16x128xbf16> to vector<16x128xf32>
    %158 = arith.maximumf %154, %157 : vector<16x128xf32>
    %c0_62 = arith.constant 0 : index
    %c3_63 = arith.constant 3 : index
    %c0_64 = arith.constant 0 : index
    %c0_65 = arith.constant 0 : index
    %159 = vector.load %arg3[%c0_62, %c3_63, %c0_64, %c0_65] : memref<4x17x16x128xbf16, #tpu.memory_space<vmem>>, vector<1x1x16x128xbf16>
    %160 = vector.shape_cast %159 : vector<1x1x16x128xbf16> to vector<16x128xbf16>
    %161 = arith.extf %160 : vector<16x128xbf16> to vector<16x128xf32>
    %162 = arith.maximumf %158, %161 : vector<16x128xf32>
    %c0_66 = arith.constant 0 : index
    %c4_67 = arith.constant 4 : index
    %c0_68 = arith.constant 0 : index
    %c0_69 = arith.constant 0 : index
    %163 = vector.load %arg3[%c0_66, %c4_67, %c0_68, %c0_69] : memref<4x17x16x128xbf16, #tpu.memory_space<vmem>>, vector<1x1x16x128xbf16>
    %164 = vector.shape_cast %163 : vector<1x1x16x128xbf16> to vector<16x128xbf16>
    %165 = arith.extf %164 : vector<16x128xbf16> to vector<16x128xf32>
    %166 = arith.maximumf %162, %165 : vector<16x128xf32>
    %c0_70 = arith.constant 0 : index
    %c5_71 = arith.constant 5 : index
    %c0_72 = arith.constant 0 : index
    %c0_73 = arith.constant 0 : index
    %167 = vector.load %arg3[%c0_70, %c5_71, %c0_72, %c0_73] : memref<4x17x16x128xbf16, #tpu.memory_space<vmem>>, vector<1x1x16x128xbf16>
    %168 = vector.shape_cast %167 : vector<1x1x16x128xbf16> to vector<16x128xbf16>
    %169 = arith.extf %168 : vector<16x128xbf16> to vector<16x128xf32>
    %170 = arith.maximumf %166, %169 : vector<16x128xf32>
    %c0_74 = arith.constant 0 : index
    %c6_75 = arith.constant 6 : index
    %c0_76 = arith.constant 0 : index
    %c0_77 = arith.constant 0 : index
    %171 = vector.load %arg3[%c0_74, %c6_75, %c0_76, %c0_77] : memref<4x17x16x128xbf16, #tpu.memory_space<vmem>>, vector<1x1x16x128xbf16>
    %172 = vector.shape_cast %171 : vector<1x1x16x128xbf16> to vector<16x128xbf16>
    %173 = arith.extf %172 : vector<16x128xbf16> to vector<16x128xf32>
    %174 = arith.maximumf %170, %173 : vector<16x128xf32>
    %c0_78 = arith.constant 0 : index
    %c7_79 = arith.constant 7 : index
    %c0_80 = arith.constant 0 : index
    %c0_81 = arith.constant 0 : index
    %175 = vector.load %arg3[%c0_78, %c7_79, %c0_80, %c0_81] : memref<4x17x16x128xbf16, #tpu.memory_space<vmem>>, vector<1x1x16x128xbf16>
    %176 = vector.shape_cast %175 : vector<1x1x16x128xbf16> to vector<16x128xbf16>
    %177 = arith.extf %176 : vector<16x128xbf16> to vector<16x128xf32>
    %178 = arith.maximumf %174, %177 : vector<16x128xf32>
    %c0_82 = arith.constant 0 : index
    %c8_83 = arith.constant 8 : index
    %c0_84 = arith.constant 0 : index
    %c0_85 = arith.constant 0 : index
    %179 = vector.load %arg3[%c0_82, %c8_83, %c0_84, %c0_85] : memref<4x17x16x128xbf16, #tpu.memory_space<vmem>>, vector<1x1x16x128xbf16>
    %180 = vector.shape_cast %179 : vector<1x1x16x128xbf16> to vector<16x128xbf16>
    %181 = arith.extf %180 : vector<16x128xbf16> to vector<16x128xf32>
    %182 = arith.maximumf %178, %181 : vector<16x128xf32>
    %c0_86 = arith.constant 0 : index
    %c9_87 = arith.constant 9 : index
    %c0_88 = arith.constant 0 : index
    %c0_89 = arith.constant 0 : index
    %183 = vector.load %arg3[%c0_86, %c9_87, %c0_88, %c0_89] : memref<4x17x16x128xbf16, #tpu.memory_space<vmem>>, vector<1x1x16x128xbf16>
    %184 = vector.shape_cast %183 : vector<1x1x16x128xbf16> to vector<16x128xbf16>
    %185 = arith.extf %184 : vector<16x128xbf16> to vector<16x128xf32>
    %186 = arith.maximumf %182, %185 : vector<16x128xf32>
    %c0_90 = arith.constant 0 : index
    %c10_91 = arith.constant 10 : index
    %c0_92 = arith.constant 0 : index
    %c0_93 = arith.constant 0 : index
    %187 = vector.load %arg3[%c0_90, %c10_91, %c0_92, %c0_93] : memref<4x17x16x128xbf16, #tpu.memory_space<vmem>>, vector<1x1x16x128xbf16>
    %188 = vector.shape_cast %187 : vector<1x1x16x128xbf16> to vector<16x128xbf16>
    %189 = arith.extf %188 : vector<16x128xbf16> to vector<16x128xf32>
    %190 = arith.maximumf %186, %189 : vector<16x128xf32>
    %c0_94 = arith.constant 0 : index
    %c11 = arith.constant 11 : index
    %c0_95 = arith.constant 0 : index
    %c0_96 = arith.constant 0 : index
    %191 = vector.load %arg3[%c0_94, %c11, %c0_95, %c0_96] : memref<4x17x16x128xbf16, #tpu.memory_space<vmem>>, vector<1x1x16x128xbf16>
    %192 = vector.shape_cast %191 : vector<1x1x16x128xbf16> to vector<16x128xbf16>
    %193 = arith.extf %192 : vector<16x128xbf16> to vector<16x128xf32>
    %194 = arith.maximumf %190, %193 : vector<16x128xf32>
    %c0_97 = arith.constant 0 : index
    %c12 = arith.constant 12 : index
    %c0_98 = arith.constant 0 : index
    %c0_99 = arith.constant 0 : index
    %195 = vector.load %arg3[%c0_97, %c12, %c0_98, %c0_99] : memref<4x17x16x128xbf16, #tpu.memory_space<vmem>>, vector<1x1x16x128xbf16>
    %196 = vector.shape_cast %195 : vector<1x1x16x128xbf16> to vector<16x128xbf16>
    %197 = arith.extf %196 : vector<16x128xbf16> to vector<16x128xf32>
    %198 = arith.maximumf %194, %197 : vector<16x128xf32>
    %c0_100 = arith.constant 0 : index
    %c13 = arith.constant 13 : index
    %c0_101 = arith.constant 0 : index
    %c0_102 = arith.constant 0 : index
    %199 = vector.load %arg3[%c0_100, %c13, %c0_101, %c0_102] : memref<4x17x16x128xbf16, #tpu.memory_space<vmem>>, vector<1x1x16x128xbf16>
    %200 = vector.shape_cast %199 : vector<1x1x16x128xbf16> to vector<16x128xbf16>
    %201 = arith.extf %200 : vector<16x128xbf16> to vector<16x128xf32>
    %202 = arith.maximumf %198, %201 : vector<16x128xf32>
    %c0_103 = arith.constant 0 : index
    %c14 = arith.constant 14 : index
    %c0_104 = arith.constant 0 : index
    %c0_105 = arith.constant 0 : index
    %203 = vector.load %arg3[%c0_103, %c14, %c0_104, %c0_105] : memref<4x17x16x128xbf16, #tpu.memory_space<vmem>>, vector<1x1x16x128xbf16>
    %204 = vector.shape_cast %203 : vector<1x1x16x128xbf16> to vector<16x128xbf16>
    %205 = arith.extf %204 : vector<16x128xbf16> to vector<16x128xf32>
    %206 = arith.maximumf %202, %205 : vector<16x128xf32>
    %c0_106 = arith.constant 0 : index
    %c15 = arith.constant 15 : index
    %c0_107 = arith.constant 0 : index
    %c0_108 = arith.constant 0 : index
    %207 = vector.load %arg3[%c0_106, %c15, %c0_107, %c0_108] : memref<4x17x16x128xbf16, #tpu.memory_space<vmem>>, vector<1x1x16x128xbf16>
    %208 = vector.shape_cast %207 : vector<1x1x16x128xbf16> to vector<16x128xbf16>
    %209 = arith.extf %208 : vector<16x128xbf16> to vector<16x128xf32>
    %210 = arith.maximumf %206, %209 : vector<16x128xf32>
    %c0_109 = arith.constant 0 : index
    %c16 = arith.constant 16 : index
    %c0_110 = arith.constant 0 : index
    %c0_111 = arith.constant 0 : index
    %211 = vector.load %arg3[%c0_109, %c16, %c0_110, %c0_111] : memref<4x17x16x128xbf16, #tpu.memory_space<vmem>>, vector<1x1x16x128xbf16>
    %212 = vector.shape_cast %211 : vector<1x1x16x128xbf16> to vector<16x128xbf16>
    %213 = arith.extf %212 : vector<16x128xbf16> to vector<16x128xf32>
    %214 = arith.maximumf %210, %213 : vector<16x128xf32>
    %cst_112 = arith.constant 0.000000e+00 : f32
    %215 = vector.broadcast %cst_112 : f32 to vector<16x128xf32>
    %cst_113 = arith.constant 0.000000e+00 : f32
    %216 = vector.broadcast %cst_113 : f32 to vector<16x128xf32>
    %c0_114 = arith.constant 0 : index
    %c0_115 = arith.constant 0 : index
    %c0_116 = arith.constant 0 : index
    %c0_117 = arith.constant 0 : index
    %217 = vector.load %arg3[%c0_114, %c0_115, %c0_116, %c0_117] : memref<4x17x16x128xbf16, #tpu.memory_space<vmem>>, vector<1x1x16x128xbf16>
    %218 = vector.shape_cast %217 : vector<1x1x16x128xbf16> to vector<16x128xbf16>
    %219 = arith.extf %218 : vector<16x128xbf16> to vector<16x128xf32>
    %220 = arith.subf %219, %214 : vector<16x128xf32>
    %221 = math.exp %220 : vector<16x128xf32>
    %222 = arith.addf %215, %221 : vector<16x128xf32>
    %cst_118 = arith.constant 0.000000e+00 : f32
    %223 = vector.broadcast %cst_118 : f32 to vector<16x128xf32>
    %224 = arith.subf %147, %223 : vector<16x128xf32>
    %225 = math.absf %224 : vector<16x128xf32>
    %cst_119 = arith.constant 1.000000e+00 : f32
    %226 = vector.broadcast %cst_119 : f32 to vector<16x128xf32>
    %227 = arith.subf %226, %225 : vector<16x128xf32>
    %cst_120 = arith.constant 0.000000e+00 : f32
    %228 = vector.broadcast %cst_120 : f32 to vector<16x128xf32>
    %229 = arith.maximumf %227, %228 : vector<16x128xf32>
    %230 = arith.mulf %219, %229 : vector<16x128xf32>
    %231 = arith.addf %216, %230 : vector<16x128xf32>
    %c0_121 = arith.constant 0 : index
    %c1_122 = arith.constant 1 : index
    %c0_123 = arith.constant 0 : index
    %c0_124 = arith.constant 0 : index
    %232 = vector.load %arg3[%c0_121, %c1_122, %c0_123, %c0_124] : memref<4x17x16x128xbf16, #tpu.memory_space<vmem>>, vector<1x1x16x128xbf16>
    %233 = vector.shape_cast %232 : vector<1x1x16x128xbf16> to vector<16x128xbf16>
    %234 = arith.extf %233 : vector<16x128xbf16> to vector<16x128xf32>
    %235 = arith.subf %234, %214 : vector<16x128xf32>
    %236 = math.exp %235 : vector<16x128xf32>
    %237 = arith.addf %222, %236 : vector<16x128xf32>
    %cst_125 = arith.constant 1.000000e+00 : f32
    %238 = vector.broadcast %cst_125 : f32 to vector<16x128xf32>
    %239 = arith.subf %147, %238 : vector<16x128xf32>
    %240 = math.absf %239 : vector<16x128xf32>
    %cst_126 = arith.constant 1.000000e+00 : f32
    %241 = vector.broadcast %cst_126 : f32 to vector<16x128xf32>
    %242 = arith.subf %241, %240 : vector<16x128xf32>
    %cst_127 = arith.constant 0.000000e+00 : f32
    %243 = vector.broadcast %cst_127 : f32 to vector<16x128xf32>
    %244 = arith.maximumf %242, %243 : vector<16x128xf32>
    %245 = arith.mulf %234, %244 : vector<16x128xf32>
    %246 = arith.addf %231, %245 : vector<16x128xf32>
    %c0_128 = arith.constant 0 : index
    %c2_129 = arith.constant 2 : index
    %c0_130 = arith.constant 0 : index
    %c0_131 = arith.constant 0 : index
    %247 = vector.load %arg3[%c0_128, %c2_129, %c0_130, %c0_131] : memref<4x17x16x128xbf16, #tpu.memory_space<vmem>>, vector<1x1x16x128xbf16>
    %248 = vector.shape_cast %247 : vector<1x1x16x128xbf16> to vector<16x128xbf16>
    %249 = arith.extf %248 : vector<16x128xbf16> to vector<16x128xf32>
    %250 = arith.subf %249, %214 : vector<16x128xf32>
    %251 = math.exp %250 : vector<16x128xf32>
    %252 = arith.addf %237, %251 : vector<16x128xf32>
    %cst_132 = arith.constant 2.000000e+00 : f32
    %253 = vector.broadcast %cst_132 : f32 to vector<16x128xf32>
    %254 = arith.subf %147, %253 : vector<16x128xf32>
    %255 = math.absf %254 : vector<16x128xf32>
    %cst_133 = arith.constant 1.000000e+00 : f32
    %256 = vector.broadcast %cst_133 : f32 to vector<16x128xf32>
    %257 = arith.subf %256, %255 : vector<16x128xf32>
    %cst_134 = arith.constant 0.000000e+00 : f32
    %258 = vector.broadcast %cst_134 : f32 to vector<16x128xf32>
    %259 = arith.maximumf %257, %258 : vector<16x128xf32>
    %260 = arith.mulf %249, %259 : vector<16x128xf32>
    %261 = arith.addf %246, %260 : vector<16x128xf32>
    %c0_135 = arith.constant 0 : index
    %c3_136 = arith.constant 3 : index
    %c0_137 = arith.constant 0 : index
    %c0_138 = arith.constant 0 : index
    %262 = vector.load %arg3[%c0_135, %c3_136, %c0_137, %c0_138] : memref<4x17x16x128xbf16, #tpu.memory_space<vmem>>, vector<1x1x16x128xbf16>
    %263 = vector.shape_cast %262 : vector<1x1x16x128xbf16> to vector<16x128xbf16>
    %264 = arith.extf %263 : vector<16x128xbf16> to vector<16x128xf32>
    %265 = arith.subf %264, %214 : vector<16x128xf32>
    %266 = math.exp %265 : vector<16x128xf32>
    %267 = arith.addf %252, %266 : vector<16x128xf32>
    %cst_139 = arith.constant 3.000000e+00 : f32
    %268 = vector.broadcast %cst_139 : f32 to vector<16x128xf32>
    %269 = arith.subf %147, %268 : vector<16x128xf32>
    %270 = math.absf %269 : vector<16x128xf32>
    %cst_140 = arith.constant 1.000000e+00 : f32
    %271 = vector.broadcast %cst_140 : f32 to vector<16x128xf32>
    %272 = arith.subf %271, %270 : vector<16x128xf32>
    %cst_141 = arith.constant 0.000000e+00 : f32
    %273 = vector.broadcast %cst_141 : f32 to vector<16x128xf32>
    %274 = arith.maximumf %272, %273 : vector<16x128xf32>
    %275 = arith.mulf %264, %274 : vector<16x128xf32>
    %276 = arith.addf %261, %275 : vector<16x128xf32>
    %c0_142 = arith.constant 0 : index
    %c4_143 = arith.constant 4 : index
    %c0_144 = arith.constant 0 : index
    %c0_145 = arith.constant 0 : index
    %277 = vector.load %arg3[%c0_142, %c4_143, %c0_144, %c0_145] : memref<4x17x16x128xbf16, #tpu.memory_space<vmem>>, vector<1x1x16x128xbf16>
    %278 = vector.shape_cast %277 : vector<1x1x16x128xbf16> to vector<16x128xbf16>
    %279 = arith.extf %278 : vector<16x128xbf16> to vector<16x128xf32>
    %280 = arith.subf %279, %214 : vector<16x128xf32>
    %281 = math.exp %280 : vector<16x128xf32>
    %282 = arith.addf %267, %281 : vector<16x128xf32>
    %cst_146 = arith.constant 4.000000e+00 : f32
    %283 = vector.broadcast %cst_146 : f32 to vector<16x128xf32>
    %284 = arith.subf %147, %283 : vector<16x128xf32>
    %285 = math.absf %284 : vector<16x128xf32>
    %cst_147 = arith.constant 1.000000e+00 : f32
    %286 = vector.broadcast %cst_147 : f32 to vector<16x128xf32>
    %287 = arith.subf %286, %285 : vector<16x128xf32>
    %cst_148 = arith.constant 0.000000e+00 : f32
    %288 = vector.broadcast %cst_148 : f32 to vector<16x128xf32>
    %289 = arith.maximumf %287, %288 : vector<16x128xf32>
    %290 = arith.mulf %279, %289 : vector<16x128xf32>
    %291 = arith.addf %276, %290 : vector<16x128xf32>
    %c0_149 = arith.constant 0 : index
    %c5_150 = arith.constant 5 : index
    %c0_151 = arith.constant 0 : index
    %c0_152 = arith.constant 0 : index
    %292 = vector.load %arg3[%c0_149, %c5_150, %c0_151, %c0_152] : memref<4x17x16x128xbf16, #tpu.memory_space<vmem>>, vector<1x1x16x128xbf16>
    %293 = vector.shape_cast %292 : vector<1x1x16x128xbf16> to vector<16x128xbf16>
    %294 = arith.extf %293 : vector<16x128xbf16> to vector<16x128xf32>
    %295 = arith.subf %294, %214 : vector<16x128xf32>
    %296 = math.exp %295 : vector<16x128xf32>
    %297 = arith.addf %282, %296 : vector<16x128xf32>
    %cst_153 = arith.constant 5.000000e+00 : f32
    %298 = vector.broadcast %cst_153 : f32 to vector<16x128xf32>
    %299 = arith.subf %147, %298 : vector<16x128xf32>
    %300 = math.absf %299 : vector<16x128xf32>
    %cst_154 = arith.constant 1.000000e+00 : f32
    %301 = vector.broadcast %cst_154 : f32 to vector<16x128xf32>
    %302 = arith.subf %301, %300 : vector<16x128xf32>
    %cst_155 = arith.constant 0.000000e+00 : f32
    %303 = vector.broadcast %cst_155 : f32 to vector<16x128xf32>
    %304 = arith.maximumf %302, %303 : vector<16x128xf32>
    %305 = arith.mulf %294, %304 : vector<16x128xf32>
    %306 = arith.addf %291, %305 : vector<16x128xf32>
    %c0_156 = arith.constant 0 : index
    %c6_157 = arith.constant 6 : index
    %c0_158 = arith.constant 0 : index
    %c0_159 = arith.constant 0 : index
    %307 = vector.load %arg3[%c0_156, %c6_157, %c0_158, %c0_159] : memref<4x17x16x128xbf16, #tpu.memory_space<vmem>>, vector<1x1x16x128xbf16>
    %308 = vector.shape_cast %307 : vector<1x1x16x128xbf16> to vector<16x128xbf16>
    %309 = arith.extf %308 : vector<16x128xbf16> to vector<16x128xf32>
    %310 = arith.subf %309, %214 : vector<16x128xf32>
    %311 = math.exp %310 : vector<16x128xf32>
    %312 = arith.addf %297, %311 : vector<16x128xf32>
    %cst_160 = arith.constant 6.000000e+00 : f32
    %313 = vector.broadcast %cst_160 : f32 to vector<16x128xf32>
    %314 = arith.subf %147, %313 : vector<16x128xf32>
    %315 = math.absf %314 : vector<16x128xf32>
    %cst_161 = arith.constant 1.000000e+00 : f32
    %316 = vector.broadcast %cst_161 : f32 to vector<16x128xf32>
    %317 = arith.subf %316, %315 : vector<16x128xf32>
    %cst_162 = arith.constant 0.000000e+00 : f32
    %318 = vector.broadcast %cst_162 : f32 to vector<16x128xf32>
    %319 = arith.maximumf %317, %318 : vector<16x128xf32>
    %320 = arith.mulf %309, %319 : vector<16x128xf32>
    %321 = arith.addf %306, %320 : vector<16x128xf32>
    %c0_163 = arith.constant 0 : index
    %c7_164 = arith.constant 7 : index
    %c0_165 = arith.constant 0 : index
    %c0_166 = arith.constant 0 : index
    %322 = vector.load %arg3[%c0_163, %c7_164, %c0_165, %c0_166] : memref<4x17x16x128xbf16, #tpu.memory_space<vmem>>, vector<1x1x16x128xbf16>
    %323 = vector.shape_cast %322 : vector<1x1x16x128xbf16> to vector<16x128xbf16>
    %324 = arith.extf %323 : vector<16x128xbf16> to vector<16x128xf32>
    %325 = arith.subf %324, %214 : vector<16x128xf32>
    %326 = math.exp %325 : vector<16x128xf32>
    %327 = arith.addf %312, %326 : vector<16x128xf32>
    %cst_167 = arith.constant 7.000000e+00 : f32
    %328 = vector.broadcast %cst_167 : f32 to vector<16x128xf32>
    %329 = arith.subf %147, %328 : vector<16x128xf32>
    %330 = math.absf %329 : vector<16x128xf32>
    %cst_168 = arith.constant 1.000000e+00 : f32
    %331 = vector.broadcast %cst_168 : f32 to vector<16x128xf32>
    %332 = arith.subf %331, %330 : vector<16x128xf32>
    %cst_169 = arith.constant 0.000000e+00 : f32
    %333 = vector.broadcast %cst_169 : f32 to vector<16x128xf32>
    %334 = arith.maximumf %332, %333 : vector<16x128xf32>
    %335 = arith.mulf %324, %334 : vector<16x128xf32>
    %336 = arith.addf %321, %335 : vector<16x128xf32>
    %c0_170 = arith.constant 0 : index
    %c8_171 = arith.constant 8 : index
    %c0_172 = arith.constant 0 : index
    %c0_173 = arith.constant 0 : index
    %337 = vector.load %arg3[%c0_170, %c8_171, %c0_172, %c0_173] : memref<4x17x16x128xbf16, #tpu.memory_space<vmem>>, vector<1x1x16x128xbf16>
    %338 = vector.shape_cast %337 : vector<1x1x16x128xbf16> to vector<16x128xbf16>
    %339 = arith.extf %338 : vector<16x128xbf16> to vector<16x128xf32>
    %340 = arith.subf %339, %214 : vector<16x128xf32>
    %341 = math.exp %340 : vector<16x128xf32>
    %342 = arith.addf %327, %341 : vector<16x128xf32>
    %cst_174 = arith.constant 8.000000e+00 : f32
    %343 = vector.broadcast %cst_174 : f32 to vector<16x128xf32>
    %344 = arith.subf %147, %343 : vector<16x128xf32>
    %345 = math.absf %344 : vector<16x128xf32>
    %cst_175 = arith.constant 1.000000e+00 : f32
    %346 = vector.broadcast %cst_175 : f32 to vector<16x128xf32>
    %347 = arith.subf %346, %345 : vector<16x128xf32>
    %cst_176 = arith.constant 0.000000e+00 : f32
    %348 = vector.broadcast %cst_176 : f32 to vector<16x128xf32>
    %349 = arith.maximumf %347, %348 : vector<16x128xf32>
    %350 = arith.mulf %339, %349 : vector<16x128xf32>
    %351 = arith.addf %336, %350 : vector<16x128xf32>
    %c0_177 = arith.constant 0 : index
    %c9_178 = arith.constant 9 : index
    %c0_179 = arith.constant 0 : index
    %c0_180 = arith.constant 0 : index
    %352 = vector.load %arg3[%c0_177, %c9_178, %c0_179, %c0_180] : memref<4x17x16x128xbf16, #tpu.memory_space<vmem>>, vector<1x1x16x128xbf16>
    %353 = vector.shape_cast %352 : vector<1x1x16x128xbf16> to vector<16x128xbf16>
    %354 = arith.extf %353 : vector<16x128xbf16> to vector<16x128xf32>
    %355 = arith.subf %354, %214 : vector<16x128xf32>
    %356 = math.exp %355 : vector<16x128xf32>
    %357 = arith.addf %342, %356 : vector<16x128xf32>
    %cst_181 = arith.constant 9.000000e+00 : f32
    %358 = vector.broadcast %cst_181 : f32 to vector<16x128xf32>
    %359 = arith.subf %147, %358 : vector<16x128xf32>
    %360 = math.absf %359 : vector<16x128xf32>
    %cst_182 = arith.constant 1.000000e+00 : f32
    %361 = vector.broadcast %cst_182 : f32 to vector<16x128xf32>
    %362 = arith.subf %361, %360 : vector<16x128xf32>
    %cst_183 = arith.constant 0.000000e+00 : f32
    %363 = vector.broadcast %cst_183 : f32 to vector<16x128xf32>
    %364 = arith.maximumf %362, %363 : vector<16x128xf32>
    %365 = arith.mulf %354, %364 : vector<16x128xf32>
    %366 = arith.addf %351, %365 : vector<16x128xf32>
    %c0_184 = arith.constant 0 : index
    %c10_185 = arith.constant 10 : index
    %c0_186 = arith.constant 0 : index
    %c0_187 = arith.constant 0 : index
    %367 = vector.load %arg3[%c0_184, %c10_185, %c0_186, %c0_187] : memref<4x17x16x128xbf16, #tpu.memory_space<vmem>>, vector<1x1x16x128xbf16>
    %368 = vector.shape_cast %367 : vector<1x1x16x128xbf16> to vector<16x128xbf16>
    %369 = arith.extf %368 : vector<16x128xbf16> to vector<16x128xf32>
    %370 = arith.subf %369, %214 : vector<16x128xf32>
    %371 = math.exp %370 : vector<16x128xf32>
    %372 = arith.addf %357, %371 : vector<16x128xf32>
    %cst_188 = arith.constant 1.000000e+01 : f32
    %373 = vector.broadcast %cst_188 : f32 to vector<16x128xf32>
    %374 = arith.subf %147, %373 : vector<16x128xf32>
    %375 = math.absf %374 : vector<16x128xf32>
    %cst_189 = arith.constant 1.000000e+00 : f32
    %376 = vector.broadcast %cst_189 : f32 to vector<16x128xf32>
    %377 = arith.subf %376, %375 : vector<16x128xf32>
    %cst_190 = arith.constant 0.000000e+00 : f32
    %378 = vector.broadcast %cst_190 : f32 to vector<16x128xf32>
    %379 = arith.maximumf %377, %378 : vector<16x128xf32>
    %380 = arith.mulf %369, %379 : vector<16x128xf32>
    %381 = arith.addf %366, %380 : vector<16x128xf32>
    %c0_191 = arith.constant 0 : index
    %c11_192 = arith.constant 11 : index
    %c0_193 = arith.constant 0 : index
    %c0_194 = arith.constant 0 : index
    %382 = vector.load %arg3[%c0_191, %c11_192, %c0_193, %c0_194] : memref<4x17x16x128xbf16, #tpu.memory_space<vmem>>, vector<1x1x16x128xbf16>
    %383 = vector.shape_cast %382 : vector<1x1x16x128xbf16> to vector<16x128xbf16>
    %384 = arith.extf %383 : vector<16x128xbf16> to vector<16x128xf32>
    %385 = arith.subf %384, %214 : vector<16x128xf32>
    %386 = math.exp %385 : vector<16x128xf32>
    %387 = arith.addf %372, %386 : vector<16x128xf32>
    %cst_195 = arith.constant 1.100000e+01 : f32
    %388 = vector.broadcast %cst_195 : f32 to vector<16x128xf32>
    %389 = arith.subf %147, %388 : vector<16x128xf32>
    %390 = math.absf %389 : vector<16x128xf32>
    %cst_196 = arith.constant 1.000000e+00 : f32
    %391 = vector.broadcast %cst_196 : f32 to vector<16x128xf32>
    %392 = arith.subf %391, %390 : vector<16x128xf32>
    %cst_197 = arith.constant 0.000000e+00 : f32
    %393 = vector.broadcast %cst_197 : f32 to vector<16x128xf32>
    %394 = arith.maximumf %392, %393 : vector<16x128xf32>
    %395 = arith.mulf %384, %394 : vector<16x128xf32>
    %396 = arith.addf %381, %395 : vector<16x128xf32>
    %c0_198 = arith.constant 0 : index
    %c12_199 = arith.constant 12 : index
    %c0_200 = arith.constant 0 : index
    %c0_201 = arith.constant 0 : index
    %397 = vector.load %arg3[%c0_198, %c12_199, %c0_200, %c0_201] : memref<4x17x16x128xbf16, #tpu.memory_space<vmem>>, vector<1x1x16x128xbf16>
    %398 = vector.shape_cast %397 : vector<1x1x16x128xbf16> to vector<16x128xbf16>
    %399 = arith.extf %398 : vector<16x128xbf16> to vector<16x128xf32>
    %400 = arith.subf %399, %214 : vector<16x128xf32>
    %401 = math.exp %400 : vector<16x128xf32>
    %402 = arith.addf %387, %401 : vector<16x128xf32>
    %cst_202 = arith.constant 1.200000e+01 : f32
    %403 = vector.broadcast %cst_202 : f32 to vector<16x128xf32>
    %404 = arith.subf %147, %403 : vector<16x128xf32>
    %405 = math.absf %404 : vector<16x128xf32>
    %cst_203 = arith.constant 1.000000e+00 : f32
    %406 = vector.broadcast %cst_203 : f32 to vector<16x128xf32>
    %407 = arith.subf %406, %405 : vector<16x128xf32>
    %cst_204 = arith.constant 0.000000e+00 : f32
    %408 = vector.broadcast %cst_204 : f32 to vector<16x128xf32>
    %409 = arith.maximumf %407, %408 : vector<16x128xf32>
    %410 = arith.mulf %399, %409 : vector<16x128xf32>
    %411 = arith.addf %396, %410 : vector<16x128xf32>
    %c0_205 = arith.constant 0 : index
    %c13_206 = arith.constant 13 : index
    %c0_207 = arith.constant 0 : index
    %c0_208 = arith.constant 0 : index
    %412 = vector.load %arg3[%c0_205, %c13_206, %c0_207, %c0_208] : memref<4x17x16x128xbf16, #tpu.memory_space<vmem>>, vector<1x1x16x128xbf16>
    %413 = vector.shape_cast %412 : vector<1x1x16x128xbf16> to vector<16x128xbf16>
    %414 = arith.extf %413 : vector<16x128xbf16> to vector<16x128xf32>
    %415 = arith.subf %414, %214 : vector<16x128xf32>
    %416 = math.exp %415 : vector<16x128xf32>
    %417 = arith.addf %402, %416 : vector<16x128xf32>
    %cst_209 = arith.constant 1.300000e+01 : f32
    %418 = vector.broadcast %cst_209 : f32 to vector<16x128xf32>
    %419 = arith.subf %147, %418 : vector<16x128xf32>
    %420 = math.absf %419 : vector<16x128xf32>
    %cst_210 = arith.constant 1.000000e+00 : f32
    %421 = vector.broadcast %cst_210 : f32 to vector<16x128xf32>
    %422 = arith.subf %421, %420 : vector<16x128xf32>
    %cst_211 = arith.constant 0.000000e+00 : f32
    %423 = vector.broadcast %cst_211 : f32 to vector<16x128xf32>
    %424 = arith.maximumf %422, %423 : vector<16x128xf32>
    %425 = arith.mulf %414, %424 : vector<16x128xf32>
    %426 = arith.addf %411, %425 : vector<16x128xf32>
    %c0_212 = arith.constant 0 : index
    %c14_213 = arith.constant 14 : index
    %c0_214 = arith.constant 0 : index
    %c0_215 = arith.constant 0 : index
    %427 = vector.load %arg3[%c0_212, %c14_213, %c0_214, %c0_215] : memref<4x17x16x128xbf16, #tpu.memory_space<vmem>>, vector<1x1x16x128xbf16>
    %428 = vector.shape_cast %427 : vector<1x1x16x128xbf16> to vector<16x128xbf16>
    %429 = arith.extf %428 : vector<16x128xbf16> to vector<16x128xf32>
    %430 = arith.subf %429, %214 : vector<16x128xf32>
    %431 = math.exp %430 : vector<16x128xf32>
    %432 = arith.addf %417, %431 : vector<16x128xf32>
    %cst_216 = arith.constant 1.400000e+01 : f32
    %433 = vector.broadcast %cst_216 : f32 to vector<16x128xf32>
    %434 = arith.subf %147, %433 : vector<16x128xf32>
    %435 = math.absf %434 : vector<16x128xf32>
    %cst_217 = arith.constant 1.000000e+00 : f32
    %436 = vector.broadcast %cst_217 : f32 to vector<16x128xf32>
    %437 = arith.subf %436, %435 : vector<16x128xf32>
    %cst_218 = arith.constant 0.000000e+00 : f32
    %438 = vector.broadcast %cst_218 : f32 to vector<16x128xf32>
    %439 = arith.maximumf %437, %438 : vector<16x128xf32>
    %440 = arith.mulf %429, %439 : vector<16x128xf32>
    %441 = arith.addf %426, %440 : vector<16x128xf32>
    %c0_219 = arith.constant 0 : index
    %c15_220 = arith.constant 15 : index
    %c0_221 = arith.constant 0 : index
    %c0_222 = arith.constant 0 : index
    %442 = vector.load %arg3[%c0_219, %c15_220, %c0_221, %c0_222] : memref<4x17x16x128xbf16, #tpu.memory_space<vmem>>, vector<1x1x16x128xbf16>
    %443 = vector.shape_cast %442 : vector<1x1x16x128xbf16> to vector<16x128xbf16>
    %444 = arith.extf %443 : vector<16x128xbf16> to vector<16x128xf32>
    %445 = arith.subf %444, %214 : vector<16x128xf32>
    %446 = math.exp %445 : vector<16x128xf32>
    %447 = arith.addf %432, %446 : vector<16x128xf32>
    %cst_223 = arith.constant 1.500000e+01 : f32
    %448 = vector.broadcast %cst_223 : f32 to vector<16x128xf32>
    %449 = arith.subf %147, %448 : vector<16x128xf32>
    %450 = math.absf %449 : vector<16x128xf32>
    %cst_224 = arith.constant 1.000000e+00 : f32
    %451 = vector.broadcast %cst_224 : f32 to vector<16x128xf32>
    %452 = arith.subf %451, %450 : vector<16x128xf32>
    %cst_225 = arith.constant 0.000000e+00 : f32
    %453 = vector.broadcast %cst_225 : f32 to vector<16x128xf32>
    %454 = arith.maximumf %452, %453 : vector<16x128xf32>
    %455 = arith.mulf %444, %454 : vector<16x128xf32>
    %456 = arith.addf %441, %455 : vector<16x128xf32>
    %c0_226 = arith.constant 0 : index
    %c16_227 = arith.constant 16 : index
    %c0_228 = arith.constant 0 : index
    %c0_229 = arith.constant 0 : index
    %457 = vector.load %arg3[%c0_226, %c16_227, %c0_228, %c0_229] : memref<4x17x16x128xbf16, #tpu.memory_space<vmem>>, vector<1x1x16x128xbf16>
    %458 = vector.shape_cast %457 : vector<1x1x16x128xbf16> to vector<16x128xbf16>
    %459 = arith.extf %458 : vector<16x128xbf16> to vector<16x128xf32>
    %460 = arith.subf %459, %214 : vector<16x128xf32>
    %461 = math.exp %460 : vector<16x128xf32>
    %462 = arith.addf %447, %461 : vector<16x128xf32>
    %cst_230 = arith.constant 1.600000e+01 : f32
    %463 = vector.broadcast %cst_230 : f32 to vector<16x128xf32>
    %464 = arith.subf %147, %463 : vector<16x128xf32>
    %465 = math.absf %464 : vector<16x128xf32>
    %cst_231 = arith.constant 1.000000e+00 : f32
    %466 = vector.broadcast %cst_231 : f32 to vector<16x128xf32>
    %467 = arith.subf %466, %465 : vector<16x128xf32>
    %cst_232 = arith.constant 0.000000e+00 : f32
    %468 = vector.broadcast %cst_232 : f32 to vector<16x128xf32>
    %469 = arith.maximumf %467, %468 : vector<16x128xf32>
    %470 = arith.mulf %459, %469 : vector<16x128xf32>
    %471 = arith.addf %456, %470 : vector<16x128xf32>
    %472 = math.log %462 : vector<16x128xf32>
    %473 = arith.addf %214, %472 : vector<16x128xf32>
    %474 = arith.subf %473, %471 : vector<16x128xf32>
    %475 = arith.addf %139, %474 : vector<16x128xf32>
    %cst_233 = arith.constant 0.000000e+00 : f32
    %cst_234 = arith.constant 1.599000e+01 : f32
    %476 = vector.broadcast %cst_233 : f32 to vector<16x128xf32>
    %477 = arith.maximumf %476, %141 : vector<16x128xf32>
    %478 = vector.broadcast %cst_234 : f32 to vector<16x128xf32>
    %479 = arith.minimumf %478, %477 : vector<16x128xf32>
    %c1_235 = arith.constant 1 : index
    %c0_236 = arith.constant 0 : index
    %c0_237 = arith.constant 0 : index
    %c0_238 = arith.constant 0 : index
    %480 = vector.load %arg3[%c1_235, %c0_236, %c0_237, %c0_238] : memref<4x17x16x128xbf16, #tpu.memory_space<vmem>>, vector<1x1x16x128xbf16>
    %481 = vector.shape_cast %480 : vector<1x1x16x128xbf16> to vector<16x128xbf16>
    %482 = arith.extf %481 : vector<16x128xbf16> to vector<16x128xf32>
    %c1_239 = arith.constant 1 : index
    %c1_240 = arith.constant 1 : index
    %c0_241 = arith.constant 0 : index
    %c0_242 = arith.constant 0 : index
    %483 = vector.load %arg3[%c1_239, %c1_240, %c0_241, %c0_242] : memref<4x17x16x128xbf16, #tpu.memory_space<vmem>>, vector<1x1x16x128xbf16>
    %484 = vector.shape_cast %483 : vector<1x1x16x128xbf16> to vector<16x128xbf16>
    %485 = arith.extf %484 : vector<16x128xbf16> to vector<16x128xf32>
    %486 = arith.maximumf %482, %485 : vector<16x128xf32>
    %c1_243 = arith.constant 1 : index
    %c2_244 = arith.constant 2 : index
    %c0_245 = arith.constant 0 : index
    %c0_246 = arith.constant 0 : index
    %487 = vector.load %arg3[%c1_243, %c2_244, %c0_245, %c0_246] : memref<4x17x16x128xbf16, #tpu.memory_space<vmem>>, vector<1x1x16x128xbf16>
    %488 = vector.shape_cast %487 : vector<1x1x16x128xbf16> to vector<16x128xbf16>
    %489 = arith.extf %488 : vector<16x128xbf16> to vector<16x128xf32>
    %490 = arith.maximumf %486, %489 : vector<16x128xf32>
    %c1_247 = arith.constant 1 : index
    %c3_248 = arith.constant 3 : index
    %c0_249 = arith.constant 0 : index
    %c0_250 = arith.constant 0 : index
    %491 = vector.load %arg3[%c1_247, %c3_248, %c0_249, %c0_250] : memref<4x17x16x128xbf16, #tpu.memory_space<vmem>>, vector<1x1x16x128xbf16>
    %492 = vector.shape_cast %491 : vector<1x1x16x128xbf16> to vector<16x128xbf16>
    %493 = arith.extf %492 : vector<16x128xbf16> to vector<16x128xf32>
    %494 = arith.maximumf %490, %493 : vector<16x128xf32>
    %c1_251 = arith.constant 1 : index
    %c4_252 = arith.constant 4 : index
    %c0_253 = arith.constant 0 : index
    %c0_254 = arith.constant 0 : index
    %495 = vector.load %arg3[%c1_251, %c4_252, %c0_253, %c0_254] : memref<4x17x16x128xbf16, #tpu.memory_space<vmem>>, vector<1x1x16x128xbf16>
    %496 = vector.shape_cast %495 : vector<1x1x16x128xbf16> to vector<16x128xbf16>
    %497 = arith.extf %496 : vector<16x128xbf16> to vector<16x128xf32>
    %498 = arith.maximumf %494, %497 : vector<16x128xf32>
    %c1_255 = arith.constant 1 : index
    %c5_256 = arith.constant 5 : index
    %c0_257 = arith.constant 0 : index
    %c0_258 = arith.constant 0 : index
    %499 = vector.load %arg3[%c1_255, %c5_256, %c0_257, %c0_258] : memref<4x17x16x128xbf16, #tpu.memory_space<vmem>>, vector<1x1x16x128xbf16>
    %500 = vector.shape_cast %499 : vector<1x1x16x128xbf16> to vector<16x128xbf16>
    %501 = arith.extf %500 : vector<16x128xbf16> to vector<16x128xf32>
    %502 = arith.maximumf %498, %501 : vector<16x128xf32>
    %c1_259 = arith.constant 1 : index
    %c6_260 = arith.constant 6 : index
    %c0_261 = arith.constant 0 : index
    %c0_262 = arith.constant 0 : index
    %503 = vector.load %arg3[%c1_259, %c6_260, %c0_261, %c0_262] : memref<4x17x16x128xbf16, #tpu.memory_space<vmem>>, vector<1x1x16x128xbf16>
    %504 = vector.shape_cast %503 : vector<1x1x16x128xbf16> to vector<16x128xbf16>
    %505 = arith.extf %504 : vector<16x128xbf16> to vector<16x128xf32>
    %506 = arith.maximumf %502, %505 : vector<16x128xf32>
    %c1_263 = arith.constant 1 : index
    %c7_264 = arith.constant 7 : index
    %c0_265 = arith.constant 0 : index
    %c0_266 = arith.constant 0 : index
    %507 = vector.load %arg3[%c1_263, %c7_264, %c0_265, %c0_266] : memref<4x17x16x128xbf16, #tpu.memory_space<vmem>>, vector<1x1x16x128xbf16>
    %508 = vector.shape_cast %507 : vector<1x1x16x128xbf16> to vector<16x128xbf16>
    %509 = arith.extf %508 : vector<16x128xbf16> to vector<16x128xf32>
    %510 = arith.maximumf %506, %509 : vector<16x128xf32>
    %c1_267 = arith.constant 1 : index
    %c8_268 = arith.constant 8 : index
    %c0_269 = arith.constant 0 : index
    %c0_270 = arith.constant 0 : index
    %511 = vector.load %arg3[%c1_267, %c8_268, %c0_269, %c0_270] : memref<4x17x16x128xbf16, #tpu.memory_space<vmem>>, vector<1x1x16x128xbf16>
    %512 = vector.shape_cast %511 : vector<1x1x16x128xbf16> to vector<16x128xbf16>
    %513 = arith.extf %512 : vector<16x128xbf16> to vector<16x128xf32>
    %514 = arith.maximumf %510, %513 : vector<16x128xf32>
    %c1_271 = arith.constant 1 : index
    %c9_272 = arith.constant 9 : index
    %c0_273 = arith.constant 0 : index
    %c0_274 = arith.constant 0 : index
    %515 = vector.load %arg3[%c1_271, %c9_272, %c0_273, %c0_274] : memref<4x17x16x128xbf16, #tpu.memory_space<vmem>>, vector<1x1x16x128xbf16>
    %516 = vector.shape_cast %515 : vector<1x1x16x128xbf16> to vector<16x128xbf16>
    %517 = arith.extf %516 : vector<16x128xbf16> to vector<16x128xf32>
    %518 = arith.maximumf %514, %517 : vector<16x128xf32>
    %c1_275 = arith.constant 1 : index
    %c10_276 = arith.constant 10 : index
    %c0_277 = arith.constant 0 : index
    %c0_278 = arith.constant 0 : index
    %519 = vector.load %arg3[%c1_275, %c10_276, %c0_277, %c0_278] : memref<4x17x16x128xbf16, #tpu.memory_space<vmem>>, vector<1x1x16x128xbf16>
    %520 = vector.shape_cast %519 : vector<1x1x16x128xbf16> to vector<16x128xbf16>
    %521 = arith.extf %520 : vector<16x128xbf16> to vector<16x128xf32>
    %522 = arith.maximumf %518, %521 : vector<16x128xf32>
    %c1_279 = arith.constant 1 : index
    %c11_280 = arith.constant 11 : index
    %c0_281 = arith.constant 0 : index
    %c0_282 = arith.constant 0 : index
    %523 = vector.load %arg3[%c1_279, %c11_280, %c0_281, %c0_282] : memref<4x17x16x128xbf16, #tpu.memory_space<vmem>>, vector<1x1x16x128xbf16>
    %524 = vector.shape_cast %523 : vector<1x1x16x128xbf16> to vector<16x128xbf16>
    %525 = arith.extf %524 : vector<16x128xbf16> to vector<16x128xf32>
    %526 = arith.maximumf %522, %525 : vector<16x128xf32>
    %c1_283 = arith.constant 1 : index
    %c12_284 = arith.constant 12 : index
    %c0_285 = arith.constant 0 : index
    %c0_286 = arith.constant 0 : index
    %527 = vector.load %arg3[%c1_283, %c12_284, %c0_285, %c0_286] : memref<4x17x16x128xbf16, #tpu.memory_space<vmem>>, vector<1x1x16x128xbf16>
    %528 = vector.shape_cast %527 : vector<1x1x16x128xbf16> to vector<16x128xbf16>
    %529 = arith.extf %528 : vector<16x128xbf16> to vector<16x128xf32>
    %530 = arith.maximumf %526, %529 : vector<16x128xf32>
    %c1_287 = arith.constant 1 : index
    %c13_288 = arith.constant 13 : index
    %c0_289 = arith.constant 0 : index
    %c0_290 = arith.constant 0 : index
    %531 = vector.load %arg3[%c1_287, %c13_288, %c0_289, %c0_290] : memref<4x17x16x128xbf16, #tpu.memory_space<vmem>>, vector<1x1x16x128xbf16>
    %532 = vector.shape_cast %531 : vector<1x1x16x128xbf16> to vector<16x128xbf16>
    %533 = arith.extf %532 : vector<16x128xbf16> to vector<16x128xf32>
    %534 = arith.maximumf %530, %533 : vector<16x128xf32>
    %c1_291 = arith.constant 1 : index
    %c14_292 = arith.constant 14 : index
    %c0_293 = arith.constant 0 : index
    %c0_294 = arith.constant 0 : index
    %535 = vector.load %arg3[%c1_291, %c14_292, %c0_293, %c0_294] : memref<4x17x16x128xbf16, #tpu.memory_space<vmem>>, vector<1x1x16x128xbf16>
    %536 = vector.shape_cast %535 : vector<1x1x16x128xbf16> to vector<16x128xbf16>
    %537 = arith.extf %536 : vector<16x128xbf16> to vector<16x128xf32>
    %538 = arith.maximumf %534, %537 : vector<16x128xf32>
    %c1_295 = arith.constant 1 : index
    %c15_296 = arith.constant 15 : index
    %c0_297 = arith.constant 0 : index
    %c0_298 = arith.constant 0 : index
    %539 = vector.load %arg3[%c1_295, %c15_296, %c0_297, %c0_298] : memref<4x17x16x128xbf16, #tpu.memory_space<vmem>>, vector<1x1x16x128xbf16>
    %540 = vector.shape_cast %539 : vector<1x1x16x128xbf16> to vector<16x128xbf16>
    %541 = arith.extf %540 : vector<16x128xbf16> to vector<16x128xf32>
    %542 = arith.maximumf %538, %541 : vector<16x128xf32>
    %c1_299 = arith.constant 1 : index
    %c16_300 = arith.constant 16 : index
    %c0_301 = arith.constant 0 : index
    %c0_302 = arith.constant 0 : index
    %543 = vector.load %arg3[%c1_299, %c16_300, %c0_301, %c0_302] : memref<4x17x16x128xbf16, #tpu.memory_space<vmem>>, vector<1x1x16x128xbf16>
    %544 = vector.shape_cast %543 : vector<1x1x16x128xbf16> to vector<16x128xbf16>
    %545 = arith.extf %544 : vector<16x128xbf16> to vector<16x128xf32>
    %546 = arith.maximumf %542, %545 : vector<16x128xf32>
    %cst_303 = arith.constant 0.000000e+00 : f32
    %547 = vector.broadcast %cst_303 : f32 to vector<16x128xf32>
    %cst_304 = arith.constant 0.000000e+00 : f32
    %548 = vector.broadcast %cst_304 : f32 to vector<16x128xf32>
    %c1_305 = arith.constant 1 : index
    %c0_306 = arith.constant 0 : index
    %c0_307 = arith.constant 0 : index
    %c0_308 = arith.constant 0 : index
    %549 = vector.load %arg3[%c1_305, %c0_306, %c0_307, %c0_308] : memref<4x17x16x128xbf16, #tpu.memory_space<vmem>>, vector<1x1x16x128xbf16>
    %550 = vector.shape_cast %549 : vector<1x1x16x128xbf16> to vector<16x128xbf16>
    %551 = arith.extf %550 : vector<16x128xbf16> to vector<16x128xf32>
    %552 = arith.subf %551, %546 : vector<16x128xf32>
    %553 = math.exp %552 : vector<16x128xf32>
    %554 = arith.addf %547, %553 : vector<16x128xf32>
    %cst_309 = arith.constant 0.000000e+00 : f32
    %555 = vector.broadcast %cst_309 : f32 to vector<16x128xf32>
    %556 = arith.subf %479, %555 : vector<16x128xf32>
    %557 = math.absf %556 : vector<16x128xf32>
    %cst_310 = arith.constant 1.000000e+00 : f32
    %558 = vector.broadcast %cst_310 : f32 to vector<16x128xf32>
    %559 = arith.subf %558, %557 : vector<16x128xf32>
    %cst_311 = arith.constant 0.000000e+00 : f32
    %560 = vector.broadcast %cst_311 : f32 to vector<16x128xf32>
    %561 = arith.maximumf %559, %560 : vector<16x128xf32>
    %562 = arith.mulf %551, %561 : vector<16x128xf32>
    %563 = arith.addf %548, %562 : vector<16x128xf32>
    %c1_312 = arith.constant 1 : index
    %c1_313 = arith.constant 1 : index
    %c0_314 = arith.constant 0 : index
    %c0_315 = arith.constant 0 : index
    %564 = vector.load %arg3[%c1_312, %c1_313, %c0_314, %c0_315] : memref<4x17x16x128xbf16, #tpu.memory_space<vmem>>, vector<1x1x16x128xbf16>
    %565 = vector.shape_cast %564 : vector<1x1x16x128xbf16> to vector<16x128xbf16>
    %566 = arith.extf %565 : vector<16x128xbf16> to vector<16x128xf32>
    %567 = arith.subf %566, %546 : vector<16x128xf32>
    %568 = math.exp %567 : vector<16x128xf32>
    %569 = arith.addf %554, %568 : vector<16x128xf32>
    %cst_316 = arith.constant 1.000000e+00 : f32
    %570 = vector.broadcast %cst_316 : f32 to vector<16x128xf32>
    %571 = arith.subf %479, %570 : vector<16x128xf32>
    %572 = math.absf %571 : vector<16x128xf32>
    %cst_317 = arith.constant 1.000000e+00 : f32
    %573 = vector.broadcast %cst_317 : f32 to vector<16x128xf32>
    %574 = arith.subf %573, %572 : vector<16x128xf32>
    %cst_318 = arith.constant 0.000000e+00 : f32
    %575 = vector.broadcast %cst_318 : f32 to vector<16x128xf32>
    %576 = arith.maximumf %574, %575 : vector<16x128xf32>
    %577 = arith.mulf %566, %576 : vector<16x128xf32>
    %578 = arith.addf %563, %577 : vector<16x128xf32>
    %c1_319 = arith.constant 1 : index
    %c2_320 = arith.constant 2 : index
    %c0_321 = arith.constant 0 : index
    %c0_322 = arith.constant 0 : index
    %579 = vector.load %arg3[%c1_319, %c2_320, %c0_321, %c0_322] : memref<4x17x16x128xbf16, #tpu.memory_space<vmem>>, vector<1x1x16x128xbf16>
    %580 = vector.shape_cast %579 : vector<1x1x16x128xbf16> to vector<16x128xbf16>
    %581 = arith.extf %580 : vector<16x128xbf16> to vector<16x128xf32>
    %582 = arith.subf %581, %546 : vector<16x128xf32>
    %583 = math.exp %582 : vector<16x128xf32>
    %584 = arith.addf %569, %583 : vector<16x128xf32>
    %cst_323 = arith.constant 2.000000e+00 : f32
    %585 = vector.broadcast %cst_323 : f32 to vector<16x128xf32>
    %586 = arith.subf %479, %585 : vector<16x128xf32>
    %587 = math.absf %586 : vector<16x128xf32>
    %cst_324 = arith.constant 1.000000e+00 : f32
    %588 = vector.broadcast %cst_324 : f32 to vector<16x128xf32>
    %589 = arith.subf %588, %587 : vector<16x128xf32>
    %cst_325 = arith.constant 0.000000e+00 : f32
    %590 = vector.broadcast %cst_325 : f32 to vector<16x128xf32>
    %591 = arith.maximumf %589, %590 : vector<16x128xf32>
    %592 = arith.mulf %581, %591 : vector<16x128xf32>
    %593 = arith.addf %578, %592 : vector<16x128xf32>
    %c1_326 = arith.constant 1 : index
    %c3_327 = arith.constant 3 : index
    %c0_328 = arith.constant 0 : index
    %c0_329 = arith.constant 0 : index
    %594 = vector.load %arg3[%c1_326, %c3_327, %c0_328, %c0_329] : memref<4x17x16x128xbf16, #tpu.memory_space<vmem>>, vector<1x1x16x128xbf16>
    %595 = vector.shape_cast %594 : vector<1x1x16x128xbf16> to vector<16x128xbf16>
    %596 = arith.extf %595 : vector<16x128xbf16> to vector<16x128xf32>
    %597 = arith.subf %596, %546 : vector<16x128xf32>
    %598 = math.exp %597 : vector<16x128xf32>
    %599 = arith.addf %584, %598 : vector<16x128xf32>
    %cst_330 = arith.constant 3.000000e+00 : f32
    %600 = vector.broadcast %cst_330 : f32 to vector<16x128xf32>
    %601 = arith.subf %479, %600 : vector<16x128xf32>
    %602 = math.absf %601 : vector<16x128xf32>
    %cst_331 = arith.constant 1.000000e+00 : f32
    %603 = vector.broadcast %cst_331 : f32 to vector<16x128xf32>
    %604 = arith.subf %603, %602 : vector<16x128xf32>
    %cst_332 = arith.constant 0.000000e+00 : f32
    %605 = vector.broadcast %cst_332 : f32 to vector<16x128xf32>
    %606 = arith.maximumf %604, %605 : vector<16x128xf32>
    %607 = arith.mulf %596, %606 : vector<16x128xf32>
    %608 = arith.addf %593, %607 : vector<16x128xf32>
    %c1_333 = arith.constant 1 : index
    %c4_334 = arith.constant 4 : index
    %c0_335 = arith.constant 0 : index
    %c0_336 = arith.constant 0 : index
    %609 = vector.load %arg3[%c1_333, %c4_334, %c0_335, %c0_336] : memref<4x17x16x128xbf16, #tpu.memory_space<vmem>>, vector<1x1x16x128xbf16>
    %610 = vector.shape_cast %609 : vector<1x1x16x128xbf16> to vector<16x128xbf16>
    %611 = arith.extf %610 : vector<16x128xbf16> to vector<16x128xf32>
    %612 = arith.subf %611, %546 : vector<16x128xf32>
    %613 = math.exp %612 : vector<16x128xf32>
    %614 = arith.addf %599, %613 : vector<16x128xf32>
    %cst_337 = arith.constant 4.000000e+00 : f32
    %615 = vector.broadcast %cst_337 : f32 to vector<16x128xf32>
    %616 = arith.subf %479, %615 : vector<16x128xf32>
    %617 = math.absf %616 : vector<16x128xf32>
    %cst_338 = arith.constant 1.000000e+00 : f32
    %618 = vector.broadcast %cst_338 : f32 to vector<16x128xf32>
    %619 = arith.subf %618, %617 : vector<16x128xf32>
    %cst_339 = arith.constant 0.000000e+00 : f32
    %620 = vector.broadcast %cst_339 : f32 to vector<16x128xf32>
    %621 = arith.maximumf %619, %620 : vector<16x128xf32>
    %622 = arith.mulf %611, %621 : vector<16x128xf32>
    %623 = arith.addf %608, %622 : vector<16x128xf32>
    %c1_340 = arith.constant 1 : index
    %c5_341 = arith.constant 5 : index
    %c0_342 = arith.constant 0 : index
    %c0_343 = arith.constant 0 : index
    %624 = vector.load %arg3[%c1_340, %c5_341, %c0_342, %c0_343] : memref<4x17x16x128xbf16, #tpu.memory_space<vmem>>, vector<1x1x16x128xbf16>
    %625 = vector.shape_cast %624 : vector<1x1x16x128xbf16> to vector<16x128xbf16>
    %626 = arith.extf %625 : vector<16x128xbf16> to vector<16x128xf32>
    %627 = arith.subf %626, %546 : vector<16x128xf32>
    %628 = math.exp %627 : vector<16x128xf32>
    %629 = arith.addf %614, %628 : vector<16x128xf32>
    %cst_344 = arith.constant 5.000000e+00 : f32
    %630 = vector.broadcast %cst_344 : f32 to vector<16x128xf32>
    %631 = arith.subf %479, %630 : vector<16x128xf32>
    %632 = math.absf %631 : vector<16x128xf32>
    %cst_345 = arith.constant 1.000000e+00 : f32
    %633 = vector.broadcast %cst_345 : f32 to vector<16x128xf32>
    %634 = arith.subf %633, %632 : vector<16x128xf32>
    %cst_346 = arith.constant 0.000000e+00 : f32
    %635 = vector.broadcast %cst_346 : f32 to vector<16x128xf32>
    %636 = arith.maximumf %634, %635 : vector<16x128xf32>
    %637 = arith.mulf %626, %636 : vector<16x128xf32>
    %638 = arith.addf %623, %637 : vector<16x128xf32>
    %c1_347 = arith.constant 1 : index
    %c6_348 = arith.constant 6 : index
    %c0_349 = arith.constant 0 : index
    %c0_350 = arith.constant 0 : index
    %639 = vector.load %arg3[%c1_347, %c6_348, %c0_349, %c0_350] : memref<4x17x16x128xbf16, #tpu.memory_space<vmem>>, vector<1x1x16x128xbf16>
    %640 = vector.shape_cast %639 : vector<1x1x16x128xbf16> to vector<16x128xbf16>
    %641 = arith.extf %640 : vector<16x128xbf16> to vector<16x128xf32>
    %642 = arith.subf %641, %546 : vector<16x128xf32>
    %643 = math.exp %642 : vector<16x128xf32>
    %644 = arith.addf %629, %643 : vector<16x128xf32>
    %cst_351 = arith.constant 6.000000e+00 : f32
    %645 = vector.broadcast %cst_351 : f32 to vector<16x128xf32>
    %646 = arith.subf %479, %645 : vector<16x128xf32>
    %647 = math.absf %646 : vector<16x128xf32>
    %cst_352 = arith.constant 1.000000e+00 : f32
    %648 = vector.broadcast %cst_352 : f32 to vector<16x128xf32>
    %649 = arith.subf %648, %647 : vector<16x128xf32>
    %cst_353 = arith.constant 0.000000e+00 : f32
    %650 = vector.broadcast %cst_353 : f32 to vector<16x128xf32>
    %651 = arith.maximumf %649, %650 : vector<16x128xf32>
    %652 = arith.mulf %641, %651 : vector<16x128xf32>
    %653 = arith.addf %638, %652 : vector<16x128xf32>
    %c1_354 = arith.constant 1 : index
    %c7_355 = arith.constant 7 : index
    %c0_356 = arith.constant 0 : index
    %c0_357 = arith.constant 0 : index
    %654 = vector.load %arg3[%c1_354, %c7_355, %c0_356, %c0_357] : memref<4x17x16x128xbf16, #tpu.memory_space<vmem>>, vector<1x1x16x128xbf16>
    %655 = vector.shape_cast %654 : vector<1x1x16x128xbf16> to vector<16x128xbf16>
    %656 = arith.extf %655 : vector<16x128xbf16> to vector<16x128xf32>
    %657 = arith.subf %656, %546 : vector<16x128xf32>
    %658 = math.exp %657 : vector<16x128xf32>
    %659 = arith.addf %644, %658 : vector<16x128xf32>
    %cst_358 = arith.constant 7.000000e+00 : f32
    %660 = vector.broadcast %cst_358 : f32 to vector<16x128xf32>
    %661 = arith.subf %479, %660 : vector<16x128xf32>
    %662 = math.absf %661 : vector<16x128xf32>
    %cst_359 = arith.constant 1.000000e+00 : f32
    %663 = vector.broadcast %cst_359 : f32 to vector<16x128xf32>
    %664 = arith.subf %663, %662 : vector<16x128xf32>
    %cst_360 = arith.constant 0.000000e+00 : f32
    %665 = vector.broadcast %cst_360 : f32 to vector<16x128xf32>
    %666 = arith.maximumf %664, %665 : vector<16x128xf32>
    %667 = arith.mulf %656, %666 : vector<16x128xf32>
    %668 = arith.addf %653, %667 : vector<16x128xf32>
    %c1_361 = arith.constant 1 : index
    %c8_362 = arith.constant 8 : index
    %c0_363 = arith.constant 0 : index
    %c0_364 = arith.constant 0 : index
    %669 = vector.load %arg3[%c1_361, %c8_362, %c0_363, %c0_364] : memref<4x17x16x128xbf16, #tpu.memory_space<vmem>>, vector<1x1x16x128xbf16>
    %670 = vector.shape_cast %669 : vector<1x1x16x128xbf16> to vector<16x128xbf16>
    %671 = arith.extf %670 : vector<16x128xbf16> to vector<16x128xf32>
    %672 = arith.subf %671, %546 : vector<16x128xf32>
    %673 = math.exp %672 : vector<16x128xf32>
    %674 = arith.addf %659, %673 : vector<16x128xf32>
    %cst_365 = arith.constant 8.000000e+00 : f32
    %675 = vector.broadcast %cst_365 : f32 to vector<16x128xf32>
    %676 = arith.subf %479, %675 : vector<16x128xf32>
    %677 = math.absf %676 : vector<16x128xf32>
    %cst_366 = arith.constant 1.000000e+00 : f32
    %678 = vector.broadcast %cst_366 : f32 to vector<16x128xf32>
    %679 = arith.subf %678, %677 : vector<16x128xf32>
    %cst_367 = arith.constant 0.000000e+00 : f32
    %680 = vector.broadcast %cst_367 : f32 to vector<16x128xf32>
    %681 = arith.maximumf %679, %680 : vector<16x128xf32>
    %682 = arith.mulf %671, %681 : vector<16x128xf32>
    %683 = arith.addf %668, %682 : vector<16x128xf32>
    %c1_368 = arith.constant 1 : index
    %c9_369 = arith.constant 9 : index
    %c0_370 = arith.constant 0 : index
    %c0_371 = arith.constant 0 : index
    %684 = vector.load %arg3[%c1_368, %c9_369, %c0_370, %c0_371] : memref<4x17x16x128xbf16, #tpu.memory_space<vmem>>, vector<1x1x16x128xbf16>
    %685 = vector.shape_cast %684 : vector<1x1x16x128xbf16> to vector<16x128xbf16>
    %686 = arith.extf %685 : vector<16x128xbf16> to vector<16x128xf32>
    %687 = arith.subf %686, %546 : vector<16x128xf32>
    %688 = math.exp %687 : vector<16x128xf32>
    %689 = arith.addf %674, %688 : vector<16x128xf32>
    %cst_372 = arith.constant 9.000000e+00 : f32
    %690 = vector.broadcast %cst_372 : f32 to vector<16x128xf32>
    %691 = arith.subf %479, %690 : vector<16x128xf32>
    %692 = math.absf %691 : vector<16x128xf32>
    %cst_373 = arith.constant 1.000000e+00 : f32
    %693 = vector.broadcast %cst_373 : f32 to vector<16x128xf32>
    %694 = arith.subf %693, %692 : vector<16x128xf32>
    %cst_374 = arith.constant 0.000000e+00 : f32
    %695 = vector.broadcast %cst_374 : f32 to vector<16x128xf32>
    %696 = arith.maximumf %694, %695 : vector<16x128xf32>
    %697 = arith.mulf %686, %696 : vector<16x128xf32>
    %698 = arith.addf %683, %697 : vector<16x128xf32>
    %c1_375 = arith.constant 1 : index
    %c10_376 = arith.constant 10 : index
    %c0_377 = arith.constant 0 : index
    %c0_378 = arith.constant 0 : index
    %699 = vector.load %arg3[%c1_375, %c10_376, %c0_377, %c0_378] : memref<4x17x16x128xbf16, #tpu.memory_space<vmem>>, vector<1x1x16x128xbf16>
    %700 = vector.shape_cast %699 : vector<1x1x16x128xbf16> to vector<16x128xbf16>
    %701 = arith.extf %700 : vector<16x128xbf16> to vector<16x128xf32>
    %702 = arith.subf %701, %546 : vector<16x128xf32>
    %703 = math.exp %702 : vector<16x128xf32>
    %704 = arith.addf %689, %703 : vector<16x128xf32>
    %cst_379 = arith.constant 1.000000e+01 : f32
    %705 = vector.broadcast %cst_379 : f32 to vector<16x128xf32>
    %706 = arith.subf %479, %705 : vector<16x128xf32>
    %707 = math.absf %706 : vector<16x128xf32>
    %cst_380 = arith.constant 1.000000e+00 : f32
    %708 = vector.broadcast %cst_380 : f32 to vector<16x128xf32>
    %709 = arith.subf %708, %707 : vector<16x128xf32>
    %cst_381 = arith.constant 0.000000e+00 : f32
    %710 = vector.broadcast %cst_381 : f32 to vector<16x128xf32>
    %711 = arith.maximumf %709, %710 : vector<16x128xf32>
    %712 = arith.mulf %701, %711 : vector<16x128xf32>
    %713 = arith.addf %698, %712 : vector<16x128xf32>
    %c1_382 = arith.constant 1 : index
    %c11_383 = arith.constant 11 : index
    %c0_384 = arith.constant 0 : index
    %c0_385 = arith.constant 0 : index
    %714 = vector.load %arg3[%c1_382, %c11_383, %c0_384, %c0_385] : memref<4x17x16x128xbf16, #tpu.memory_space<vmem>>, vector<1x1x16x128xbf16>
    %715 = vector.shape_cast %714 : vector<1x1x16x128xbf16> to vector<16x128xbf16>
    %716 = arith.extf %715 : vector<16x128xbf16> to vector<16x128xf32>
    %717 = arith.subf %716, %546 : vector<16x128xf32>
    %718 = math.exp %717 : vector<16x128xf32>
    %719 = arith.addf %704, %718 : vector<16x128xf32>
    %cst_386 = arith.constant 1.100000e+01 : f32
    %720 = vector.broadcast %cst_386 : f32 to vector<16x128xf32>
    %721 = arith.subf %479, %720 : vector<16x128xf32>
    %722 = math.absf %721 : vector<16x128xf32>
    %cst_387 = arith.constant 1.000000e+00 : f32
    %723 = vector.broadcast %cst_387 : f32 to vector<16x128xf32>
    %724 = arith.subf %723, %722 : vector<16x128xf32>
    %cst_388 = arith.constant 0.000000e+00 : f32
    %725 = vector.broadcast %cst_388 : f32 to vector<16x128xf32>
    %726 = arith.maximumf %724, %725 : vector<16x128xf32>
    %727 = arith.mulf %716, %726 : vector<16x128xf32>
    %728 = arith.addf %713, %727 : vector<16x128xf32>
    %c1_389 = arith.constant 1 : index
    %c12_390 = arith.constant 12 : index
    %c0_391 = arith.constant 0 : index
    %c0_392 = arith.constant 0 : index
    %729 = vector.load %arg3[%c1_389, %c12_390, %c0_391, %c0_392] : memref<4x17x16x128xbf16, #tpu.memory_space<vmem>>, vector<1x1x16x128xbf16>
    %730 = vector.shape_cast %729 : vector<1x1x16x128xbf16> to vector<16x128xbf16>
    %731 = arith.extf %730 : vector<16x128xbf16> to vector<16x128xf32>
    %732 = arith.subf %731, %546 : vector<16x128xf32>
    %733 = math.exp %732 : vector<16x128xf32>
    %734 = arith.addf %719, %733 : vector<16x128xf32>
    %cst_393 = arith.constant 1.200000e+01 : f32
    %735 = vector.broadcast %cst_393 : f32 to vector<16x128xf32>
    %736 = arith.subf %479, %735 : vector<16x128xf32>
    %737 = math.absf %736 : vector<16x128xf32>
    %cst_394 = arith.constant 1.000000e+00 : f32
    %738 = vector.broadcast %cst_394 : f32 to vector<16x128xf32>
    %739 = arith.subf %738, %737 : vector<16x128xf32>
    %cst_395 = arith.constant 0.000000e+00 : f32
    %740 = vector.broadcast %cst_395 : f32 to vector<16x128xf32>
    %741 = arith.maximumf %739, %740 : vector<16x128xf32>
    %742 = arith.mulf %731, %741 : vector<16x128xf32>
    %743 = arith.addf %728, %742 : vector<16x128xf32>
    %c1_396 = arith.constant 1 : index
    %c13_397 = arith.constant 13 : index
    %c0_398 = arith.constant 0 : index
    %c0_399 = arith.constant 0 : index
    %744 = vector.load %arg3[%c1_396, %c13_397, %c0_398, %c0_399] : memref<4x17x16x128xbf16, #tpu.memory_space<vmem>>, vector<1x1x16x128xbf16>
    %745 = vector.shape_cast %744 : vector<1x1x16x128xbf16> to vector<16x128xbf16>
    %746 = arith.extf %745 : vector<16x128xbf16> to vector<16x128xf32>
    %747 = arith.subf %746, %546 : vector<16x128xf32>
    %748 = math.exp %747 : vector<16x128xf32>
    %749 = arith.addf %734, %748 : vector<16x128xf32>
    %cst_400 = arith.constant 1.300000e+01 : f32
    %750 = vector.broadcast %cst_400 : f32 to vector<16x128xf32>
    %751 = arith.subf %479, %750 : vector<16x128xf32>
    %752 = math.absf %751 : vector<16x128xf32>
    %cst_401 = arith.constant 1.000000e+00 : f32
    %753 = vector.broadcast %cst_401 : f32 to vector<16x128xf32>
    %754 = arith.subf %753, %752 : vector<16x128xf32>
    %cst_402 = arith.constant 0.000000e+00 : f32
    %755 = vector.broadcast %cst_402 : f32 to vector<16x128xf32>
    %756 = arith.maximumf %754, %755 : vector<16x128xf32>
    %757 = arith.mulf %746, %756 : vector<16x128xf32>
    %758 = arith.addf %743, %757 : vector<16x128xf32>
    %c1_403 = arith.constant 1 : index
    %c14_404 = arith.constant 14 : index
    %c0_405 = arith.constant 0 : index
    %c0_406 = arith.constant 0 : index
    %759 = vector.load %arg3[%c1_403, %c14_404, %c0_405, %c0_406] : memref<4x17x16x128xbf16, #tpu.memory_space<vmem>>, vector<1x1x16x128xbf16>
    %760 = vector.shape_cast %759 : vector<1x1x16x128xbf16> to vector<16x128xbf16>
    %761 = arith.extf %760 : vector<16x128xbf16> to vector<16x128xf32>
    %762 = arith.subf %761, %546 : vector<16x128xf32>
    %763 = math.exp %762 : vector<16x128xf32>
    %764 = arith.addf %749, %763 : vector<16x128xf32>
    %cst_407 = arith.constant 1.400000e+01 : f32
    %765 = vector.broadcast %cst_407 : f32 to vector<16x128xf32>
    %766 = arith.subf %479, %765 : vector<16x128xf32>
    %767 = math.absf %766 : vector<16x128xf32>
    %cst_408 = arith.constant 1.000000e+00 : f32
    %768 = vector.broadcast %cst_408 : f32 to vector<16x128xf32>
    %769 = arith.subf %768, %767 : vector<16x128xf32>
    %cst_409 = arith.constant 0.000000e+00 : f32
    %770 = vector.broadcast %cst_409 : f32 to vector<16x128xf32>
    %771 = arith.maximumf %769, %770 : vector<16x128xf32>
    %772 = arith.mulf %761, %771 : vector<16x128xf32>
    %773 = arith.addf %758, %772 : vector<16x128xf32>
    %c1_410 = arith.constant 1 : index
    %c15_411 = arith.constant 15 : index
    %c0_412 = arith.constant 0 : index
    %c0_413 = arith.constant 0 : index
    %774 = vector.load %arg3[%c1_410, %c15_411, %c0_412, %c0_413] : memref<4x17x16x128xbf16, #tpu.memory_space<vmem>>, vector<1x1x16x128xbf16>
    %775 = vector.shape_cast %774 : vector<1x1x16x128xbf16> to vector<16x128xbf16>
    %776 = arith.extf %775 : vector<16x128xbf16> to vector<16x128xf32>
    %777 = arith.subf %776, %546 : vector<16x128xf32>
    %778 = math.exp %777 : vector<16x128xf32>
    %779 = arith.addf %764, %778 : vector<16x128xf32>
    %cst_414 = arith.constant 1.500000e+01 : f32
    %780 = vector.broadcast %cst_414 : f32 to vector<16x128xf32>
    %781 = arith.subf %479, %780 : vector<16x128xf32>
    %782 = math.absf %781 : vector<16x128xf32>
    %cst_415 = arith.constant 1.000000e+00 : f32
    %783 = vector.broadcast %cst_415 : f32 to vector<16x128xf32>
    %784 = arith.subf %783, %782 : vector<16x128xf32>
    %cst_416 = arith.constant 0.000000e+00 : f32
    %785 = vector.broadcast %cst_416 : f32 to vector<16x128xf32>
    %786 = arith.maximumf %784, %785 : vector<16x128xf32>
    %787 = arith.mulf %776, %786 : vector<16x128xf32>
    %788 = arith.addf %773, %787 : vector<16x128xf32>
    %c1_417 = arith.constant 1 : index
    %c16_418 = arith.constant 16 : index
    %c0_419 = arith.constant 0 : index
    %c0_420 = arith.constant 0 : index
    %789 = vector.load %arg3[%c1_417, %c16_418, %c0_419, %c0_420] : memref<4x17x16x128xbf16, #tpu.memory_space<vmem>>, vector<1x1x16x128xbf16>
    %790 = vector.shape_cast %789 : vector<1x1x16x128xbf16> to vector<16x128xbf16>
    %791 = arith.extf %790 : vector<16x128xbf16> to vector<16x128xf32>
    %792 = arith.subf %791, %546 : vector<16x128xf32>
    %793 = math.exp %792 : vector<16x128xf32>
    %794 = arith.addf %779, %793 : vector<16x128xf32>
    %cst_421 = arith.constant 1.600000e+01 : f32
    %795 = vector.broadcast %cst_421 : f32 to vector<16x128xf32>
    %796 = arith.subf %479, %795 : vector<16x128xf32>
    %797 = math.absf %796 : vector<16x128xf32>
    %cst_422 = arith.constant 1.000000e+00 : f32
    %798 = vector.broadcast %cst_422 : f32 to vector<16x128xf32>
    %799 = arith.subf %798, %797 : vector<16x128xf32>
    %cst_423 = arith.constant 0.000000e+00 : f32
    %800 = vector.broadcast %cst_423 : f32 to vector<16x128xf32>
    %801 = arith.maximumf %799, %800 : vector<16x128xf32>
    %802 = arith.mulf %791, %801 : vector<16x128xf32>
    %803 = arith.addf %788, %802 : vector<16x128xf32>
    %804 = math.log %794 : vector<16x128xf32>
    %805 = arith.addf %546, %804 : vector<16x128xf32>
    %806 = arith.subf %805, %803 : vector<16x128xf32>
    %807 = arith.addf %475, %806 : vector<16x128xf32>
    %cst_424 = arith.constant 0.000000e+00 : f32
    %cst_425 = arith.constant 1.599000e+01 : f32
    %808 = vector.broadcast %cst_424 : f32 to vector<16x128xf32>
    %809 = arith.maximumf %808, %142 : vector<16x128xf32>
    %810 = vector.broadcast %cst_425 : f32 to vector<16x128xf32>
    %811 = arith.minimumf %810, %809 : vector<16x128xf32>
    %c2_426 = arith.constant 2 : index
    %c0_427 = arith.constant 0 : index
    %c0_428 = arith.constant 0 : index
    %c0_429 = arith.constant 0 : index
    %812 = vector.load %arg3[%c2_426, %c0_427, %c0_428, %c0_429] : memref<4x17x16x128xbf16, #tpu.memory_space<vmem>>, vector<1x1x16x128xbf16>
    %813 = vector.shape_cast %812 : vector<1x1x16x128xbf16> to vector<16x128xbf16>
    %814 = arith.extf %813 : vector<16x128xbf16> to vector<16x128xf32>
    %c2_430 = arith.constant 2 : index
    %c1_431 = arith.constant 1 : index
    %c0_432 = arith.constant 0 : index
    %c0_433 = arith.constant 0 : index
    %815 = vector.load %arg3[%c2_430, %c1_431, %c0_432, %c0_433] : memref<4x17x16x128xbf16, #tpu.memory_space<vmem>>, vector<1x1x16x128xbf16>
    %816 = vector.shape_cast %815 : vector<1x1x16x128xbf16> to vector<16x128xbf16>
    %817 = arith.extf %816 : vector<16x128xbf16> to vector<16x128xf32>
    %818 = arith.maximumf %814, %817 : vector<16x128xf32>
    %c2_434 = arith.constant 2 : index
    %c2_435 = arith.constant 2 : index
    %c0_436 = arith.constant 0 : index
    %c0_437 = arith.constant 0 : index
    %819 = vector.load %arg3[%c2_434, %c2_435, %c0_436, %c0_437] : memref<4x17x16x128xbf16, #tpu.memory_space<vmem>>, vector<1x1x16x128xbf16>
    %820 = vector.shape_cast %819 : vector<1x1x16x128xbf16> to vector<16x128xbf16>
    %821 = arith.extf %820 : vector<16x128xbf16> to vector<16x128xf32>
    %822 = arith.maximumf %818, %821 : vector<16x128xf32>
    %c2_438 = arith.constant 2 : index
    %c3_439 = arith.constant 3 : index
    %c0_440 = arith.constant 0 : index
    %c0_441 = arith.constant 0 : index
    %823 = vector.load %arg3[%c2_438, %c3_439, %c0_440, %c0_441] : memref<4x17x16x128xbf16, #tpu.memory_space<vmem>>, vector<1x1x16x128xbf16>
    %824 = vector.shape_cast %823 : vector<1x1x16x128xbf16> to vector<16x128xbf16>
    %825 = arith.extf %824 : vector<16x128xbf16> to vector<16x128xf32>
    %826 = arith.maximumf %822, %825 : vector<16x128xf32>
    %c2_442 = arith.constant 2 : index
    %c4_443 = arith.constant 4 : index
    %c0_444 = arith.constant 0 : index
    %c0_445 = arith.constant 0 : index
    %827 = vector.load %arg3[%c2_442, %c4_443, %c0_444, %c0_445] : memref<4x17x16x128xbf16, #tpu.memory_space<vmem>>, vector<1x1x16x128xbf16>
    %828 = vector.shape_cast %827 : vector<1x1x16x128xbf16> to vector<16x128xbf16>
    %829 = arith.extf %828 : vector<16x128xbf16> to vector<16x128xf32>
    %830 = arith.maximumf %826, %829 : vector<16x128xf32>
    %c2_446 = arith.constant 2 : index
    %c5_447 = arith.constant 5 : index
    %c0_448 = arith.constant 0 : index
    %c0_449 = arith.constant 0 : index
    %831 = vector.load %arg3[%c2_446, %c5_447, %c0_448, %c0_449] : memref<4x17x16x128xbf16, #tpu.memory_space<vmem>>, vector<1x1x16x128xbf16>
    %832 = vector.shape_cast %831 : vector<1x1x16x128xbf16> to vector<16x128xbf16>
    %833 = arith.extf %832 : vector<16x128xbf16> to vector<16x128xf32>
    %834 = arith.maximumf %830, %833 : vector<16x128xf32>
    %c2_450 = arith.constant 2 : index
    %c6_451 = arith.constant 6 : index
    %c0_452 = arith.constant 0 : index
    %c0_453 = arith.constant 0 : index
    %835 = vector.load %arg3[%c2_450, %c6_451, %c0_452, %c0_453] : memref<4x17x16x128xbf16, #tpu.memory_space<vmem>>, vector<1x1x16x128xbf16>
    %836 = vector.shape_cast %835 : vector<1x1x16x128xbf16> to vector<16x128xbf16>
    %837 = arith.extf %836 : vector<16x128xbf16> to vector<16x128xf32>
    %838 = arith.maximumf %834, %837 : vector<16x128xf32>
    %c2_454 = arith.constant 2 : index
    %c7_455 = arith.constant 7 : index
    %c0_456 = arith.constant 0 : index
    %c0_457 = arith.constant 0 : index
    %839 = vector.load %arg3[%c2_454, %c7_455, %c0_456, %c0_457] : memref<4x17x16x128xbf16, #tpu.memory_space<vmem>>, vector<1x1x16x128xbf16>
    %840 = vector.shape_cast %839 : vector<1x1x16x128xbf16> to vector<16x128xbf16>
    %841 = arith.extf %840 : vector<16x128xbf16> to vector<16x128xf32>
    %842 = arith.maximumf %838, %841 : vector<16x128xf32>
    %c2_458 = arith.constant 2 : index
    %c8_459 = arith.constant 8 : index
    %c0_460 = arith.constant 0 : index
    %c0_461 = arith.constant 0 : index
    %843 = vector.load %arg3[%c2_458, %c8_459, %c0_460, %c0_461] : memref<4x17x16x128xbf16, #tpu.memory_space<vmem>>, vector<1x1x16x128xbf16>
    %844 = vector.shape_cast %843 : vector<1x1x16x128xbf16> to vector<16x128xbf16>
    %845 = arith.extf %844 : vector<16x128xbf16> to vector<16x128xf32>
    %846 = arith.maximumf %842, %845 : vector<16x128xf32>
    %c2_462 = arith.constant 2 : index
    %c9_463 = arith.constant 9 : index
    %c0_464 = arith.constant 0 : index
    %c0_465 = arith.constant 0 : index
    %847 = vector.load %arg3[%c2_462, %c9_463, %c0_464, %c0_465] : memref<4x17x16x128xbf16, #tpu.memory_space<vmem>>, vector<1x1x16x128xbf16>
    %848 = vector.shape_cast %847 : vector<1x1x16x128xbf16> to vector<16x128xbf16>
    %849 = arith.extf %848 : vector<16x128xbf16> to vector<16x128xf32>
    %850 = arith.maximumf %846, %849 : vector<16x128xf32>
    %c2_466 = arith.constant 2 : index
    %c10_467 = arith.constant 10 : index
    %c0_468 = arith.constant 0 : index
    %c0_469 = arith.constant 0 : index
    %851 = vector.load %arg3[%c2_466, %c10_467, %c0_468, %c0_469] : memref<4x17x16x128xbf16, #tpu.memory_space<vmem>>, vector<1x1x16x128xbf16>
    %852 = vector.shape_cast %851 : vector<1x1x16x128xbf16> to vector<16x128xbf16>
    %853 = arith.extf %852 : vector<16x128xbf16> to vector<16x128xf32>
    %854 = arith.maximumf %850, %853 : vector<16x128xf32>
    %c2_470 = arith.constant 2 : index
    %c11_471 = arith.constant 11 : index
    %c0_472 = arith.constant 0 : index
    %c0_473 = arith.constant 0 : index
    %855 = vector.load %arg3[%c2_470, %c11_471, %c0_472, %c0_473] : memref<4x17x16x128xbf16, #tpu.memory_space<vmem>>, vector<1x1x16x128xbf16>
    %856 = vector.shape_cast %855 : vector<1x1x16x128xbf16> to vector<16x128xbf16>
    %857 = arith.extf %856 : vector<16x128xbf16> to vector<16x128xf32>
    %858 = arith.maximumf %854, %857 : vector<16x128xf32>
    %c2_474 = arith.constant 2 : index
    %c12_475 = arith.constant 12 : index
    %c0_476 = arith.constant 0 : index
    %c0_477 = arith.constant 0 : index
    %859 = vector.load %arg3[%c2_474, %c12_475, %c0_476, %c0_477] : memref<4x17x16x128xbf16, #tpu.memory_space<vmem>>, vector<1x1x16x128xbf16>
    %860 = vector.shape_cast %859 : vector<1x1x16x128xbf16> to vector<16x128xbf16>
    %861 = arith.extf %860 : vector<16x128xbf16> to vector<16x128xf32>
    %862 = arith.maximumf %858, %861 : vector<16x128xf32>
    %c2_478 = arith.constant 2 : index
    %c13_479 = arith.constant 13 : index
    %c0_480 = arith.constant 0 : index
    %c0_481 = arith.constant 0 : index
    %863 = vector.load %arg3[%c2_478, %c13_479, %c0_480, %c0_481] : memref<4x17x16x128xbf16, #tpu.memory_space<vmem>>, vector<1x1x16x128xbf16>
    %864 = vector.shape_cast %863 : vector<1x1x16x128xbf16> to vector<16x128xbf16>
    %865 = arith.extf %864 : vector<16x128xbf16> to vector<16x128xf32>
    %866 = arith.maximumf %862, %865 : vector<16x128xf32>
    %c2_482 = arith.constant 2 : index
    %c14_483 = arith.constant 14 : index
    %c0_484 = arith.constant 0 : index
    %c0_485 = arith.constant 0 : index
    %867 = vector.load %arg3[%c2_482, %c14_483, %c0_484, %c0_485] : memref<4x17x16x128xbf16, #tpu.memory_space<vmem>>, vector<1x1x16x128xbf16>
    %868 = vector.shape_cast %867 : vector<1x1x16x128xbf16> to vector<16x128xbf16>
    %869 = arith.extf %868 : vector<16x128xbf16> to vector<16x128xf32>
    %870 = arith.maximumf %866, %869 : vector<16x128xf32>
    %c2_486 = arith.constant 2 : index
    %c15_487 = arith.constant 15 : index
    %c0_488 = arith.constant 0 : index
    %c0_489 = arith.constant 0 : index
    %871 = vector.load %arg3[%c2_486, %c15_487, %c0_488, %c0_489] : memref<4x17x16x128xbf16, #tpu.memory_space<vmem>>, vector<1x1x16x128xbf16>
    %872 = vector.shape_cast %871 : vector<1x1x16x128xbf16> to vector<16x128xbf16>
    %873 = arith.extf %872 : vector<16x128xbf16> to vector<16x128xf32>
    %874 = arith.maximumf %870, %873 : vector<16x128xf32>
    %c2_490 = arith.constant 2 : index
    %c16_491 = arith.constant 16 : index
    %c0_492 = arith.constant 0 : index
    %c0_493 = arith.constant 0 : index
    %875 = vector.load %arg3[%c2_490, %c16_491, %c0_492, %c0_493] : memref<4x17x16x128xbf16, #tpu.memory_space<vmem>>, vector<1x1x16x128xbf16>
    %876 = vector.shape_cast %875 : vector<1x1x16x128xbf16> to vector<16x128xbf16>
    %877 = arith.extf %876 : vector<16x128xbf16> to vector<16x128xf32>
    %878 = arith.maximumf %874, %877 : vector<16x128xf32>
    %cst_494 = arith.constant 0.000000e+00 : f32
    %879 = vector.broadcast %cst_494 : f32 to vector<16x128xf32>
    %cst_495 = arith.constant 0.000000e+00 : f32
    %880 = vector.broadcast %cst_495 : f32 to vector<16x128xf32>
    %c2_496 = arith.constant 2 : index
    %c0_497 = arith.constant 0 : index
    %c0_498 = arith.constant 0 : index
    %c0_499 = arith.constant 0 : index
    %881 = vector.load %arg3[%c2_496, %c0_497, %c0_498, %c0_499] : memref<4x17x16x128xbf16, #tpu.memory_space<vmem>>, vector<1x1x16x128xbf16>
    %882 = vector.shape_cast %881 : vector<1x1x16x128xbf16> to vector<16x128xbf16>
    %883 = arith.extf %882 : vector<16x128xbf16> to vector<16x128xf32>
    %884 = arith.subf %883, %878 : vector<16x128xf32>
    %885 = math.exp %884 : vector<16x128xf32>
    %886 = arith.addf %879, %885 : vector<16x128xf32>
    %cst_500 = arith.constant 0.000000e+00 : f32
    %887 = vector.broadcast %cst_500 : f32 to vector<16x128xf32>
    %888 = arith.subf %811, %887 : vector<16x128xf32>
    %889 = math.absf %888 : vector<16x128xf32>
    %cst_501 = arith.constant 1.000000e+00 : f32
    %890 = vector.broadcast %cst_501 : f32 to vector<16x128xf32>
    %891 = arith.subf %890, %889 : vector<16x128xf32>
    %cst_502 = arith.constant 0.000000e+00 : f32
    %892 = vector.broadcast %cst_502 : f32 to vector<16x128xf32>
    %893 = arith.maximumf %891, %892 : vector<16x128xf32>
    %894 = arith.mulf %883, %893 : vector<16x128xf32>
    %895 = arith.addf %880, %894 : vector<16x128xf32>
    %c2_503 = arith.constant 2 : index
    %c1_504 = arith.constant 1 : index
    %c0_505 = arith.constant 0 : index
    %c0_506 = arith.constant 0 : index
    %896 = vector.load %arg3[%c2_503, %c1_504, %c0_505, %c0_506] : memref<4x17x16x128xbf16, #tpu.memory_space<vmem>>, vector<1x1x16x128xbf16>
    %897 = vector.shape_cast %896 : vector<1x1x16x128xbf16> to vector<16x128xbf16>
    %898 = arith.extf %897 : vector<16x128xbf16> to vector<16x128xf32>
    %899 = arith.subf %898, %878 : vector<16x128xf32>
    %900 = math.exp %899 : vector<16x128xf32>
    %901 = arith.addf %886, %900 : vector<16x128xf32>
    %cst_507 = arith.constant 1.000000e+00 : f32
    %902 = vector.broadcast %cst_507 : f32 to vector<16x128xf32>
    %903 = arith.subf %811, %902 : vector<16x128xf32>
    %904 = math.absf %903 : vector<16x128xf32>
    %cst_508 = arith.constant 1.000000e+00 : f32
    %905 = vector.broadcast %cst_508 : f32 to vector<16x128xf32>
    %906 = arith.subf %905, %904 : vector<16x128xf32>
    %cst_509 = arith.constant 0.000000e+00 : f32
    %907 = vector.broadcast %cst_509 : f32 to vector<16x128xf32>
    %908 = arith.maximumf %906, %907 : vector<16x128xf32>
    %909 = arith.mulf %898, %908 : vector<16x128xf32>
    %910 = arith.addf %895, %909 : vector<16x128xf32>
    %c2_510 = arith.constant 2 : index
    %c2_511 = arith.constant 2 : index
    %c0_512 = arith.constant 0 : index
    %c0_513 = arith.constant 0 : index
    %911 = vector.load %arg3[%c2_510, %c2_511, %c0_512, %c0_513] : memref<4x17x16x128xbf16, #tpu.memory_space<vmem>>, vector<1x1x16x128xbf16>
    %912 = vector.shape_cast %911 : vector<1x1x16x128xbf16> to vector<16x128xbf16>
    %913 = arith.extf %912 : vector<16x128xbf16> to vector<16x128xf32>
    %914 = arith.subf %913, %878 : vector<16x128xf32>
    %915 = math.exp %914 : vector<16x128xf32>
    %916 = arith.addf %901, %915 : vector<16x128xf32>
    %cst_514 = arith.constant 2.000000e+00 : f32
    %917 = vector.broadcast %cst_514 : f32 to vector<16x128xf32>
    %918 = arith.subf %811, %917 : vector<16x128xf32>
    %919 = math.absf %918 : vector<16x128xf32>
    %cst_515 = arith.constant 1.000000e+00 : f32
    %920 = vector.broadcast %cst_515 : f32 to vector<16x128xf32>
    %921 = arith.subf %920, %919 : vector<16x128xf32>
    %cst_516 = arith.constant 0.000000e+00 : f32
    %922 = vector.broadcast %cst_516 : f32 to vector<16x128xf32>
    %923 = arith.maximumf %921, %922 : vector<16x128xf32>
    %924 = arith.mulf %913, %923 : vector<16x128xf32>
    %925 = arith.addf %910, %924 : vector<16x128xf32>
    %c2_517 = arith.constant 2 : index
    %c3_518 = arith.constant 3 : index
    %c0_519 = arith.constant 0 : index
    %c0_520 = arith.constant 0 : index
    %926 = vector.load %arg3[%c2_517, %c3_518, %c0_519, %c0_520] : memref<4x17x16x128xbf16, #tpu.memory_space<vmem>>, vector<1x1x16x128xbf16>
    %927 = vector.shape_cast %926 : vector<1x1x16x128xbf16> to vector<16x128xbf16>
    %928 = arith.extf %927 : vector<16x128xbf16> to vector<16x128xf32>
    %929 = arith.subf %928, %878 : vector<16x128xf32>
    %930 = math.exp %929 : vector<16x128xf32>
    %931 = arith.addf %916, %930 : vector<16x128xf32>
    %cst_521 = arith.constant 3.000000e+00 : f32
    %932 = vector.broadcast %cst_521 : f32 to vector<16x128xf32>
    %933 = arith.subf %811, %932 : vector<16x128xf32>
    %934 = math.absf %933 : vector<16x128xf32>
    %cst_522 = arith.constant 1.000000e+00 : f32
    %935 = vector.broadcast %cst_522 : f32 to vector<16x128xf32>
    %936 = arith.subf %935, %934 : vector<16x128xf32>
    %cst_523 = arith.constant 0.000000e+00 : f32
    %937 = vector.broadcast %cst_523 : f32 to vector<16x128xf32>
    %938 = arith.maximumf %936, %937 : vector<16x128xf32>
    %939 = arith.mulf %928, %938 : vector<16x128xf32>
    %940 = arith.addf %925, %939 : vector<16x128xf32>
    %c2_524 = arith.constant 2 : index
    %c4_525 = arith.constant 4 : index
    %c0_526 = arith.constant 0 : index
    %c0_527 = arith.constant 0 : index
    %941 = vector.load %arg3[%c2_524, %c4_525, %c0_526, %c0_527] : memref<4x17x16x128xbf16, #tpu.memory_space<vmem>>, vector<1x1x16x128xbf16>
    %942 = vector.shape_cast %941 : vector<1x1x16x128xbf16> to vector<16x128xbf16>
    %943 = arith.extf %942 : vector<16x128xbf16> to vector<16x128xf32>
    %944 = arith.subf %943, %878 : vector<16x128xf32>
    %945 = math.exp %944 : vector<16x128xf32>
    %946 = arith.addf %931, %945 : vector<16x128xf32>
    %cst_528 = arith.constant 4.000000e+00 : f32
    %947 = vector.broadcast %cst_528 : f32 to vector<16x128xf32>
    %948 = arith.subf %811, %947 : vector<16x128xf32>
    %949 = math.absf %948 : vector<16x128xf32>
    %cst_529 = arith.constant 1.000000e+00 : f32
    %950 = vector.broadcast %cst_529 : f32 to vector<16x128xf32>
    %951 = arith.subf %950, %949 : vector<16x128xf32>
    %cst_530 = arith.constant 0.000000e+00 : f32
    %952 = vector.broadcast %cst_530 : f32 to vector<16x128xf32>
    %953 = arith.maximumf %951, %952 : vector<16x128xf32>
    %954 = arith.mulf %943, %953 : vector<16x128xf32>
    %955 = arith.addf %940, %954 : vector<16x128xf32>
    %c2_531 = arith.constant 2 : index
    %c5_532 = arith.constant 5 : index
    %c0_533 = arith.constant 0 : index
    %c0_534 = arith.constant 0 : index
    %956 = vector.load %arg3[%c2_531, %c5_532, %c0_533, %c0_534] : memref<4x17x16x128xbf16, #tpu.memory_space<vmem>>, vector<1x1x16x128xbf16>
    %957 = vector.shape_cast %956 : vector<1x1x16x128xbf16> to vector<16x128xbf16>
    %958 = arith.extf %957 : vector<16x128xbf16> to vector<16x128xf32>
    %959 = arith.subf %958, %878 : vector<16x128xf32>
    %960 = math.exp %959 : vector<16x128xf32>
    %961 = arith.addf %946, %960 : vector<16x128xf32>
    %cst_535 = arith.constant 5.000000e+00 : f32
    %962 = vector.broadcast %cst_535 : f32 to vector<16x128xf32>
    %963 = arith.subf %811, %962 : vector<16x128xf32>
    %964 = math.absf %963 : vector<16x128xf32>
    %cst_536 = arith.constant 1.000000e+00 : f32
    %965 = vector.broadcast %cst_536 : f32 to vector<16x128xf32>
    %966 = arith.subf %965, %964 : vector<16x128xf32>
    %cst_537 = arith.constant 0.000000e+00 : f32
    %967 = vector.broadcast %cst_537 : f32 to vector<16x128xf32>
    %968 = arith.maximumf %966, %967 : vector<16x128xf32>
    %969 = arith.mulf %958, %968 : vector<16x128xf32>
    %970 = arith.addf %955, %969 : vector<16x128xf32>
    %c2_538 = arith.constant 2 : index
    %c6_539 = arith.constant 6 : index
    %c0_540 = arith.constant 0 : index
    %c0_541 = arith.constant 0 : index
    %971 = vector.load %arg3[%c2_538, %c6_539, %c0_540, %c0_541] : memref<4x17x16x128xbf16, #tpu.memory_space<vmem>>, vector<1x1x16x128xbf16>
    %972 = vector.shape_cast %971 : vector<1x1x16x128xbf16> to vector<16x128xbf16>
    %973 = arith.extf %972 : vector<16x128xbf16> to vector<16x128xf32>
    %974 = arith.subf %973, %878 : vector<16x128xf32>
    %975 = math.exp %974 : vector<16x128xf32>
    %976 = arith.addf %961, %975 : vector<16x128xf32>
    %cst_542 = arith.constant 6.000000e+00 : f32
    %977 = vector.broadcast %cst_542 : f32 to vector<16x128xf32>
    %978 = arith.subf %811, %977 : vector<16x128xf32>
    %979 = math.absf %978 : vector<16x128xf32>
    %cst_543 = arith.constant 1.000000e+00 : f32
    %980 = vector.broadcast %cst_543 : f32 to vector<16x128xf32>
    %981 = arith.subf %980, %979 : vector<16x128xf32>
    %cst_544 = arith.constant 0.000000e+00 : f32
    %982 = vector.broadcast %cst_544 : f32 to vector<16x128xf32>
    %983 = arith.maximumf %981, %982 : vector<16x128xf32>
    %984 = arith.mulf %973, %983 : vector<16x128xf32>
    %985 = arith.addf %970, %984 : vector<16x128xf32>
    %c2_545 = arith.constant 2 : index
    %c7_546 = arith.constant 7 : index
    %c0_547 = arith.constant 0 : index
    %c0_548 = arith.constant 0 : index
    %986 = vector.load %arg3[%c2_545, %c7_546, %c0_547, %c0_548] : memref<4x17x16x128xbf16, #tpu.memory_space<vmem>>, vector<1x1x16x128xbf16>
    %987 = vector.shape_cast %986 : vector<1x1x16x128xbf16> to vector<16x128xbf16>
    %988 = arith.extf %987 : vector<16x128xbf16> to vector<16x128xf32>
    %989 = arith.subf %988, %878 : vector<16x128xf32>
    %990 = math.exp %989 : vector<16x128xf32>
    %991 = arith.addf %976, %990 : vector<16x128xf32>
    %cst_549 = arith.constant 7.000000e+00 : f32
    %992 = vector.broadcast %cst_549 : f32 to vector<16x128xf32>
    %993 = arith.subf %811, %992 : vector<16x128xf32>
    %994 = math.absf %993 : vector<16x128xf32>
    %cst_550 = arith.constant 1.000000e+00 : f32
    %995 = vector.broadcast %cst_550 : f32 to vector<16x128xf32>
    %996 = arith.subf %995, %994 : vector<16x128xf32>
    %cst_551 = arith.constant 0.000000e+00 : f32
    %997 = vector.broadcast %cst_551 : f32 to vector<16x128xf32>
    %998 = arith.maximumf %996, %997 : vector<16x128xf32>
    %999 = arith.mulf %988, %998 : vector<16x128xf32>
    %1000 = arith.addf %985, %999 : vector<16x128xf32>
    %c2_552 = arith.constant 2 : index
    %c8_553 = arith.constant 8 : index
    %c0_554 = arith.constant 0 : index
    %c0_555 = arith.constant 0 : index
    %1001 = vector.load %arg3[%c2_552, %c8_553, %c0_554, %c0_555] : memref<4x17x16x128xbf16, #tpu.memory_space<vmem>>, vector<1x1x16x128xbf16>
    %1002 = vector.shape_cast %1001 : vector<1x1x16x128xbf16> to vector<16x128xbf16>
    %1003 = arith.extf %1002 : vector<16x128xbf16> to vector<16x128xf32>
    %1004 = arith.subf %1003, %878 : vector<16x128xf32>
    %1005 = math.exp %1004 : vector<16x128xf32>
    %1006 = arith.addf %991, %1005 : vector<16x128xf32>
    %cst_556 = arith.constant 8.000000e+00 : f32
    %1007 = vector.broadcast %cst_556 : f32 to vector<16x128xf32>
    %1008 = arith.subf %811, %1007 : vector<16x128xf32>
    %1009 = math.absf %1008 : vector<16x128xf32>
    %cst_557 = arith.constant 1.000000e+00 : f32
    %1010 = vector.broadcast %cst_557 : f32 to vector<16x128xf32>
    %1011 = arith.subf %1010, %1009 : vector<16x128xf32>
    %cst_558 = arith.constant 0.000000e+00 : f32
    %1012 = vector.broadcast %cst_558 : f32 to vector<16x128xf32>
    %1013 = arith.maximumf %1011, %1012 : vector<16x128xf32>
    %1014 = arith.mulf %1003, %1013 : vector<16x128xf32>
    %1015 = arith.addf %1000, %1014 : vector<16x128xf32>
    %c2_559 = arith.constant 2 : index
    %c9_560 = arith.constant 9 : index
    %c0_561 = arith.constant 0 : index
    %c0_562 = arith.constant 0 : index
    %1016 = vector.load %arg3[%c2_559, %c9_560, %c0_561, %c0_562] : memref<4x17x16x128xbf16, #tpu.memory_space<vmem>>, vector<1x1x16x128xbf16>
    %1017 = vector.shape_cast %1016 : vector<1x1x16x128xbf16> to vector<16x128xbf16>
    %1018 = arith.extf %1017 : vector<16x128xbf16> to vector<16x128xf32>
    %1019 = arith.subf %1018, %878 : vector<16x128xf32>
    %1020 = math.exp %1019 : vector<16x128xf32>
    %1021 = arith.addf %1006, %1020 : vector<16x128xf32>
    %cst_563 = arith.constant 9.000000e+00 : f32
    %1022 = vector.broadcast %cst_563 : f32 to vector<16x128xf32>
    %1023 = arith.subf %811, %1022 : vector<16x128xf32>
    %1024 = math.absf %1023 : vector<16x128xf32>
    %cst_564 = arith.constant 1.000000e+00 : f32
    %1025 = vector.broadcast %cst_564 : f32 to vector<16x128xf32>
    %1026 = arith.subf %1025, %1024 : vector<16x128xf32>
    %cst_565 = arith.constant 0.000000e+00 : f32
    %1027 = vector.broadcast %cst_565 : f32 to vector<16x128xf32>
    %1028 = arith.maximumf %1026, %1027 : vector<16x128xf32>
    %1029 = arith.mulf %1018, %1028 : vector<16x128xf32>
    %1030 = arith.addf %1015, %1029 : vector<16x128xf32>
    %c2_566 = arith.constant 2 : index
    %c10_567 = arith.constant 10 : index
    %c0_568 = arith.constant 0 : index
    %c0_569 = arith.constant 0 : index
    %1031 = vector.load %arg3[%c2_566, %c10_567, %c0_568, %c0_569] : memref<4x17x16x128xbf16, #tpu.memory_space<vmem>>, vector<1x1x16x128xbf16>
    %1032 = vector.shape_cast %1031 : vector<1x1x16x128xbf16> to vector<16x128xbf16>
    %1033 = arith.extf %1032 : vector<16x128xbf16> to vector<16x128xf32>
    %1034 = arith.subf %1033, %878 : vector<16x128xf32>
    %1035 = math.exp %1034 : vector<16x128xf32>
    %1036 = arith.addf %1021, %1035 : vector<16x128xf32>
    %cst_570 = arith.constant 1.000000e+01 : f32
    %1037 = vector.broadcast %cst_570 : f32 to vector<16x128xf32>
    %1038 = arith.subf %811, %1037 : vector<16x128xf32>
    %1039 = math.absf %1038 : vector<16x128xf32>
    %cst_571 = arith.constant 1.000000e+00 : f32
    %1040 = vector.broadcast %cst_571 : f32 to vector<16x128xf32>
    %1041 = arith.subf %1040, %1039 : vector<16x128xf32>
    %cst_572 = arith.constant 0.000000e+00 : f32
    %1042 = vector.broadcast %cst_572 : f32 to vector<16x128xf32>
    %1043 = arith.maximumf %1041, %1042 : vector<16x128xf32>
    %1044 = arith.mulf %1033, %1043 : vector<16x128xf32>
    %1045 = arith.addf %1030, %1044 : vector<16x128xf32>
    %c2_573 = arith.constant 2 : index
    %c11_574 = arith.constant 11 : index
    %c0_575 = arith.constant 0 : index
    %c0_576 = arith.constant 0 : index
    %1046 = vector.load %arg3[%c2_573, %c11_574, %c0_575, %c0_576] : memref<4x17x16x128xbf16, #tpu.memory_space<vmem>>, vector<1x1x16x128xbf16>
    %1047 = vector.shape_cast %1046 : vector<1x1x16x128xbf16> to vector<16x128xbf16>
    %1048 = arith.extf %1047 : vector<16x128xbf16> to vector<16x128xf32>
    %1049 = arith.subf %1048, %878 : vector<16x128xf32>
    %1050 = math.exp %1049 : vector<16x128xf32>
    %1051 = arith.addf %1036, %1050 : vector<16x128xf32>
    %cst_577 = arith.constant 1.100000e+01 : f32
    %1052 = vector.broadcast %cst_577 : f32 to vector<16x128xf32>
    %1053 = arith.subf %811, %1052 : vector<16x128xf32>
    %1054 = math.absf %1053 : vector<16x128xf32>
    %cst_578 = arith.constant 1.000000e+00 : f32
    %1055 = vector.broadcast %cst_578 : f32 to vector<16x128xf32>
    %1056 = arith.subf %1055, %1054 : vector<16x128xf32>
    %cst_579 = arith.constant 0.000000e+00 : f32
    %1057 = vector.broadcast %cst_579 : f32 to vector<16x128xf32>
    %1058 = arith.maximumf %1056, %1057 : vector<16x128xf32>
    %1059 = arith.mulf %1048, %1058 : vector<16x128xf32>
    %1060 = arith.addf %1045, %1059 : vector<16x128xf32>
    %c2_580 = arith.constant 2 : index
    %c12_581 = arith.constant 12 : index
    %c0_582 = arith.constant 0 : index
    %c0_583 = arith.constant 0 : index
    %1061 = vector.load %arg3[%c2_580, %c12_581, %c0_582, %c0_583] : memref<4x17x16x128xbf16, #tpu.memory_space<vmem>>, vector<1x1x16x128xbf16>
    %1062 = vector.shape_cast %1061 : vector<1x1x16x128xbf16> to vector<16x128xbf16>
    %1063 = arith.extf %1062 : vector<16x128xbf16> to vector<16x128xf32>
    %1064 = arith.subf %1063, %878 : vector<16x128xf32>
    %1065 = math.exp %1064 : vector<16x128xf32>
    %1066 = arith.addf %1051, %1065 : vector<16x128xf32>
    %cst_584 = arith.constant 1.200000e+01 : f32
    %1067 = vector.broadcast %cst_584 : f32 to vector<16x128xf32>
    %1068 = arith.subf %811, %1067 : vector<16x128xf32>
    %1069 = math.absf %1068 : vector<16x128xf32>
    %cst_585 = arith.constant 1.000000e+00 : f32
    %1070 = vector.broadcast %cst_585 : f32 to vector<16x128xf32>
    %1071 = arith.subf %1070, %1069 : vector<16x128xf32>
    %cst_586 = arith.constant 0.000000e+00 : f32
    %1072 = vector.broadcast %cst_586 : f32 to vector<16x128xf32>
    %1073 = arith.maximumf %1071, %1072 : vector<16x128xf32>
    %1074 = arith.mulf %1063, %1073 : vector<16x128xf32>
    %1075 = arith.addf %1060, %1074 : vector<16x128xf32>
    %c2_587 = arith.constant 2 : index
    %c13_588 = arith.constant 13 : index
    %c0_589 = arith.constant 0 : index
    %c0_590 = arith.constant 0 : index
    %1076 = vector.load %arg3[%c2_587, %c13_588, %c0_589, %c0_590] : memref<4x17x16x128xbf16, #tpu.memory_space<vmem>>, vector<1x1x16x128xbf16>
    %1077 = vector.shape_cast %1076 : vector<1x1x16x128xbf16> to vector<16x128xbf16>
    %1078 = arith.extf %1077 : vector<16x128xbf16> to vector<16x128xf32>
    %1079 = arith.subf %1078, %878 : vector<16x128xf32>
    %1080 = math.exp %1079 : vector<16x128xf32>
    %1081 = arith.addf %1066, %1080 : vector<16x128xf32>
    %cst_591 = arith.constant 1.300000e+01 : f32
    %1082 = vector.broadcast %cst_591 : f32 to vector<16x128xf32>
    %1083 = arith.subf %811, %1082 : vector<16x128xf32>
    %1084 = math.absf %1083 : vector<16x128xf32>
    %cst_592 = arith.constant 1.000000e+00 : f32
    %1085 = vector.broadcast %cst_592 : f32 to vector<16x128xf32>
    %1086 = arith.subf %1085, %1084 : vector<16x128xf32>
    %cst_593 = arith.constant 0.000000e+00 : f32
    %1087 = vector.broadcast %cst_593 : f32 to vector<16x128xf32>
    %1088 = arith.maximumf %1086, %1087 : vector<16x128xf32>
    %1089 = arith.mulf %1078, %1088 : vector<16x128xf32>
    %1090 = arith.addf %1075, %1089 : vector<16x128xf32>
    %c2_594 = arith.constant 2 : index
    %c14_595 = arith.constant 14 : index
    %c0_596 = arith.constant 0 : index
    %c0_597 = arith.constant 0 : index
    %1091 = vector.load %arg3[%c2_594, %c14_595, %c0_596, %c0_597] : memref<4x17x16x128xbf16, #tpu.memory_space<vmem>>, vector<1x1x16x128xbf16>
    %1092 = vector.shape_cast %1091 : vector<1x1x16x128xbf16> to vector<16x128xbf16>
    %1093 = arith.extf %1092 : vector<16x128xbf16> to vector<16x128xf32>
    %1094 = arith.subf %1093, %878 : vector<16x128xf32>
    %1095 = math.exp %1094 : vector<16x128xf32>
    %1096 = arith.addf %1081, %1095 : vector<16x128xf32>
    %cst_598 = arith.constant 1.400000e+01 : f32
    %1097 = vector.broadcast %cst_598 : f32 to vector<16x128xf32>
    %1098 = arith.subf %811, %1097 : vector<16x128xf32>
    %1099 = math.absf %1098 : vector<16x128xf32>
    %cst_599 = arith.constant 1.000000e+00 : f32
    %1100 = vector.broadcast %cst_599 : f32 to vector<16x128xf32>
    %1101 = arith.subf %1100, %1099 : vector<16x128xf32>
    %cst_600 = arith.constant 0.000000e+00 : f32
    %1102 = vector.broadcast %cst_600 : f32 to vector<16x128xf32>
    %1103 = arith.maximumf %1101, %1102 : vector<16x128xf32>
    %1104 = arith.mulf %1093, %1103 : vector<16x128xf32>
    %1105 = arith.addf %1090, %1104 : vector<16x128xf32>
    %c2_601 = arith.constant 2 : index
    %c15_602 = arith.constant 15 : index
    %c0_603 = arith.constant 0 : index
    %c0_604 = arith.constant 0 : index
    %1106 = vector.load %arg3[%c2_601, %c15_602, %c0_603, %c0_604] : memref<4x17x16x128xbf16, #tpu.memory_space<vmem>>, vector<1x1x16x128xbf16>
    %1107 = vector.shape_cast %1106 : vector<1x1x16x128xbf16> to vector<16x128xbf16>
    %1108 = arith.extf %1107 : vector<16x128xbf16> to vector<16x128xf32>
    %1109 = arith.subf %1108, %878 : vector<16x128xf32>
    %1110 = math.exp %1109 : vector<16x128xf32>
    %1111 = arith.addf %1096, %1110 : vector<16x128xf32>
    %cst_605 = arith.constant 1.500000e+01 : f32
    %1112 = vector.broadcast %cst_605 : f32 to vector<16x128xf32>
    %1113 = arith.subf %811, %1112 : vector<16x128xf32>
    %1114 = math.absf %1113 : vector<16x128xf32>
    %cst_606 = arith.constant 1.000000e+00 : f32
    %1115 = vector.broadcast %cst_606 : f32 to vector<16x128xf32>
    %1116 = arith.subf %1115, %1114 : vector<16x128xf32>
    %cst_607 = arith.constant 0.000000e+00 : f32
    %1117 = vector.broadcast %cst_607 : f32 to vector<16x128xf32>
    %1118 = arith.maximumf %1116, %1117 : vector<16x128xf32>
    %1119 = arith.mulf %1108, %1118 : vector<16x128xf32>
    %1120 = arith.addf %1105, %1119 : vector<16x128xf32>
    %c2_608 = arith.constant 2 : index
    %c16_609 = arith.constant 16 : index
    %c0_610 = arith.constant 0 : index
    %c0_611 = arith.constant 0 : index
    %1121 = vector.load %arg3[%c2_608, %c16_609, %c0_610, %c0_611] : memref<4x17x16x128xbf16, #tpu.memory_space<vmem>>, vector<1x1x16x128xbf16>
    %1122 = vector.shape_cast %1121 : vector<1x1x16x128xbf16> to vector<16x128xbf16>
    %1123 = arith.extf %1122 : vector<16x128xbf16> to vector<16x128xf32>
    %1124 = arith.subf %1123, %878 : vector<16x128xf32>
    %1125 = math.exp %1124 : vector<16x128xf32>
    %1126 = arith.addf %1111, %1125 : vector<16x128xf32>
    %cst_612 = arith.constant 1.600000e+01 : f32
    %1127 = vector.broadcast %cst_612 : f32 to vector<16x128xf32>
    %1128 = arith.subf %811, %1127 : vector<16x128xf32>
    %1129 = math.absf %1128 : vector<16x128xf32>
    %cst_613 = arith.constant 1.000000e+00 : f32
    %1130 = vector.broadcast %cst_613 : f32 to vector<16x128xf32>
    %1131 = arith.subf %1130, %1129 : vector<16x128xf32>
    %cst_614 = arith.constant 0.000000e+00 : f32
    %1132 = vector.broadcast %cst_614 : f32 to vector<16x128xf32>
    %1133 = arith.maximumf %1131, %1132 : vector<16x128xf32>
    %1134 = arith.mulf %1123, %1133 : vector<16x128xf32>
    %1135 = arith.addf %1120, %1134 : vector<16x128xf32>
    %1136 = math.log %1126 : vector<16x128xf32>
    %1137 = arith.addf %878, %1136 : vector<16x128xf32>
    %1138 = arith.subf %1137, %1135 : vector<16x128xf32>
    %1139 = arith.addf %807, %1138 : vector<16x128xf32>
    %cst_615 = arith.constant 0.000000e+00 : f32
    %cst_616 = arith.constant 1.599000e+01 : f32
    %1140 = vector.broadcast %cst_615 : f32 to vector<16x128xf32>
    %1141 = arith.maximumf %1140, %143 : vector<16x128xf32>
    %1142 = vector.broadcast %cst_616 : f32 to vector<16x128xf32>
    %1143 = arith.minimumf %1142, %1141 : vector<16x128xf32>
    %c3_617 = arith.constant 3 : index
    %c0_618 = arith.constant 0 : index
    %c0_619 = arith.constant 0 : index
    %c0_620 = arith.constant 0 : index
    %1144 = vector.load %arg3[%c3_617, %c0_618, %c0_619, %c0_620] : memref<4x17x16x128xbf16, #tpu.memory_space<vmem>>, vector<1x1x16x128xbf16>
    %1145 = vector.shape_cast %1144 : vector<1x1x16x128xbf16> to vector<16x128xbf16>
    %1146 = arith.extf %1145 : vector<16x128xbf16> to vector<16x128xf32>
    %c3_621 = arith.constant 3 : index
    %c1_622 = arith.constant 1 : index
    %c0_623 = arith.constant 0 : index
    %c0_624 = arith.constant 0 : index
    %1147 = vector.load %arg3[%c3_621, %c1_622, %c0_623, %c0_624] : memref<4x17x16x128xbf16, #tpu.memory_space<vmem>>, vector<1x1x16x128xbf16>
    %1148 = vector.shape_cast %1147 : vector<1x1x16x128xbf16> to vector<16x128xbf16>
    %1149 = arith.extf %1148 : vector<16x128xbf16> to vector<16x128xf32>
    %1150 = arith.maximumf %1146, %1149 : vector<16x128xf32>
    %c3_625 = arith.constant 3 : index
    %c2_626 = arith.constant 2 : index
    %c0_627 = arith.constant 0 : index
    %c0_628 = arith.constant 0 : index
    %1151 = vector.load %arg3[%c3_625, %c2_626, %c0_627, %c0_628] : memref<4x17x16x128xbf16, #tpu.memory_space<vmem>>, vector<1x1x16x128xbf16>
    %1152 = vector.shape_cast %1151 : vector<1x1x16x128xbf16> to vector<16x128xbf16>
    %1153 = arith.extf %1152 : vector<16x128xbf16> to vector<16x128xf32>
    %1154 = arith.maximumf %1150, %1153 : vector<16x128xf32>
    %c3_629 = arith.constant 3 : index
    %c3_630 = arith.constant 3 : index
    %c0_631 = arith.constant 0 : index
    %c0_632 = arith.constant 0 : index
    %1155 = vector.load %arg3[%c3_629, %c3_630, %c0_631, %c0_632] : memref<4x17x16x128xbf16, #tpu.memory_space<vmem>>, vector<1x1x16x128xbf16>
    %1156 = vector.shape_cast %1155 : vector<1x1x16x128xbf16> to vector<16x128xbf16>
    %1157 = arith.extf %1156 : vector<16x128xbf16> to vector<16x128xf32>
    %1158 = arith.maximumf %1154, %1157 : vector<16x128xf32>
    %c3_633 = arith.constant 3 : index
    %c4_634 = arith.constant 4 : index
    %c0_635 = arith.constant 0 : index
    %c0_636 = arith.constant 0 : index
    %1159 = vector.load %arg3[%c3_633, %c4_634, %c0_635, %c0_636] : memref<4x17x16x128xbf16, #tpu.memory_space<vmem>>, vector<1x1x16x128xbf16>
    %1160 = vector.shape_cast %1159 : vector<1x1x16x128xbf16> to vector<16x128xbf16>
    %1161 = arith.extf %1160 : vector<16x128xbf16> to vector<16x128xf32>
    %1162 = arith.maximumf %1158, %1161 : vector<16x128xf32>
    %c3_637 = arith.constant 3 : index
    %c5_638 = arith.constant 5 : index
    %c0_639 = arith.constant 0 : index
    %c0_640 = arith.constant 0 : index
    %1163 = vector.load %arg3[%c3_637, %c5_638, %c0_639, %c0_640] : memref<4x17x16x128xbf16, #tpu.memory_space<vmem>>, vector<1x1x16x128xbf16>
    %1164 = vector.shape_cast %1163 : vector<1x1x16x128xbf16> to vector<16x128xbf16>
    %1165 = arith.extf %1164 : vector<16x128xbf16> to vector<16x128xf32>
    %1166 = arith.maximumf %1162, %1165 : vector<16x128xf32>
    %c3_641 = arith.constant 3 : index
    %c6_642 = arith.constant 6 : index
    %c0_643 = arith.constant 0 : index
    %c0_644 = arith.constant 0 : index
    %1167 = vector.load %arg3[%c3_641, %c6_642, %c0_643, %c0_644] : memref<4x17x16x128xbf16, #tpu.memory_space<vmem>>, vector<1x1x16x128xbf16>
    %1168 = vector.shape_cast %1167 : vector<1x1x16x128xbf16> to vector<16x128xbf16>
    %1169 = arith.extf %1168 : vector<16x128xbf16> to vector<16x128xf32>
    %1170 = arith.maximumf %1166, %1169 : vector<16x128xf32>
    %c3_645 = arith.constant 3 : index
    %c7_646 = arith.constant 7 : index
    %c0_647 = arith.constant 0 : index
    %c0_648 = arith.constant 0 : index
    %1171 = vector.load %arg3[%c3_645, %c7_646, %c0_647, %c0_648] : memref<4x17x16x128xbf16, #tpu.memory_space<vmem>>, vector<1x1x16x128xbf16>
    %1172 = vector.shape_cast %1171 : vector<1x1x16x128xbf16> to vector<16x128xbf16>
    %1173 = arith.extf %1172 : vector<16x128xbf16> to vector<16x128xf32>
    %1174 = arith.maximumf %1170, %1173 : vector<16x128xf32>
    %c3_649 = arith.constant 3 : index
    %c8_650 = arith.constant 8 : index
    %c0_651 = arith.constant 0 : index
    %c0_652 = arith.constant 0 : index
    %1175 = vector.load %arg3[%c3_649, %c8_650, %c0_651, %c0_652] : memref<4x17x16x128xbf16, #tpu.memory_space<vmem>>, vector<1x1x16x128xbf16>
    %1176 = vector.shape_cast %1175 : vector<1x1x16x128xbf16> to vector<16x128xbf16>
    %1177 = arith.extf %1176 : vector<16x128xbf16> to vector<16x128xf32>
    %1178 = arith.maximumf %1174, %1177 : vector<16x128xf32>
    %c3_653 = arith.constant 3 : index
    %c9_654 = arith.constant 9 : index
    %c0_655 = arith.constant 0 : index
    %c0_656 = arith.constant 0 : index
    %1179 = vector.load %arg3[%c3_653, %c9_654, %c0_655, %c0_656] : memref<4x17x16x128xbf16, #tpu.memory_space<vmem>>, vector<1x1x16x128xbf16>
    %1180 = vector.shape_cast %1179 : vector<1x1x16x128xbf16> to vector<16x128xbf16>
    %1181 = arith.extf %1180 : vector<16x128xbf16> to vector<16x128xf32>
    %1182 = arith.maximumf %1178, %1181 : vector<16x128xf32>
    %c3_657 = arith.constant 3 : index
    %c10_658 = arith.constant 10 : index
    %c0_659 = arith.constant 0 : index
    %c0_660 = arith.constant 0 : index
    %1183 = vector.load %arg3[%c3_657, %c10_658, %c0_659, %c0_660] : memref<4x17x16x128xbf16, #tpu.memory_space<vmem>>, vector<1x1x16x128xbf16>
    %1184 = vector.shape_cast %1183 : vector<1x1x16x128xbf16> to vector<16x128xbf16>
    %1185 = arith.extf %1184 : vector<16x128xbf16> to vector<16x128xf32>
    %1186 = arith.maximumf %1182, %1185 : vector<16x128xf32>
    %c3_661 = arith.constant 3 : index
    %c11_662 = arith.constant 11 : index
    %c0_663 = arith.constant 0 : index
    %c0_664 = arith.constant 0 : index
    %1187 = vector.load %arg3[%c3_661, %c11_662, %c0_663, %c0_664] : memref<4x17x16x128xbf16, #tpu.memory_space<vmem>>, vector<1x1x16x128xbf16>
    %1188 = vector.shape_cast %1187 : vector<1x1x16x128xbf16> to vector<16x128xbf16>
    %1189 = arith.extf %1188 : vector<16x128xbf16> to vector<16x128xf32>
    %1190 = arith.maximumf %1186, %1189 : vector<16x128xf32>
    %c3_665 = arith.constant 3 : index
    %c12_666 = arith.constant 12 : index
    %c0_667 = arith.constant 0 : index
    %c0_668 = arith.constant 0 : index
    %1191 = vector.load %arg3[%c3_665, %c12_666, %c0_667, %c0_668] : memref<4x17x16x128xbf16, #tpu.memory_space<vmem>>, vector<1x1x16x128xbf16>
    %1192 = vector.shape_cast %1191 : vector<1x1x16x128xbf16> to vector<16x128xbf16>
    %1193 = arith.extf %1192 : vector<16x128xbf16> to vector<16x128xf32>
    %1194 = arith.maximumf %1190, %1193 : vector<16x128xf32>
    %c3_669 = arith.constant 3 : index
    %c13_670 = arith.constant 13 : index
    %c0_671 = arith.constant 0 : index
    %c0_672 = arith.constant 0 : index
    %1195 = vector.load %arg3[%c3_669, %c13_670, %c0_671, %c0_672] : memref<4x17x16x128xbf16, #tpu.memory_space<vmem>>, vector<1x1x16x128xbf16>
    %1196 = vector.shape_cast %1195 : vector<1x1x16x128xbf16> to vector<16x128xbf16>
    %1197 = arith.extf %1196 : vector<16x128xbf16> to vector<16x128xf32>
    %1198 = arith.maximumf %1194, %1197 : vector<16x128xf32>
    %c3_673 = arith.constant 3 : index
    %c14_674 = arith.constant 14 : index
    %c0_675 = arith.constant 0 : index
    %c0_676 = arith.constant 0 : index
    %1199 = vector.load %arg3[%c3_673, %c14_674, %c0_675, %c0_676] : memref<4x17x16x128xbf16, #tpu.memory_space<vmem>>, vector<1x1x16x128xbf16>
    %1200 = vector.shape_cast %1199 : vector<1x1x16x128xbf16> to vector<16x128xbf16>
    %1201 = arith.extf %1200 : vector<16x128xbf16> to vector<16x128xf32>
    %1202 = arith.maximumf %1198, %1201 : vector<16x128xf32>
    %c3_677 = arith.constant 3 : index
    %c15_678 = arith.constant 15 : index
    %c0_679 = arith.constant 0 : index
    %c0_680 = arith.constant 0 : index
    %1203 = vector.load %arg3[%c3_677, %c15_678, %c0_679, %c0_680] : memref<4x17x16x128xbf16, #tpu.memory_space<vmem>>, vector<1x1x16x128xbf16>
    %1204 = vector.shape_cast %1203 : vector<1x1x16x128xbf16> to vector<16x128xbf16>
    %1205 = arith.extf %1204 : vector<16x128xbf16> to vector<16x128xf32>
    %1206 = arith.maximumf %1202, %1205 : vector<16x128xf32>
    %c3_681 = arith.constant 3 : index
    %c16_682 = arith.constant 16 : index
    %c0_683 = arith.constant 0 : index
    %c0_684 = arith.constant 0 : index
    %1207 = vector.load %arg3[%c3_681, %c16_682, %c0_683, %c0_684] : memref<4x17x16x128xbf16, #tpu.memory_space<vmem>>, vector<1x1x16x128xbf16>
    %1208 = vector.shape_cast %1207 : vector<1x1x16x128xbf16> to vector<16x128xbf16>
    %1209 = arith.extf %1208 : vector<16x128xbf16> to vector<16x128xf32>
    %1210 = arith.maximumf %1206, %1209 : vector<16x128xf32>
    %cst_685 = arith.constant 0.000000e+00 : f32
    %1211 = vector.broadcast %cst_685 : f32 to vector<16x128xf32>
    %cst_686 = arith.constant 0.000000e+00 : f32
    %1212 = vector.broadcast %cst_686 : f32 to vector<16x128xf32>
    %c3_687 = arith.constant 3 : index
    %c0_688 = arith.constant 0 : index
    %c0_689 = arith.constant 0 : index
    %c0_690 = arith.constant 0 : index
    %1213 = vector.load %arg3[%c3_687, %c0_688, %c0_689, %c0_690] : memref<4x17x16x128xbf16, #tpu.memory_space<vmem>>, vector<1x1x16x128xbf16>
    %1214 = vector.shape_cast %1213 : vector<1x1x16x128xbf16> to vector<16x128xbf16>
    %1215 = arith.extf %1214 : vector<16x128xbf16> to vector<16x128xf32>
    %1216 = arith.subf %1215, %1210 : vector<16x128xf32>
    %1217 = math.exp %1216 : vector<16x128xf32>
    %1218 = arith.addf %1211, %1217 : vector<16x128xf32>
    %cst_691 = arith.constant 0.000000e+00 : f32
    %1219 = vector.broadcast %cst_691 : f32 to vector<16x128xf32>
    %1220 = arith.subf %1143, %1219 : vector<16x128xf32>
    %1221 = math.absf %1220 : vector<16x128xf32>
    %cst_692 = arith.constant 1.000000e+00 : f32
    %1222 = vector.broadcast %cst_692 : f32 to vector<16x128xf32>
    %1223 = arith.subf %1222, %1221 : vector<16x128xf32>
    %cst_693 = arith.constant 0.000000e+00 : f32
    %1224 = vector.broadcast %cst_693 : f32 to vector<16x128xf32>
    %1225 = arith.maximumf %1223, %1224 : vector<16x128xf32>
    %1226 = arith.mulf %1215, %1225 : vector<16x128xf32>
    %1227 = arith.addf %1212, %1226 : vector<16x128xf32>
    %c3_694 = arith.constant 3 : index
    %c1_695 = arith.constant 1 : index
    %c0_696 = arith.constant 0 : index
    %c0_697 = arith.constant 0 : index
    %1228 = vector.load %arg3[%c3_694, %c1_695, %c0_696, %c0_697] : memref<4x17x16x128xbf16, #tpu.memory_space<vmem>>, vector<1x1x16x128xbf16>
    %1229 = vector.shape_cast %1228 : vector<1x1x16x128xbf16> to vector<16x128xbf16>
    %1230 = arith.extf %1229 : vector<16x128xbf16> to vector<16x128xf32>
    %1231 = arith.subf %1230, %1210 : vector<16x128xf32>
    %1232 = math.exp %1231 : vector<16x128xf32>
    %1233 = arith.addf %1218, %1232 : vector<16x128xf32>
    %cst_698 = arith.constant 1.000000e+00 : f32
    %1234 = vector.broadcast %cst_698 : f32 to vector<16x128xf32>
    %1235 = arith.subf %1143, %1234 : vector<16x128xf32>
    %1236 = math.absf %1235 : vector<16x128xf32>
    %cst_699 = arith.constant 1.000000e+00 : f32
    %1237 = vector.broadcast %cst_699 : f32 to vector<16x128xf32>
    %1238 = arith.subf %1237, %1236 : vector<16x128xf32>
    %cst_700 = arith.constant 0.000000e+00 : f32
    %1239 = vector.broadcast %cst_700 : f32 to vector<16x128xf32>
    %1240 = arith.maximumf %1238, %1239 : vector<16x128xf32>
    %1241 = arith.mulf %1230, %1240 : vector<16x128xf32>
    %1242 = arith.addf %1227, %1241 : vector<16x128xf32>
    %c3_701 = arith.constant 3 : index
    %c2_702 = arith.constant 2 : index
    %c0_703 = arith.constant 0 : index
    %c0_704 = arith.constant 0 : index
    %1243 = vector.load %arg3[%c3_701, %c2_702, %c0_703, %c0_704] : memref<4x17x16x128xbf16, #tpu.memory_space<vmem>>, vector<1x1x16x128xbf16>
    %1244 = vector.shape_cast %1243 : vector<1x1x16x128xbf16> to vector<16x128xbf16>
    %1245 = arith.extf %1244 : vector<16x128xbf16> to vector<16x128xf32>
    %1246 = arith.subf %1245, %1210 : vector<16x128xf32>
    %1247 = math.exp %1246 : vector<16x128xf32>
    %1248 = arith.addf %1233, %1247 : vector<16x128xf32>
    %cst_705 = arith.constant 2.000000e+00 : f32
    %1249 = vector.broadcast %cst_705 : f32 to vector<16x128xf32>
    %1250 = arith.subf %1143, %1249 : vector<16x128xf32>
    %1251 = math.absf %1250 : vector<16x128xf32>
    %cst_706 = arith.constant 1.000000e+00 : f32
    %1252 = vector.broadcast %cst_706 : f32 to vector<16x128xf32>
    %1253 = arith.subf %1252, %1251 : vector<16x128xf32>
    %cst_707 = arith.constant 0.000000e+00 : f32
    %1254 = vector.broadcast %cst_707 : f32 to vector<16x128xf32>
    %1255 = arith.maximumf %1253, %1254 : vector<16x128xf32>
    %1256 = arith.mulf %1245, %1255 : vector<16x128xf32>
    %1257 = arith.addf %1242, %1256 : vector<16x128xf32>
    %c3_708 = arith.constant 3 : index
    %c3_709 = arith.constant 3 : index
    %c0_710 = arith.constant 0 : index
    %c0_711 = arith.constant 0 : index
    %1258 = vector.load %arg3[%c3_708, %c3_709, %c0_710, %c0_711] : memref<4x17x16x128xbf16, #tpu.memory_space<vmem>>, vector<1x1x16x128xbf16>
    %1259 = vector.shape_cast %1258 : vector<1x1x16x128xbf16> to vector<16x128xbf16>
    %1260 = arith.extf %1259 : vector<16x128xbf16> to vector<16x128xf32>
    %1261 = arith.subf %1260, %1210 : vector<16x128xf32>
    %1262 = math.exp %1261 : vector<16x128xf32>
    %1263 = arith.addf %1248, %1262 : vector<16x128xf32>
    %cst_712 = arith.constant 3.000000e+00 : f32
    %1264 = vector.broadcast %cst_712 : f32 to vector<16x128xf32>
    %1265 = arith.subf %1143, %1264 : vector<16x128xf32>
    %1266 = math.absf %1265 : vector<16x128xf32>
    %cst_713 = arith.constant 1.000000e+00 : f32
    %1267 = vector.broadcast %cst_713 : f32 to vector<16x128xf32>
    %1268 = arith.subf %1267, %1266 : vector<16x128xf32>
    %cst_714 = arith.constant 0.000000e+00 : f32
    %1269 = vector.broadcast %cst_714 : f32 to vector<16x128xf32>
    %1270 = arith.maximumf %1268, %1269 : vector<16x128xf32>
    %1271 = arith.mulf %1260, %1270 : vector<16x128xf32>
    %1272 = arith.addf %1257, %1271 : vector<16x128xf32>
    %c3_715 = arith.constant 3 : index
    %c4_716 = arith.constant 4 : index
    %c0_717 = arith.constant 0 : index
    %c0_718 = arith.constant 0 : index
    %1273 = vector.load %arg3[%c3_715, %c4_716, %c0_717, %c0_718] : memref<4x17x16x128xbf16, #tpu.memory_space<vmem>>, vector<1x1x16x128xbf16>
    %1274 = vector.shape_cast %1273 : vector<1x1x16x128xbf16> to vector<16x128xbf16>
    %1275 = arith.extf %1274 : vector<16x128xbf16> to vector<16x128xf32>
    %1276 = arith.subf %1275, %1210 : vector<16x128xf32>
    %1277 = math.exp %1276 : vector<16x128xf32>
    %1278 = arith.addf %1263, %1277 : vector<16x128xf32>
    %cst_719 = arith.constant 4.000000e+00 : f32
    %1279 = vector.broadcast %cst_719 : f32 to vector<16x128xf32>
    %1280 = arith.subf %1143, %1279 : vector<16x128xf32>
    %1281 = math.absf %1280 : vector<16x128xf32>
    %cst_720 = arith.constant 1.000000e+00 : f32
    %1282 = vector.broadcast %cst_720 : f32 to vector<16x128xf32>
    %1283 = arith.subf %1282, %1281 : vector<16x128xf32>
    %cst_721 = arith.constant 0.000000e+00 : f32
    %1284 = vector.broadcast %cst_721 : f32 to vector<16x128xf32>
    %1285 = arith.maximumf %1283, %1284 : vector<16x128xf32>
    %1286 = arith.mulf %1275, %1285 : vector<16x128xf32>
    %1287 = arith.addf %1272, %1286 : vector<16x128xf32>
    %c3_722 = arith.constant 3 : index
    %c5_723 = arith.constant 5 : index
    %c0_724 = arith.constant 0 : index
    %c0_725 = arith.constant 0 : index
    %1288 = vector.load %arg3[%c3_722, %c5_723, %c0_724, %c0_725] : memref<4x17x16x128xbf16, #tpu.memory_space<vmem>>, vector<1x1x16x128xbf16>
    %1289 = vector.shape_cast %1288 : vector<1x1x16x128xbf16> to vector<16x128xbf16>
    %1290 = arith.extf %1289 : vector<16x128xbf16> to vector<16x128xf32>
    %1291 = arith.subf %1290, %1210 : vector<16x128xf32>
    %1292 = math.exp %1291 : vector<16x128xf32>
    %1293 = arith.addf %1278, %1292 : vector<16x128xf32>
    %cst_726 = arith.constant 5.000000e+00 : f32
    %1294 = vector.broadcast %cst_726 : f32 to vector<16x128xf32>
    %1295 = arith.subf %1143, %1294 : vector<16x128xf32>
    %1296 = math.absf %1295 : vector<16x128xf32>
    %cst_727 = arith.constant 1.000000e+00 : f32
    %1297 = vector.broadcast %cst_727 : f32 to vector<16x128xf32>
    %1298 = arith.subf %1297, %1296 : vector<16x128xf32>
    %cst_728 = arith.constant 0.000000e+00 : f32
    %1299 = vector.broadcast %cst_728 : f32 to vector<16x128xf32>
    %1300 = arith.maximumf %1298, %1299 : vector<16x128xf32>
    %1301 = arith.mulf %1290, %1300 : vector<16x128xf32>
    %1302 = arith.addf %1287, %1301 : vector<16x128xf32>
    %c3_729 = arith.constant 3 : index
    %c6_730 = arith.constant 6 : index
    %c0_731 = arith.constant 0 : index
    %c0_732 = arith.constant 0 : index
    %1303 = vector.load %arg3[%c3_729, %c6_730, %c0_731, %c0_732] : memref<4x17x16x128xbf16, #tpu.memory_space<vmem>>, vector<1x1x16x128xbf16>
    %1304 = vector.shape_cast %1303 : vector<1x1x16x128xbf16> to vector<16x128xbf16>
    %1305 = arith.extf %1304 : vector<16x128xbf16> to vector<16x128xf32>
    %1306 = arith.subf %1305, %1210 : vector<16x128xf32>
    %1307 = math.exp %1306 : vector<16x128xf32>
    %1308 = arith.addf %1293, %1307 : vector<16x128xf32>
    %cst_733 = arith.constant 6.000000e+00 : f32
    %1309 = vector.broadcast %cst_733 : f32 to vector<16x128xf32>
    %1310 = arith.subf %1143, %1309 : vector<16x128xf32>
    %1311 = math.absf %1310 : vector<16x128xf32>
    %cst_734 = arith.constant 1.000000e+00 : f32
    %1312 = vector.broadcast %cst_734 : f32 to vector<16x128xf32>
    %1313 = arith.subf %1312, %1311 : vector<16x128xf32>
    %cst_735 = arith.constant 0.000000e+00 : f32
    %1314 = vector.broadcast %cst_735 : f32 to vector<16x128xf32>
    %1315 = arith.maximumf %1313, %1314 : vector<16x128xf32>
    %1316 = arith.mulf %1305, %1315 : vector<16x128xf32>
    %1317 = arith.addf %1302, %1316 : vector<16x128xf32>
    %c3_736 = arith.constant 3 : index
    %c7_737 = arith.constant 7 : index
    %c0_738 = arith.constant 0 : index
    %c0_739 = arith.constant 0 : index
    %1318 = vector.load %arg3[%c3_736, %c7_737, %c0_738, %c0_739] : memref<4x17x16x128xbf16, #tpu.memory_space<vmem>>, vector<1x1x16x128xbf16>
    %1319 = vector.shape_cast %1318 : vector<1x1x16x128xbf16> to vector<16x128xbf16>
    %1320 = arith.extf %1319 : vector<16x128xbf16> to vector<16x128xf32>
    %1321 = arith.subf %1320, %1210 : vector<16x128xf32>
    %1322 = math.exp %1321 : vector<16x128xf32>
    %1323 = arith.addf %1308, %1322 : vector<16x128xf32>
    %cst_740 = arith.constant 7.000000e+00 : f32
    %1324 = vector.broadcast %cst_740 : f32 to vector<16x128xf32>
    %1325 = arith.subf %1143, %1324 : vector<16x128xf32>
    %1326 = math.absf %1325 : vector<16x128xf32>
    %cst_741 = arith.constant 1.000000e+00 : f32
    %1327 = vector.broadcast %cst_741 : f32 to vector<16x128xf32>
    %1328 = arith.subf %1327, %1326 : vector<16x128xf32>
    %cst_742 = arith.constant 0.000000e+00 : f32
    %1329 = vector.broadcast %cst_742 : f32 to vector<16x128xf32>
    %1330 = arith.maximumf %1328, %1329 : vector<16x128xf32>
    %1331 = arith.mulf %1320, %1330 : vector<16x128xf32>
    %1332 = arith.addf %1317, %1331 : vector<16x128xf32>
    %c3_743 = arith.constant 3 : index
    %c8_744 = arith.constant 8 : index
    %c0_745 = arith.constant 0 : index
    %c0_746 = arith.constant 0 : index
    %1333 = vector.load %arg3[%c3_743, %c8_744, %c0_745, %c0_746] : memref<4x17x16x128xbf16, #tpu.memory_space<vmem>>, vector<1x1x16x128xbf16>
    %1334 = vector.shape_cast %1333 : vector<1x1x16x128xbf16> to vector<16x128xbf16>
    %1335 = arith.extf %1334 : vector<16x128xbf16> to vector<16x128xf32>
    %1336 = arith.subf %1335, %1210 : vector<16x128xf32>
    %1337 = math.exp %1336 : vector<16x128xf32>
    %1338 = arith.addf %1323, %1337 : vector<16x128xf32>
    %cst_747 = arith.constant 8.000000e+00 : f32
    %1339 = vector.broadcast %cst_747 : f32 to vector<16x128xf32>
    %1340 = arith.subf %1143, %1339 : vector<16x128xf32>
    %1341 = math.absf %1340 : vector<16x128xf32>
    %cst_748 = arith.constant 1.000000e+00 : f32
    %1342 = vector.broadcast %cst_748 : f32 to vector<16x128xf32>
    %1343 = arith.subf %1342, %1341 : vector<16x128xf32>
    %cst_749 = arith.constant 0.000000e+00 : f32
    %1344 = vector.broadcast %cst_749 : f32 to vector<16x128xf32>
    %1345 = arith.maximumf %1343, %1344 : vector<16x128xf32>
    %1346 = arith.mulf %1335, %1345 : vector<16x128xf32>
    %1347 = arith.addf %1332, %1346 : vector<16x128xf32>
    %c3_750 = arith.constant 3 : index
    %c9_751 = arith.constant 9 : index
    %c0_752 = arith.constant 0 : index
    %c0_753 = arith.constant 0 : index
    %1348 = vector.load %arg3[%c3_750, %c9_751, %c0_752, %c0_753] : memref<4x17x16x128xbf16, #tpu.memory_space<vmem>>, vector<1x1x16x128xbf16>
    %1349 = vector.shape_cast %1348 : vector<1x1x16x128xbf16> to vector<16x128xbf16>
    %1350 = arith.extf %1349 : vector<16x128xbf16> to vector<16x128xf32>
    %1351 = arith.subf %1350, %1210 : vector<16x128xf32>
    %1352 = math.exp %1351 : vector<16x128xf32>
    %1353 = arith.addf %1338, %1352 : vector<16x128xf32>
    %cst_754 = arith.constant 9.000000e+00 : f32
    %1354 = vector.broadcast %cst_754 : f32 to vector<16x128xf32>
    %1355 = arith.subf %1143, %1354 : vector<16x128xf32>
    %1356 = math.absf %1355 : vector<16x128xf32>
    %cst_755 = arith.constant 1.000000e+00 : f32
    %1357 = vector.broadcast %cst_755 : f32 to vector<16x128xf32>
    %1358 = arith.subf %1357, %1356 : vector<16x128xf32>
    %cst_756 = arith.constant 0.000000e+00 : f32
    %1359 = vector.broadcast %cst_756 : f32 to vector<16x128xf32>
    %1360 = arith.maximumf %1358, %1359 : vector<16x128xf32>
    %1361 = arith.mulf %1350, %1360 : vector<16x128xf32>
    %1362 = arith.addf %1347, %1361 : vector<16x128xf32>
    %c3_757 = arith.constant 3 : index
    %c10_758 = arith.constant 10 : index
    %c0_759 = arith.constant 0 : index
    %c0_760 = arith.constant 0 : index
    %1363 = vector.load %arg3[%c3_757, %c10_758, %c0_759, %c0_760] : memref<4x17x16x128xbf16, #tpu.memory_space<vmem>>, vector<1x1x16x128xbf16>
    %1364 = vector.shape_cast %1363 : vector<1x1x16x128xbf16> to vector<16x128xbf16>
    %1365 = arith.extf %1364 : vector<16x128xbf16> to vector<16x128xf32>
    %1366 = arith.subf %1365, %1210 : vector<16x128xf32>
    %1367 = math.exp %1366 : vector<16x128xf32>
    %1368 = arith.addf %1353, %1367 : vector<16x128xf32>
    %cst_761 = arith.constant 1.000000e+01 : f32
    %1369 = vector.broadcast %cst_761 : f32 to vector<16x128xf32>
    %1370 = arith.subf %1143, %1369 : vector<16x128xf32>
    %1371 = math.absf %1370 : vector<16x128xf32>
    %cst_762 = arith.constant 1.000000e+00 : f32
    %1372 = vector.broadcast %cst_762 : f32 to vector<16x128xf32>
    %1373 = arith.subf %1372, %1371 : vector<16x128xf32>
    %cst_763 = arith.constant 0.000000e+00 : f32
    %1374 = vector.broadcast %cst_763 : f32 to vector<16x128xf32>
    %1375 = arith.maximumf %1373, %1374 : vector<16x128xf32>
    %1376 = arith.mulf %1365, %1375 : vector<16x128xf32>
    %1377 = arith.addf %1362, %1376 : vector<16x128xf32>
    %c3_764 = arith.constant 3 : index
    %c11_765 = arith.constant 11 : index
    %c0_766 = arith.constant 0 : index
    %c0_767 = arith.constant 0 : index
    %1378 = vector.load %arg3[%c3_764, %c11_765, %c0_766, %c0_767] : memref<4x17x16x128xbf16, #tpu.memory_space<vmem>>, vector<1x1x16x128xbf16>
    %1379 = vector.shape_cast %1378 : vector<1x1x16x128xbf16> to vector<16x128xbf16>
    %1380 = arith.extf %1379 : vector<16x128xbf16> to vector<16x128xf32>
    %1381 = arith.subf %1380, %1210 : vector<16x128xf32>
    %1382 = math.exp %1381 : vector<16x128xf32>
    %1383 = arith.addf %1368, %1382 : vector<16x128xf32>
    %cst_768 = arith.constant 1.100000e+01 : f32
    %1384 = vector.broadcast %cst_768 : f32 to vector<16x128xf32>
    %1385 = arith.subf %1143, %1384 : vector<16x128xf32>
    %1386 = math.absf %1385 : vector<16x128xf32>
    %cst_769 = arith.constant 1.000000e+00 : f32
    %1387 = vector.broadcast %cst_769 : f32 to vector<16x128xf32>
    %1388 = arith.subf %1387, %1386 : vector<16x128xf32>
    %cst_770 = arith.constant 0.000000e+00 : f32
    %1389 = vector.broadcast %cst_770 : f32 to vector<16x128xf32>
    %1390 = arith.maximumf %1388, %1389 : vector<16x128xf32>
    %1391 = arith.mulf %1380, %1390 : vector<16x128xf32>
    %1392 = arith.addf %1377, %1391 : vector<16x128xf32>
    %c3_771 = arith.constant 3 : index
    %c12_772 = arith.constant 12 : index
    %c0_773 = arith.constant 0 : index
    %c0_774 = arith.constant 0 : index
    %1393 = vector.load %arg3[%c3_771, %c12_772, %c0_773, %c0_774] : memref<4x17x16x128xbf16, #tpu.memory_space<vmem>>, vector<1x1x16x128xbf16>
    %1394 = vector.shape_cast %1393 : vector<1x1x16x128xbf16> to vector<16x128xbf16>
    %1395 = arith.extf %1394 : vector<16x128xbf16> to vector<16x128xf32>
    %1396 = arith.subf %1395, %1210 : vector<16x128xf32>
    %1397 = math.exp %1396 : vector<16x128xf32>
    %1398 = arith.addf %1383, %1397 : vector<16x128xf32>
    %cst_775 = arith.constant 1.200000e+01 : f32
    %1399 = vector.broadcast %cst_775 : f32 to vector<16x128xf32>
    %1400 = arith.subf %1143, %1399 : vector<16x128xf32>
    %1401 = math.absf %1400 : vector<16x128xf32>
    %cst_776 = arith.constant 1.000000e+00 : f32
    %1402 = vector.broadcast %cst_776 : f32 to vector<16x128xf32>
    %1403 = arith.subf %1402, %1401 : vector<16x128xf32>
    %cst_777 = arith.constant 0.000000e+00 : f32
    %1404 = vector.broadcast %cst_777 : f32 to vector<16x128xf32>
    %1405 = arith.maximumf %1403, %1404 : vector<16x128xf32>
    %1406 = arith.mulf %1395, %1405 : vector<16x128xf32>
    %1407 = arith.addf %1392, %1406 : vector<16x128xf32>
    %c3_778 = arith.constant 3 : index
    %c13_779 = arith.constant 13 : index
    %c0_780 = arith.constant 0 : index
    %c0_781 = arith.constant 0 : index
    %1408 = vector.load %arg3[%c3_778, %c13_779, %c0_780, %c0_781] : memref<4x17x16x128xbf16, #tpu.memory_space<vmem>>, vector<1x1x16x128xbf16>
    %1409 = vector.shape_cast %1408 : vector<1x1x16x128xbf16> to vector<16x128xbf16>
    %1410 = arith.extf %1409 : vector<16x128xbf16> to vector<16x128xf32>
    %1411 = arith.subf %1410, %1210 : vector<16x128xf32>
    %1412 = math.exp %1411 : vector<16x128xf32>
    %1413 = arith.addf %1398, %1412 : vector<16x128xf32>
    %cst_782 = arith.constant 1.300000e+01 : f32
    %1414 = vector.broadcast %cst_782 : f32 to vector<16x128xf32>
    %1415 = arith.subf %1143, %1414 : vector<16x128xf32>
    %1416 = math.absf %1415 : vector<16x128xf32>
    %cst_783 = arith.constant 1.000000e+00 : f32
    %1417 = vector.broadcast %cst_783 : f32 to vector<16x128xf32>
    %1418 = arith.subf %1417, %1416 : vector<16x128xf32>
    %cst_784 = arith.constant 0.000000e+00 : f32
    %1419 = vector.broadcast %cst_784 : f32 to vector<16x128xf32>
    %1420 = arith.maximumf %1418, %1419 : vector<16x128xf32>
    %1421 = arith.mulf %1410, %1420 : vector<16x128xf32>
    %1422 = arith.addf %1407, %1421 : vector<16x128xf32>
    %c3_785 = arith.constant 3 : index
    %c14_786 = arith.constant 14 : index
    %c0_787 = arith.constant 0 : index
    %c0_788 = arith.constant 0 : index
    %1423 = vector.load %arg3[%c3_785, %c14_786, %c0_787, %c0_788] : memref<4x17x16x128xbf16, #tpu.memory_space<vmem>>, vector<1x1x16x128xbf16>
    %1424 = vector.shape_cast %1423 : vector<1x1x16x128xbf16> to vector<16x128xbf16>
    %1425 = arith.extf %1424 : vector<16x128xbf16> to vector<16x128xf32>
    %1426 = arith.subf %1425, %1210 : vector<16x128xf32>
    %1427 = math.exp %1426 : vector<16x128xf32>
    %1428 = arith.addf %1413, %1427 : vector<16x128xf32>
    %cst_789 = arith.constant 1.400000e+01 : f32
    %1429 = vector.broadcast %cst_789 : f32 to vector<16x128xf32>
    %1430 = arith.subf %1143, %1429 : vector<16x128xf32>
    %1431 = math.absf %1430 : vector<16x128xf32>
    %cst_790 = arith.constant 1.000000e+00 : f32
    %1432 = vector.broadcast %cst_790 : f32 to vector<16x128xf32>
    %1433 = arith.subf %1432, %1431 : vector<16x128xf32>
    %cst_791 = arith.constant 0.000000e+00 : f32
    %1434 = vector.broadcast %cst_791 : f32 to vector<16x128xf32>
    %1435 = arith.maximumf %1433, %1434 : vector<16x128xf32>
    %1436 = arith.mulf %1425, %1435 : vector<16x128xf32>
    %1437 = arith.addf %1422, %1436 : vector<16x128xf32>
    %c3_792 = arith.constant 3 : index
    %c15_793 = arith.constant 15 : index
    %c0_794 = arith.constant 0 : index
    %c0_795 = arith.constant 0 : index
    %1438 = vector.load %arg3[%c3_792, %c15_793, %c0_794, %c0_795] : memref<4x17x16x128xbf16, #tpu.memory_space<vmem>>, vector<1x1x16x128xbf16>
    %1439 = vector.shape_cast %1438 : vector<1x1x16x128xbf16> to vector<16x128xbf16>
    %1440 = arith.extf %1439 : vector<16x128xbf16> to vector<16x128xf32>
    %1441 = arith.subf %1440, %1210 : vector<16x128xf32>
    %1442 = math.exp %1441 : vector<16x128xf32>
    %1443 = arith.addf %1428, %1442 : vector<16x128xf32>
    %cst_796 = arith.constant 1.500000e+01 : f32
    %1444 = vector.broadcast %cst_796 : f32 to vector<16x128xf32>
    %1445 = arith.subf %1143, %1444 : vector<16x128xf32>
    %1446 = math.absf %1445 : vector<16x128xf32>
    %cst_797 = arith.constant 1.000000e+00 : f32
    %1447 = vector.broadcast %cst_797 : f32 to vector<16x128xf32>
    %1448 = arith.subf %1447, %1446 : vector<16x128xf32>
    %cst_798 = arith.constant 0.000000e+00 : f32
    %1449 = vector.broadcast %cst_798 : f32 to vector<16x128xf32>
    %1450 = arith.maximumf %1448, %1449 : vector<16x128xf32>
    %1451 = arith.mulf %1440, %1450 : vector<16x128xf32>
    %1452 = arith.addf %1437, %1451 : vector<16x128xf32>
    %c3_799 = arith.constant 3 : index
    %c16_800 = arith.constant 16 : index
    %c0_801 = arith.constant 0 : index
    %c0_802 = arith.constant 0 : index
    %1453 = vector.load %arg3[%c3_799, %c16_800, %c0_801, %c0_802] : memref<4x17x16x128xbf16, #tpu.memory_space<vmem>>, vector<1x1x16x128xbf16>
    %1454 = vector.shape_cast %1453 : vector<1x1x16x128xbf16> to vector<16x128xbf16>
    %1455 = arith.extf %1454 : vector<16x128xbf16> to vector<16x128xf32>
    %1456 = arith.subf %1455, %1210 : vector<16x128xf32>
    %1457 = math.exp %1456 : vector<16x128xf32>
    %1458 = arith.addf %1443, %1457 : vector<16x128xf32>
    %cst_803 = arith.constant 1.600000e+01 : f32
    %1459 = vector.broadcast %cst_803 : f32 to vector<16x128xf32>
    %1460 = arith.subf %1143, %1459 : vector<16x128xf32>
    %1461 = math.absf %1460 : vector<16x128xf32>
    %cst_804 = arith.constant 1.000000e+00 : f32
    %1462 = vector.broadcast %cst_804 : f32 to vector<16x128xf32>
    %1463 = arith.subf %1462, %1461 : vector<16x128xf32>
    %cst_805 = arith.constant 0.000000e+00 : f32
    %1464 = vector.broadcast %cst_805 : f32 to vector<16x128xf32>
    %1465 = arith.maximumf %1463, %1464 : vector<16x128xf32>
    %1466 = arith.mulf %1455, %1465 : vector<16x128xf32>
    %1467 = arith.addf %1452, %1466 : vector<16x128xf32>
    %1468 = math.log %1458 : vector<16x128xf32>
    %1469 = arith.addf %1210, %1468 : vector<16x128xf32>
    %1470 = arith.subf %1469, %1467 : vector<16x128xf32>
    %1471 = arith.addf %1139, %1470 : vector<16x128xf32>
    %cst_806 = arith.constant 2.500000e-01 : f32
    %1472 = vector.broadcast %cst_806 : f32 to vector<16x128xf32>
    %1473 = arith.mulf %1472, %24 : vector<16x128xf32>
    %1474 = arith.mulf %1471, %1473 : vector<16x128xf32>
    %cst_807 = arith.constant 0.000000e+00 : f32
    %1475 = vector.broadcast %cst_807 : f32 to vector<16x128xf32>
    %1476 = arith.select %26, %1474, %1475 : vector<16x128xi1>, vector<16x128xf32>
    %c0_808 = arith.constant 0 : index
    %c0_809 = arith.constant 0 : index
    %c0_810 = arith.constant 0 : index
    %1477 = vector.load %arg6[%c0_808, %c0_809, %c0_810] : memref<2x16x128xf32, #tpu.memory_space<vmem>>, vector<1x16x128xf32>
    %1478 = vector.shape_cast %1477 : vector<1x16x128xf32> to vector<16x128xf32>
    %1479 = arith.addf %1478, %138 : vector<16x128xf32>
    %c0_811 = arith.constant 0 : index
    %c0_812 = arith.constant 0 : index
    %c0_813 = arith.constant 0 : index
    %1480 = vector.load %arg6[%c0_811, %c0_812, %c0_813] : memref<2x16x128xf32, #tpu.memory_space<vmem>>, vector<1x16x128xf32>
    %1481 = vector.shape_cast %1480 : vector<1x16x128xf32> to vector<16x128xf32>
    %1482 = vector.shape_cast %1479 : vector<16x128xf32> to vector<1x16x128xf32>
    tpu.vector_store %arg6[%c0_811, %c0_812, %c0_813], %1482 {strides = array<i32>} : memref<2x16x128xf32, #tpu.memory_space<vmem>>, vector<1x16x128xf32>,
    %c1_814 = arith.constant 1 : index
    %c0_815 = arith.constant 0 : index
    %c0_816 = arith.constant 0 : index
    %1483 = vector.load %arg6[%c1_814, %c0_815, %c0_816] : memref<2x16x128xf32, #tpu.memory_space<vmem>>, vector<1x16x128xf32>
    %1484 = vector.shape_cast %1483 : vector<1x16x128xf32> to vector<16x128xf32>
    %1485 = arith.addf %1484, %1476 : vector<16x128xf32>
    %c1_817 = arith.constant 1 : index
    %c0_818 = arith.constant 0 : index
    %c0_819 = arith.constant 0 : index
    %1486 = vector.load %arg6[%c1_817, %c0_818, %c0_819] : memref<2x16x128xf32, #tpu.memory_space<vmem>>, vector<1x16x128xf32>
    %1487 = vector.shape_cast %1486 : vector<1x16x128xf32> to vector<16x128xf32>
    %1488 = vector.shape_cast %1485 : vector<16x128xf32> to vector<1x16x128xf32>
    tpu.vector_store %arg6[%c1_817, %c0_818, %c0_819], %1488 {strides = array<i32>} : memref<2x16x128xf32, #tpu.memory_space<vmem>>, vector<1x16x128xf32>,
    %c0_i32_820 = arith.constant 0 : i32
    %1489 = arith.cmpi eq, %arg1, %c0_i32_820 : i32
    %1490 = arith.extui %1489 : i1 to i32
    %c0_i32_821 = arith.constant 0 : i32
    %1491 = arith.cmpi ne, %1490, %c0_i32_821 : i32
    scf.if %1491 {
      %c0_822 = arith.constant 0 : index
      %c0_823 = arith.constant 0 : index
      %c0_824 = arith.constant 0 : index
      %1492 = vector.load %arg6[%c0_822, %c0_823, %c0_824] : memref<2x16x128xf32, #tpu.memory_space<vmem>>, vector<1x16x128xf32>
      %1493 = vector.shape_cast %1492 : vector<1x16x128xf32> to vector<16x128xf32>
      %cst_825 = arith.constant dense<0.000000e+00> : vector<128xf32>
      %1494 = vector.multi_reduction <add>, %1493, %cst_825 [0] : vector<16x128xf32> to vector<128xf32>
      %1495 = vector.shape_cast %1494 : vector<128xf32> to vector<1x128xf32>
      %c0_826 = arith.constant 0 : index
      %c0_827 = arith.constant 0 : index
      %c0_828 = arith.constant 0 : index
      %1496 = vector.load %arg4[%c0_826, %c0_827, %c0_828] : memref<1x1x128xf32, #tpu.memory_space<vmem>>, vector<1x1x128xf32>
      %1497 = vector.shape_cast %1496 : vector<1x1x128xf32> to vector<1x128xf32>
      %1498 = vector.shape_cast %1495 : vector<1x128xf32> to vector<1x1x128xf32>
      tpu.vector_store %arg4[%c0_826, %c0_827, %c0_828], %1498 {strides = array<i32>} : memref<1x1x128xf32, #tpu.memory_space<vmem>>, vector<1x1x128xf32>,
      %c1_829 = arith.constant 1 : index
      %c0_830 = arith.constant 0 : index
      %c0_831 = arith.constant 0 : index
      %1499 = vector.load %arg6[%c1_829, %c0_830, %c0_831] : memref<2x16x128xf32, #tpu.memory_space<vmem>>, vector<1x16x128xf32>
      %1500 = vector.shape_cast %1499 : vector<1x16x128xf32> to vector<16x128xf32>
      %cst_832 = arith.constant dense<0.000000e+00> : vector<128xf32>
      %1501 = vector.multi_reduction <add>, %1500, %cst_832 [0] : vector<16x128xf32> to vector<128xf32>
      %1502 = vector.shape_cast %1501 : vector<128xf32> to vector<1x128xf32>
      %c0_833 = arith.constant 0 : index
      %c0_834 = arith.constant 0 : index
      %c0_835 = arith.constant 0 : index
      %1503 = vector.load %arg5[%c0_833, %c0_834, %c0_835] : memref<1x1x128xf32, #tpu.memory_space<vmem>>, vector<1x1x128xf32>
      %1504 = vector.shape_cast %1503 : vector<1x1x128xf32> to vector<1x128xf32>
      %1505 = vector.shape_cast %1502 : vector<1x128xf32> to vector<1x1x128xf32>
      tpu.vector_store %arg5[%c0_833, %c0_834, %c0_835], %1505 {strides = array<i32>} : memref<1x1x128xf32, #tpu.memory_space<vmem>>, vector<1x1x128xf32>,
    } else {
    }
    return
  }
  func.func @transform_0(%arg0: i32, %arg1: i32) -> (i32, i32, i32) {
    %c1_i32 = arith.constant 1 : i32
    %0 = arith.muli %arg0, %c1_i32 : i32
    %1 = arith.addi %0, %arg1 : i32
    %c0_i32 = arith.constant 0 : i32
    %c0_i32_0 = arith.constant 0 : i32
    %c0_i32_1 = arith.constant 0 : i32
    return %c0_i32, %1, %c0_i32_0 : i32, i32, i32
  }
  func.func @transform_1(%arg0: i32, %arg1: i32) -> (i32, i32, i32, i32) {
    %c1_i32 = arith.constant 1 : i32
    %0 = arith.muli %arg0, %c1_i32 : i32
    %1 = arith.addi %0, %arg1 : i32
    %c0_i32 = arith.constant 0 : i32
    %c0_i32_0 = arith.constant 0 : i32
    %c0_i32_1 = arith.constant 0 : i32
    %c0_i32_2 = arith.constant 0 : i32
    return %c0_i32, %c0_i32_0, %1, %c0_i32_1 : i32, i32, i32, i32
  }
  func.func @transform_2(%arg0: i32, %arg1: i32) -> (i32, i32, i32) {
    %c0_i32 = arith.constant 0 : i32
    %c0_i32_0 = arith.constant 0 : i32
    %c0_i32_1 = arith.constant 0 : i32
    return %arg0, %c0_i32, %c0_i32_0 : i32, i32, i32
  }
  func.func @transform_3(%arg0: i32, %arg1: i32) -> (i32, i32, i32) {
    %c0_i32 = arith.constant 0 : i32
    %c0_i32_0 = arith.constant 0 : i32
    %c0_i32_1 = arith.constant 0 : i32
    return %arg0, %c0_i32, %c0_i32_0 : i32, i32, i32
  }
}

</mosaic_0001>

<llo_original>
// kernel: bbox_loss.1
$region0: #{bbox_loss.1}
  #allocation0 [shape = 'u32[]', space=smem, size = 0x4, offset = 0x4, fixed_abs, tag = 'smem constant byte address 0x4 - core index']
  #allocation1 [shape = 'u32[72,128]{1,0:T(1,128)}', space=vmem, size = 0x9000, scoped, tag = 'internal scratch']
  #allocation2 [shape = 'f32[2,16,128]{2,1,0:T(8,128)}', space=vmem, size = 0x4000, scoped, tag = 'scratch operand']
  %s0 = inlined_call_operand.vmem [shape: f32[11,16,128], index: 0, kind: input, shape index: {}]
  %s1 = inlined_call_operand.vmem [shape: bf16[4,17,16,128], index: 1, kind: input, shape index: {}]
  %s2 = inlined_call_operand.vmem [shape: f32[1,1,128], index: 2, kind: output, shape index: {0}]
  %s3 = inlined_call_operand.vmem [shape: f32[1,1,128], index: 3, kind: output, shape index: {1}]
  %4 = xla_tuple %s2, %s3
  %s5 = sld [smem:[#allocation0]]
  $region34: #{bbox_loss.1} parent=0
    _
  %s7 = ssub.s32 1, %s5
  %s8 = scalar_select 0, %s7, %s5
  // Predicated region
  $region2: #{bbox_loss.1} parent=0 // pred_check
    _
  $region3: #{bbox_loss.1} parent=0 // pred_check_branch
    %10 = sbr.rel (0) target = $region5
  $region4: #{bbox_loss.1} parent=0 // pred_region
    %s11 = sadd.s32 0, 0
    %s12 = smul.u32 2, %s11
    %p13 = scmp.lt.s32.totalorder %s12, 1
    %s14 = scalar_select %p13, %s12, 1
    %s15 = smul.addr %s14, 8
    %s16 = scalar_lea.vmem %s0, %s15
    %s17 = sadd.s32 0, 0
    %s18 = smul.u32 2, %s17
  $region5: #{bbox_loss.1} parent=0 // pred_fallthru
    _
  // Predicated region
  $region6: #{bbox_loss.1} parent=0 // pred_check
    _
  $region7: #{bbox_loss.1} parent=0 // pred_check_branch
    %20 = sbr.rel (0) target = $region9
  $region8: #{bbox_loss.1} parent=0 // pred_region
    %s21 = sadd.s32 0, 0
    %s22 = smul.u32 2, %s21
    %p23 = scmp.lt.s32.totalorder %s22, 1
    %s24 = scalar_select %p23, %s22, 1
    %s25 = smul.addr %s24, 4
    %s26 = scalar_lea.vmem %s1, %s25
    %s27 = sadd.s32 0, 0
    %s28 = smul.u32 2, %s27
  $region9: #{bbox_loss.1} parent=0 // pred_fallthru
    _
  %s29 = sadd.s32 0, 0
  %s30 = smul.u32 2, %s29
  %p31 = scmp.lt.s32.totalorder %s30, 1
  %s32 = scalar_select %p31, %s30, 1
  %s33 = smul.addr %s32, 8
  %s34 = scalar_lea.vmem %s0, %s33
  %s35 = sadd.s32 0, 0
  %s36 = smul.u32 2, %s35
  %p37 = scmp.lt.s32.totalorder %s36, 1
  %s38 = scalar_select %p37, %s36, 1
  %s39 = smul.addr %s38, 4
  %s40 = scalar_lea.vmem %s1, %s39
  %s41 = sadd.s32 0, 0
  %s42 = smul.u32 2, %s41
  %p43 = scmp.lt.s32.totalorder %s42, 1
  %s44 = scalar_select %p43, %s42, 1
  %s45 = smul.addr %s44, 8
  %s46 = scalar_lea.vmem %s0, %s45
  %s47 = sadd.s32 0, 0
  %s48 = smul.u32 2, %s47
  %s49 = sadd.s32 0, 0
  %s50 = smul.u32 2, %s49
  %p51 = scmp.lt.s32.totalorder %s50, 1
  %s52 = scalar_select %p51, %s50, 1
  %s53 = smul.addr %s52, 4
  %s54 = scalar_lea.vmem %s1, %s53
  %s55 = sadd.s32 0, 0
  %s56 = smul.u32 2, %s55
  %p57 = scmp.eq.s32.totalorder 0, 0
  // Predicated region
  $region10: #{bbox_loss.1} parent=0 // pred_check
    %p58 = pneg %p57
  $region11: #{bbox_loss.1} parent=0 // pred_check_branch
    %60 = sbr.rel (%p58) target = $region13
  $region12: #{bbox_loss.1} parent=0 // pred_region
    %61 = vst [vmem:[#allocation2] sm:$0xff] 0.0
    %62 = vst [vmem:[#allocation2 + $0x8] sm:$0xff] 0.0
    %63 = vst [vmem:[#allocation2 + $0x10] sm:$0xff] 0.0
    %64 = vst [vmem:[#allocation2 + $0x18] sm:$0xff] 0.0
  $region13: #{bbox_loss.1} parent=0 // pred_fallthru
    _
  %v65 = vld [vmem:[%s46] sm:$0xff]
  %v66 = vld [vmem:[%s46 + $0x8] sm:$0xff]
  %s67 = scalar_lea.vmem %s46, 16
  %v68 = vld [vmem:[%s67] sm:$0xff]
  %v69 = vld [vmem:[%s67 + $0x8] sm:$0xff]
  %s70 = scalar_lea.vmem %s46, 32
  %v71 = vld [vmem:[%s70] sm:$0xff]
  %v72 = vld [vmem:[%s70 + $0x8] sm:$0xff]
  %s73 = scalar_lea.vmem %s46, 48
  %v74 = vld [vmem:[%s73] sm:$0xff]
  %v75 = vld [vmem:[%s73 + $0x8] sm:$0xff]
  %s76 = scalar_lea.vmem %s46, 64
  %v77 = vld [vmem:[%s76] sm:$0xff]
  %v78 = vld [vmem:[%s76 + $0x8] sm:$0xff]
  %s79 = scalar_lea.vmem %s46, 80
  %v80 = vld [vmem:[%s79] sm:$0xff]
  %v81 = vld [vmem:[%s79 + $0x8] sm:$0xff]
  %s82 = scalar_lea.vmem %s46, 96
  %v83 = vld [vmem:[%s82] sm:$0xff]
  %v84 = vld [vmem:[%s82 + $0x8] sm:$0xff]
  %s85 = scalar_lea.vmem %s46, 112
  %v86 = vld [vmem:[%s85] sm:$0xff]
  %v87 = vld [vmem:[%s85 + $0x8] sm:$0xff]
  %s88 = scalar_lea.vmem %s46, 128
  %v89 = vld [vmem:[%s88] sm:$0xff]
  %v90 = vld [vmem:[%s88 + $0x8] sm:$0xff]
  %s91 = scalar_lea.vmem %s46, 144
  %v92 = vld [vmem:[%s91] sm:$0xff]
  %v93 = vld [vmem:[%s91 + $0x8] sm:$0xff]
  %s94 = scalar_lea.vmem %s46, 160
  %v95 = vld [vmem:[%s94] sm:$0xff]
  %v96 = vld [vmem:[%s94 + $0x8] sm:$0xff]
  %vm97 = vcmp.gt.f32.partialorder %v95, 0.0
  %vm98 = vcmp.gt.f32.partialorder %v96, 0.0
  %v99 = vsub.f32 %v71, %v65
  %v100 = vsub.f32 %v72, %v66
  %v101 = vsub.f32 %v74, %v68
  %v102 = vsub.f32 %v75, %v69
  %v103 = vadd.f32 %v101, 1e-07
  %v104 = vadd.f32 %v102, 1e-07
  %v105 = vsub.f32 %v83, %v77
  %v106 = vsub.f32 %v84, %v78
  %v107 = vsub.f32 %v86, %v80
  %v108 = vsub.f32 %v87, %v81
  %v109 = vadd.f32 %v107, 1e-07
  %v110 = vadd.f32 %v108, 1e-07
  %v111 = vmin.f32 %v71, %v83
  %v112 = vmin.f32 %v72, %v84
  %v113 = vmax.f32 %v65, %v77
  %v114 = vmax.f32 %v66, %v78
  %v115 = vsub.f32 %v111, %v113
  %v116 = vsub.f32 %v112, %v114
  %v117 = vmax.f32 %v115, 0.0
  %v118 = vmax.f32 %v116, 0.0
  %v119 = vmin.f32 %v74, %v86
  %v120 = vmin.f32 %v75, %v87
  %v121 = vmax.f32 %v68, %v80
  %v122 = vmax.f32 %v69, %v81
  %v123 = vsub.f32 %v119, %v121
  %v124 = vsub.f32 %v120, %v122
  %v125 = vmax.f32 %v123, 0.0
  %v126 = vmax.f32 %v124, 0.0
  %v127 = vmul.f32 %v117, %v125
  %v128 = vmul.f32 %v118, %v126
  %v129 = vmul.f32 %v99, %v103
  %v130 = vmul.f32 %v100, %v104
  %v131 = vmul.f32 %v105, %v109
  %v132 = vmul.f32 %v106, %v110
  %v133 = vadd.f32 %v129, %v131
  %v134 = vadd.f32 %v130, %v132
  %v135 = vsub.f32 %v133, %v127
  %v136 = vsub.f32 %v134, %v128
  %v137 = vadd.f32 %v135, 1e-07
  %v138 = vadd.f32 %v136, 1e-07
  %v139 = vrcp.pop %v137
  %v140 = vrcp.pop %v138
  %v141 = vmul.f32 %v127, %v139
  %v142 = vmul.f32 %v128, %v140
  %v143 = vmax.f32 %v71, %v83
  %v144 = vmax.f32 %v72, %v84
  %v145 = vmin.f32 %v65, %v77
  %v146 = vmin.f32 %v66, %v78
  %v147 = vsub.f32 %v143, %v145
  %v148 = vsub.f32 %v144, %v146
  %v149 = vmax.f32 %v74, %v86
  %v150 = vmax.f32 %v75, %v87
  %v151 = vmin.f32 %v68, %v80
  %v152 = vmin.f32 %v69, %v81
  %v153 = vsub.f32 %v149, %v151
  %v154 = vsub.f32 %v150, %v152
  %v155 = vmul.f32 %v147, %v147
  %v156 = vmul.f32 %v148, %v148
  %v157 = vmul.f32 %v153, %v153
  %v158 = vmul.f32 %v154, %v154
  %v159 = vadd.f32 %v155, %v157
  %v160 = vadd.f32 %v156, %v158
  %v161 = vadd.f32 %v159, 1e-07
  %v162 = vadd.f32 %v160, 1e-07
  %v163 = vadd.f32 %v77, %v83
  %v164 = vadd.f32 %v78, %v84
  %v165 = vsub.f32 %v163, %v65
  %v166 = vsub.f32 %v164, %v66
  %v167 = vsub.f32 %v165, %v71
  %v168 = vsub.f32 %v166, %v72
  %v169 = vmul.f32 %v167, %v167
  %v170 = vmul.f32 %v168, %v168
  %v171 = vadd.f32 %v80, %v86
  %v172 = vadd.f32 %v81, %v87
  %v173 = vsub.f32 %v171, %v68
  %v174 = vsub.f32 %v172, %v69
  %v175 = vsub.f32 %v173, %v74
  %v176 = vsub.f32 %v174, %v75
  %v177 = vmul.f32 %v175, %v175
  %v178 = vmul.f32 %v176, %v176
  %v179 = vadd.f32 %v169, %v177
  %v180 = vadd.f32 %v170, %v178
  %v181 = vmul.f32 %v179, 0.25
  %v182 = vmul.f32 %v180, 0.25
  %v183 = vmul.f32 %v105, %v103
  %v184 = vmul.f32 %v106, %v104
  %v185 = vmul.f32 %v99, %v109
  %v186 = vmul.f32 %v100, %v110
  %v187 = vsub.f32 %v183, %v185
  %v188 = vsub.f32 %v184, %v186
  %v189 = vmul.f32 %v103, %v109
  %v190 = vmul.f32 %v104, %v110
  %v191 = vmul.f32 %v99, %v105
  %v192 = vmul.f32 %v100, %v106
  %v193 = vadd.f32 %v189, %v191
  %v194 = vadd.f32 %v190, %v192
  %v195 = vand.u32 2147483647, %v187
  %v196 = vand.u32 2147483647, %v188
  %v197 = vrcp.pop %v193
  %v198 = vmul.f32 %v193, %v197
  %v199 = vsub.f32 1.0, %v198
  %v200 = vmul.f32 %v197, %v199
  %v201 = vadd.f32 %v197, %v200
  %vm202 = vweird.f32 %v193
  %vm203 = vweird.f32 %v197
  %vm204 = vmor %vm202, %vm203
  %v205 = vsel %vm204, %v197, %v201
  %v206 = vand.u32 2147483647, %v193
  %vm207 = vcmp.eq.f32.partialorder %v206, 8.507059e+37
  %v208 = vand.u32 %v193, 2147483648
  %v209 = vor.u32 1.1754944e-38, %v208
  %v210 = vsel %vm207, %v209, %v205
  %v211 = vmul.f32 %v195, %v210
  %v212 = vrcp.pop %v194
  %v213 = vmul.f32 %v194, %v212
  %v214 = vsub.f32 1.0, %v213
  %v215 = vmul.f32 %v212, %v214
  %v216 = vadd.f32 %v212, %v215
  %vm217 = vweird.f32 %v194
  %vm218 = vweird.f32 %v212
  %vm219 = vmor %vm217, %vm218
  %v220 = vsel %vm219, %v212, %v216
  %v221 = vand.u32 2147483647, %v194
  %vm222 = vcmp.eq.f32.partialorder %v221, 8.507059e+37
  %v223 = vand.u32 %v194, 2147483648
  %v224 = vor.u32 1.1754944e-38, %v223
  %v225 = vsel %vm222, %v224, %v220
  %v226 = vmul.f32 %v196, %v225
  %vm227 = vcmp.gt.f32.partialorder %v211, 1.0
  %vm228 = vcmp.gt.f32.partialorder %v226, 1.0
  %v229 = vmax.f32 %v211, 1.0
  %v230 = vmax.f32 %v226, 1.0
  %v231 = vrcp.pop %v229
  %v232 = vmul.f32 %v229, %v231
  %v233 = vsub.f32 1.0, %v232
  %v234 = vmul.f32 %v231, %v233
  %v235 = vadd.f32 %v231, %v234
  %vm236 = vweird.f32 %v229
  %vm237 = vweird.f32 %v231
  %vm238 = vmor %vm236, %vm237
  %v239 = vsel %vm238, %v231, %v235
  %v240 = vand.u32 2147483647, %v229
  %vm241 = vcmp.eq.f32.partialorder %v240, 8.507059e+37
  %v242 = vand.u32 %v229, 2147483648
  %v243 = vor.u32 1.1754944e-38, %v242
  %v244 = vsel %vm241, %v243, %v239
  %v245 = vmul.f32 1.0, %v244
  %v246 = vrcp.pop %v230
  %v247 = vmul.f32 %v230, %v246
  %v248 = vsub.f32 1.0, %v247
  %v249 = vmul.f32 %v246, %v248
  %v250 = vadd.f32 %v246, %v249
  %vm251 = vweird.f32 %v230
  %vm252 = vweird.f32 %v246
  %vm253 = vmor %vm251, %vm252
  %v254 = vsel %vm253, %v246, %v250
  %v255 = vand.u32 2147483647, %v230
  %vm256 = vcmp.eq.f32.partialorder %v255, 8.507059e+37
  %v257 = vand.u32 %v230, 2147483648
  %v258 = vor.u32 1.1754944e-38, %v257
  %v259 = vsel %vm256, %v258, %v254
  %v260 = vmul.f32 1.0, %v259
  %v261 = vsel %vm227, %v245, %v211
  %v262 = vsel %vm228, %v260, %v226
  %v263 = vmul.f32 %v261, %v261
  %v264 = vmul.f32 %v262, %v262
  %v265 = vmul.f32 %v263, 0.0028662258
  %v266 = vmul.f32 %v264, 0.0028662258
  %v267 = vsub.f32 %v265, 0.016165737
  %v268 = vsub.f32 %v266, 0.016165737
  %v269 = vmul.f32 %v267, %v263
  %v270 = vmul.f32 %v268, %v264
  %v271 = vadd.f32 %v269, 0.042909615
  %v272 = vadd.f32 %v270, 0.042909615
  %v273 = vmul.f32 %v271, %v263
  %v274 = vmul.f32 %v272, %v264
  %v275 = vsub.f32 %v273, 0.07528964
  %v276 = vsub.f32 %v274, 0.07528964
  %v277 = vmul.f32 %v275, %v263
  %v278 = vmul.f32 %v276, %v264
  %v279 = vadd.f32 %v277, 0.10656264
  %v280 = vadd.f32 %v278, 0.10656264
  %v281 = vmul.f32 %v279, %v263
  %v282 = vmul.f32 %v280, %v264
  %v283 = vsub.f32 %v281, 0.142089
  %v284 = vsub.f32 %v282, 0.142089
  %v285 = vmul.f32 %v283, %v263
  %v286 = vmul.f32 %v284, %v264
  %v287 = vadd.f32 %v285, 0.19993551
  %v288 = vadd.f32 %v286, 0.19993551
  %v289 = vmul.f32 %v287, %v263
  %v290 = vmul.f32 %v288, %v264
  %v291 = vsub.f32 %v289, 0.33333147
  %v292 = vsub.f32 %v290, 0.33333147
  %v293 = vmul.f32 %v291, %v263
  %v294 = vmul.f32 %v292, %v264
  %v295 = vadd.f32 %v293, 1.0
  %v296 = vadd.f32 %v294, 1.0
  %v297 = vmul.f32 %v261, %v295
  %v298 = vmul.f32 %v262, %v296
  %v299 = vsub.f32 1.5707964, %v297
  %v300 = vsub.f32 1.5707964, %v298
  %v301 = vsel %vm227, %v299, %v297
  %v302 = vsel %vm228, %v300, %v298
  %v303 = vmul.f32 %v301, 0.40528473
  %v304 = vmul.f32 %v302, 0.40528473
  %v305 = vmul.f32 %v303, %v301
  %v306 = vmul.f32 %v304, %v302
  %v307 = vsub.f32 %v305, %v141
  %v308 = vsub.f32 %v306, %v142
  %v309 = vadd.f32 %v307, 1.0000001
  %v310 = vadd.f32 %v308, 1.0000001
  %v311 = vrcp.pop %v309
  %v312 = vrcp.pop %v310
  %v313 = vmul.f32 %v305, %v311
  %v314 = vmul.f32 %v306, %v312
  %v315 = vrcp.pop %v161
  %v316 = vrcp.pop %v162
  %v317 = vmul.f32 %v181, %v315
  %v318 = vmul.f32 %v182, %v316
  %v319 = vmul.f32 %v305, %v313
  %v320 = vmul.f32 %v306, %v314
  %v321 = vadd.f32 %v317, %v319
  %v322 = vadd.f32 %v318, %v320
  %v323 = vsub.f32 %v141, %v321
  %v324 = vsub.f32 %v142, %v322
  %v325 = vsub.f32 1.0, %v323
  %v326 = vsub.f32 1.0, %v324
  %v327 = vmul.f32 %v325, %v95
  %v328 = vmul.f32 %v326, %v96
  %v329 = vsel %vm97, %v327, 0.0
  %v330 = vsel %vm98, %v328, 0.0
  %v331 = vsub.f32 %v89, %v77
  %v332 = vsub.f32 %v90, %v78
  %v333 = vsub.f32 %v92, %v80
  %v334 = vsub.f32 %v93, %v81
  %v335 = vsub.f32 %v83, %v89
  %v336 = vsub.f32 %v84, %v90
  %v337 = vsub.f32 %v86, %v92
  %v338 = vsub.f32 %v87, %v93
  %v339 = vmax.f32 %v331, 0.0
  %v340 = vmax.f32 %v332, 0.0
  %v341 = vmin.f32 %v339, 15.99
  %v342 = vmin.f32 %v340, 15.99
  %v343 = vld [vmem:[%s54] sm:$0xf]
  %v344 = vld [vmem:[%s54 + $0x4] sm:$0xf]
  %v345 = vunpack.c.l.bf16 %v343
  %v346 = vunpack.c.l.bf16 %v344
  %s347 = scalar_lea.vmem %s54, 8
  %v348 = vld [vmem:[%s347] sm:$0xf]
  %v349 = vld [vmem:[%s347 + $0x4] sm:$0xf]
  %v350 = vunpack.c.l.bf16 %v348
  %v351 = vunpack.c.l.bf16 %v349
  %v352 = vmax.f32 %v345, %v350
  %v353 = vmax.f32 %v346, %v351
  %s354 = scalar_lea.vmem %s54, 16
  %v355 = vld [vmem:[%s354] sm:$0xf]
  %v356 = vld [vmem:[%s354 + $0x4] sm:$0xf]
  %v357 = vunpack.c.l.bf16 %v355
  %v358 = vunpack.c.l.bf16 %v356
  %v359 = vmax.f32 %v352, %v357
  %v360 = vmax.f32 %v353, %v358
  %s361 = scalar_lea.vmem %s54, 24
  %v362 = vld [vmem:[%s361] sm:$0xf]
  %v363 = vld [vmem:[%s361 + $0x4] sm:$0xf]
  %v364 = vunpack.c.l.bf16 %v362
  %v365 = vunpack.c.l.bf16 %v363
  %v366 = vmax.f32 %v359, %v364
  %v367 = vmax.f32 %v360, %v365
  %s368 = scalar_lea.vmem %s54, 32
  %v369 = vld [vmem:[%s368] sm:$0xf]
  %v370 = vld [vmem:[%s368 + $0x4] sm:$0xf]
  %v371 = vunpack.c.l.bf16 %v369
  %v372 = vunpack.c.l.bf16 %v370
  %v373 = vmax.f32 %v366, %v371
  %v374 = vmax.f32 %v367, %v372
  %s375 = scalar_lea.vmem %s54, 40
  %v376 = vld [vmem:[%s375] sm:$0xf]
  %v377 = vld [vmem:[%s375 + $0x4] sm:$0xf]
  %v378 = vunpack.c.l.bf16 %v376
  %v379 = vunpack.c.l.bf16 %v377
  %v380 = vmax.f32 %v373, %v378
  %v381 = vmax.f32 %v374, %v379
  %s382 = scalar_lea.vmem %s54, 48
  %v383 = vld [vmem:[%s382] sm:$0xf]
  %v384 = vld [vmem:[%s382 + $0x4] sm:$0xf]
  %v385 = vunpack.c.l.bf16 %v383
  %v386 = vunpack.c.l.bf16 %v384
  %v387 = vmax.f32 %v380, %v385
  %v388 = vmax.f32 %v381, %v386
  %s389 = scalar_lea.vmem %s54, 56
  %v390 = vld [vmem:[%s389] sm:$0xf]
  %v391 = vld [vmem:[%s389 + $0x4] sm:$0xf]
  %v392 = vunpack.c.l.bf16 %v390
  %v393 = vunpack.c.l.bf16 %v391
  %v394 = vmax.f32 %v387, %v392
  %v395 = vmax.f32 %v388, %v393
  %s396 = scalar_lea.vmem %s54, 64
  %v397 = vld [vmem:[%s396] sm:$0xf]
  %v398 = vld [vmem:[%s396 + $0x4] sm:$0xf]
  %v399 = vunpack.c.l.bf16 %v397
  %v400 = vunpack.c.l.bf16 %v398
  %v401 = vmax.f32 %v394, %v399
  %v402 = vmax.f32 %v395, %v400
  %s403 = scalar_lea.vmem %s54, 72
  %v404 = vld [vmem:[%s403] sm:$0xf]
  %v405 = vld [vmem:[%s403 + $0x4] sm:$0xf]
  %v406 = vunpack.c.l.bf16 %v404
  %v407 = vunpack.c.l.bf16 %v405
  %v408 = vmax.f32 %v401, %v406
  %v409 = vmax.f32 %v402, %v407
  %s410 = scalar_lea.vmem %s54, 80
  %v411 = vld [vmem:[%s410] sm:$0xf]
  %v412 = vld [vmem:[%s410 + $0x4] sm:$0xf]
  %v413 = vunpack.c.l.bf16 %v411
  %v414 = vunpack.c.l.bf16 %v412
  %v415 = vmax.f32 %v408, %v413
  %v416 = vmax.f32 %v409, %v414
  %s417 = scalar_lea.vmem %s54, 88
  %v418 = vld [vmem:[%s417] sm:$0xf]
  %v419 = vld [vmem:[%s417 + $0x4] sm:$0xf]
  %v420 = vunpack.c.l.bf16 %v418
  %v421 = vunpack.c.l.bf16 %v419
  %v422 = vmax.f32 %v415, %v420
  %v423 = vmax.f32 %v416, %v421
  %s424 = scalar_lea.vmem %s54, 96
  %v425 = vld [vmem:[%s424] sm:$0xf]
  %v426 = vld [vmem:[%s424 + $0x4] sm:$0xf]
  %v427 = vunpack.c.l.bf16 %v425
  %v428 = vunpack.c.l.bf16 %v426
  %v429 = vmax.f32 %v422, %v427
  %v430 = vmax.f32 %v423, %v428
  %s431 = scalar_lea.vmem %s54, 104
  %v432 = vld [vmem:[%s431] sm:$0xf]
  %v433 = vld [vmem:[%s431 + $0x4] sm:$0xf]
  %v434 = vunpack.c.l.bf16 %v432
  %v435 = vunpack.c.l.bf16 %v433
  %v436 = vmax.f32 %v429, %v434
  %v437 = vmax.f32 %v430, %v435
  %s438 = scalar_lea.vmem %s54, 112
  %v439 = vld [vmem:[%s438] sm:$0xf]
  %v440 = vld [vmem:[%s438 + $0x4] sm:$0xf]
  %v441 = vunpack.c.l.bf16 %v439
  %v442 = vunpack.c.l.bf16 %v440
  %v443 = vmax.f32 %v436, %v441
  %v444 = vmax.f32 %v437, %v442
  %s445 = scalar_lea.vmem %s54, 120
  %v446 = vld [vmem:[%s445] sm:$0xf]
  %v447 = vld [vmem:[%s445 + $0x4] sm:$0xf]
  %v448 = vunpack.c.l.bf16 %v446
  %v449 = vunpack.c.l.bf16 %v447
  %v450 = vmax.f32 %v443, %v448
  %v451 = vmax.f32 %v444, %v449
  %s452 = scalar_lea.vmem %s54, 128
  %v453 = vld [vmem:[%s452] sm:$0xf]
  %v454 = vld [vmem:[%s452 + $0x4] sm:$0xf]
  %v455 = vunpack.c.l.bf16 %v453
  %v456 = vunpack.c.l.bf16 %v454
  %v457 = vmax.f32 %v450, %v455
  %v458 = vmax.f32 %v451, %v456
  %v459 = vsub.f32 %v345, %v457
  %v460 = vsub.f32 %v346, %v458
  %v461 = vmul.f32 %v459, 1.442695
  %v462 = vpow.pop %v461
  %v463 = vmul.f32 %v460, 1.442695
  %v464 = vpow.pop %v463
  %v465 = vadd.f32 %v462, 0.0
  %v466 = vadd.f32 %v464, 0.0
  %v467 = vand.u32 2147483647, %v341
  %v468 = vand.u32 2147483647, %v342
  %v469 = vsub.f32 1.0, %v467
  %v470 = vsub.f32 1.0, %v468
  %v471 = vmax.f32 %v469, 0.0
  %v472 = vmax.f32 %v470, 0.0
  %v473 = vmul.f32 %v345, %v471
  %v474 = vmul.f32 %v346, %v472
  %v475 = vadd.f32 %v473, 0.0
  %v476 = vadd.f32 %v474, 0.0
  %v477 = vsub.f32 %v350, %v457
  %v478 = vsub.f32 %v351, %v458
  %v479 = vmul.f32 %v477, 1.442695
  %v480 = vpow.pop %v479
  %v481 = vmul.f32 %v478, 1.442695
  %v482 = vpow.pop %v481
  %v483 = vadd.f32 %v465, %v480
  %v484 = vadd.f32 %v466, %v482
  %v485 = vsub.f32 %v341, 1.0
  %v486 = vsub.f32 %v342, 1.0
  %v487 = vand.u32 2147483647, %v485
  %v488 = vand.u32 2147483647, %v486
  %v489 = vsub.f32 1.0, %v487
  %v490 = vsub.f32 1.0, %v488
  %v491 = vmax.f32 %v489, 0.0
  %v492 = vmax.f32 %v490, 0.0
  %v493 = vmul.f32 %v350, %v491
  %v494 = vmul.f32 %v351, %v492
  %v495 = vadd.f32 %v475, %v493
  %v496 = vadd.f32 %v476, %v494
  %v497 = vsub.f32 %v357, %v457
  %v498 = vsub.f32 %v358, %v458
  %v499 = vmul.f32 %v497, 1.442695
  %v500 = vpow.pop %v499
  %v501 = vmul.f32 %v498, 1.442695
  %v502 = vpow.pop %v501
  %v503 = vadd.f32 %v483, %v500
  %v504 = vadd.f32 %v484, %v502
  %v505 = vsub.f32 %v341, 2.0
  %v506 = vsub.f32 %v342, 2.0
  %v507 = vand.u32 2147483647, %v505
  %v508 = vand.u32 2147483647, %v506
  %v509 = vsub.f32 1.0, %v507
  %v510 = vsub.f32 1.0, %v508
  %v511 = vmax.f32 %v509, 0.0
  %v512 = vmax.f32 %v510, 0.0
  %v513 = vmul.f32 %v357, %v511
  %v514 = vmul.f32 %v358, %v512
  %v515 = vadd.f32 %v495, %v513
  %v516 = vadd.f32 %v496, %v514
  %v517 = vsub.f32 %v364, %v457
  %v518 = vsub.f32 %v365, %v458
  %v519 = vmul.f32 %v517, 1.442695
  %v520 = vpow.pop %v519
  %v521 = vmul.f32 %v518, 1.442695
  %v522 = vpow.pop %v521
  %v523 = vadd.f32 %v503, %v520
  %v524 = vadd.f32 %v504, %v522
  %v525 = vsub.f32 %v341, 3.0
  %v526 = vsub.f32 %v342, 3.0
  %v527 = vand.u32 2147483647, %v525
  %v528 = vand.u32 2147483647, %v526
  %v529 = vsub.f32 1.0, %v527
  %v530 = vsub.f32 1.0, %v528
  %v531 = vmax.f32 %v529, 0.0
  %v532 = vmax.f32 %v530, 0.0
  %v533 = vmul.f32 %v364, %v531
  %v534 = vmul.f32 %v365, %v532
  %v535 = vadd.f32 %v515, %v533
  %v536 = vadd.f32 %v516, %v534
  %v537 = vsub.f32 %v371, %v457
  %v538 = vsub.f32 %v372, %v458
  %v539 = vmul.f32 %v537, 1.442695
  %v540 = vpow.pop %v539
  %v541 = vmul.f32 %v538, 1.442695
  %v542 = vpow.pop %v541
  %v543 = vadd.f32 %v523, %v540
  %v544 = vadd.f32 %v524, %v542
  %v545 = vsub.f32 %v341, 4.0
  %v546 = vsub.f32 %v342, 4.0
  %v547 = vand.u32 2147483647, %v545
  %v548 = vand.u32 2147483647, %v546
  %v549 = vsub.f32 1.0, %v547
  %v550 = vsub.f32 1.0, %v548
  %v551 = vmax.f32 %v549, 0.0
  %v552 = vmax.f32 %v550, 0.0
  %v553 = vmul.f32 %v371, %v551
  %v554 = vmul.f32 %v372, %v552
  %v555 = vadd.f32 %v535, %v553
  %v556 = vadd.f32 %v536, %v554
  %v557 = vsub.f32 %v378, %v457
  %v558 = vsub.f32 %v379, %v458
  %v559 = vmul.f32 %v557, 1.442695
  %v560 = vpow.pop %v559
  %v561 = vmul.f32 %v558, 1.442695
  %v562 = vpow.pop %v561
  %v563 = vadd.f32 %v543, %v560
  %v564 = vadd.f32 %v544, %v562
  %v565 = vsub.f32 %v341, 5.0
  %v566 = vsub.f32 %v342, 5.0
  %v567 = vand.u32 2147483647, %v565
  %v568 = vand.u32 2147483647, %v566
  %v569 = vsub.f32 1.0, %v567
  %v570 = vsub.f32 1.0, %v568
  %v571 = vmax.f32 %v569, 0.0
  %v572 = vmax.f32 %v570, 0.0
  %v573 = vmul.f32 %v378, %v571
  %v574 = vmul.f32 %v379, %v572
  %v575 = vadd.f32 %v555, %v573
  %v576 = vadd.f32 %v556, %v574
  %v577 = vsub.f32 %v385, %v457
  %v578 = vsub.f32 %v386, %v458
  %v579 = vmul.f32 %v577, 1.442695
  %v580 = vpow.pop %v579
  %v581 = vmul.f32 %v578, 1.442695
  %v582 = vpow.pop %v581
  %v583 = vadd.f32 %v563, %v580
  %v584 = vadd.f32 %v564, %v582
  %v585 = vsub.f32 %v341, 6.0
  %v586 = vsub.f32 %v342, 6.0
  %v587 = vand.u32 2147483647, %v585
  %v588 = vand.u32 2147483647, %v586
  %v589 = vsub.f32 1.0, %v587
  %v590 = vsub.f32 1.0, %v588
  %v591 = vmax.f32 %v589, 0.0
  %v592 = vmax.f32 %v590, 0.0
  %v593 = vmul.f32 %v385, %v591
  %v594 = vmul.f32 %v386, %v592
  %v595 = vadd.f32 %v575, %v593
  %v596 = vadd.f32 %v576, %v594
  %v597 = vsub.f32 %v392, %v457
  %v598 = vsub.f32 %v393, %v458
  %v599 = vmul.f32 %v597, 1.442695
  %v600 = vpow.pop %v599
  %v601 = vmul.f32 %v598, 1.442695
  %v602 = vpow.pop %v601
  %v603 = vadd.f32 %v583, %v600
  %v604 = vadd.f32 %v584, %v602
  %v605 = vsub.f32 %v341, 7.0
  %v606 = vsub.f32 %v342, 7.0
  %v607 = vand.u32 2147483647, %v605
  %v608 = vand.u32 2147483647, %v606
  %v609 = vsub.f32 1.0, %v607
  %v610 = vsub.f32 1.0, %v608
  %v611 = vmax.f32 %v609, 0.0
  %v612 = vmax.f32 %v610, 0.0
  %v613 = vmul.f32 %v392, %v611
  %v614 = vmul.f32 %v393, %v612
  %v615 = vadd.f32 %v595, %v613
  %v616 = vadd.f32 %v596, %v614
  %v617 = vsub.f32 %v399, %v457
  %v618 = vsub.f32 %v400, %v458
  %v619 = vmul.f32 %v617, 1.442695
  %v620 = vpow.pop %v619
  %v621 = vmul.f32 %v618, 1.442695
  %v622 = vpow.pop %v621
  %v623 = vadd.f32 %v603, %v620
  %v624 = vadd.f32 %v604, %v622
  %v625 = vsub.f32 %v341, 8.0
  %v626 = vsub.f32 %v342, 8.0
  %v627 = vand.u32 2147483647, %v625
  %v628 = vand.u32 2147483647, %v626
  %v629 = vsub.f32 1.0, %v627
  %v630 = vsub.f32 1.0, %v628
  %v631 = vmax.f32 %v629, 0.0
  %v632 = vmax.f32 %v630, 0.0
  %v633 = vmul.f32 %v399, %v631
  %v634 = vmul.f32 %v400, %v632
  %v635 = vadd.f32 %v615, %v633
  %v636 = vadd.f32 %v616, %v634
  %v637 = vsub.f32 %v406, %v457
  %v638 = vsub.f32 %v407, %v458
  %v639 = vmul.f32 %v637, 1.442695
  %v640 = vpow.pop %v639
  %v641 = vmul.f32 %v638, 1.442695
  %v642 = vpow.pop %v641
  %v643 = vadd.f32 %v623, %v640
  %v644 = vadd.f32 %v624, %v642
  %v645 = vsub.f32 %v341, 9.0
  %v646 = vsub.f32 %v342, 9.0
  %v647 = vand.u32 2147483647, %v645
  %v648 = vand.u32 2147483647, %v646
  %v649 = vsub.f32 1.0, %v647
  %v650 = vsub.f32 1.0, %v648
  %v651 = vmax.f32 %v649, 0.0
  %v652 = vmax.f32 %v650, 0.0
  %v653 = vmul.f32 %v406, %v651
  %v654 = vmul.f32 %v407, %v652
  %v655 = vadd.f32 %v635, %v653
  %v656 = vadd.f32 %v636, %v654
  %v657 = vsub.f32 %v413, %v457
  %v658 = vsub.f32 %v414, %v458
  %v659 = vmul.f32 %v657, 1.442695
  %v660 = vpow.pop %v659
  %v661 = vmul.f32 %v658, 1.442695
  %v662 = vpow.pop %v661
  %v663 = vadd.f32 %v643, %v660
  %v664 = vadd.f32 %v644, %v662
  %v665 = vsub.f32 %v341, 10.0
  %v666 = vsub.f32 %v342, 10.0
  %v667 = vand.u32 2147483647, %v665
  %v668 = vand.u32 2147483647, %v666
  %v669 = vsub.f32 1.0, %v667
  %v670 = vsub.f32 1.0, %v668
  %v671 = vmax.f32 %v669, 0.0
  %v672 = vmax.f32 %v670, 0.0
  %v673 = vmul.f32 %v413, %v671
  %v674 = vmul.f32 %v414, %v672
  %v675 = vadd.f32 %v655, %v673
  %v676 = vadd.f32 %v656, %v674
  %v677 = vsub.f32 %v420, %v457
  %v678 = vsub.f32 %v421, %v458
  %v679 = vmul.f32 %v677, 1.442695
  %v680 = vpow.pop %v679
  %v681 = vmul.f32 %v678, 1.442695
  %v682 = vpow.pop %v681
  %v683 = vadd.f32 %v663, %v680
  %v684 = vadd.f32 %v664, %v682
  %v685 = vsub.f32 %v341, 11.0
  %v686 = vsub.f32 %v342, 11.0
  %v687 = vand.u32 2147483647, %v685
  %v688 = vand.u32 2147483647, %v686
  %v689 = vsub.f32 1.0, %v687
  %v690 = vsub.f32 1.0, %v688
  %v691 = vmax.f32 %v689, 0.0
  %v692 = vmax.f32 %v690, 0.0
  %v693 = vmul.f32 %v420, %v691
  %v694 = vmul.f32 %v421, %v692
  %v695 = vadd.f32 %v675, %v693
  %v696 = vadd.f32 %v676, %v694
  %v697 = vsub.f32 %v427, %v457
  %v698 = vsub.f32 %v428, %v458
  %v699 = vmul.f32 %v697, 1.442695
  %v700 = vpow.pop %v699
  %v701 = vmul.f32 %v698, 1.442695
  %v702 = vpow.pop %v701
  %v703 = vadd.f32 %v683, %v700
  %v704 = vadd.f32 %v684, %v702
  %v705 = vsub.f32 %v341, 12.0
  %v706 = vsub.f32 %v342, 12.0
  %v707 = vand.u32 2147483647, %v705
  %v708 = vand.u32 2147483647, %v706
  %v709 = vsub.f32 1.0, %v707
  %v710 = vsub.f32 1.0, %v708
  %v711 = vmax.f32 %v709, 0.0
  %v712 = vmax.f32 %v710, 0.0
  %v713 = vmul.f32 %v427, %v711
  %v714 = vmul.f32 %v428, %v712
  %v715 = vadd.f32 %v695, %v713
  %v716 = vadd.f32 %v696, %v714
  %v717 = vsub.f32 %v434, %v457
  %v718 = vsub.f32 %v435, %v458
  %v719 = vmul.f32 %v717, 1.442695
  %v720 = vpow.pop %v719
  %v721 = vmul.f32 %v718, 1.442695
  %v722 = vpow.pop %v721
  %v723 = vadd.f32 %v703, %v720
  %v724 = vadd.f32 %v704, %v722
  %v725 = vsub.f32 %v341, 13.0
  %v726 = vsub.f32 %v342, 13.0
  %v727 = vand.u32 2147483647, %v725
  %v728 = vand.u32 2147483647, %v726
  %v729 = vsub.f32 1.0, %v727
  %v730 = vsub.f32 1.0, %v728
  %v731 = vmax.f32 %v729, 0.0
  %v732 = vmax.f32 %v730, 0.0
  %v733 = vmul.f32 %v434, %v731
  %v734 = vmul.f32 %v435, %v732
  %v735 = vadd.f32 %v715, %v733
  %v736 = vadd.f32 %v716, %v734
  %v737 = vsub.f32 %v441, %v457
  %v738 = vsub.f32 %v442, %v458
  %v739 = vmul.f32 %v737, 1.442695
  %v740 = vpow.pop %v739
  %v741 = vmul.f32 %v738, 1.442695
  %v742 = vpow.pop %v741
  %v743 = vadd.f32 %v723, %v740
  %v744 = vadd.f32 %v724, %v742
  %v745 = vsub.f32 %v341, 14.0
  %v746 = vsub.f32 %v342, 14.0
  %v747 = vand.u32 2147483647, %v745
  %v748 = vand.u32 2147483647, %v746
  %v749 = vsub.f32 1.0, %v747
  %v750 = vsub.f32 1.0, %v748
  %v751 = vmax.f32 %v749, 0.0
  %v752 = vmax.f32 %v750, 0.0
  %v753 = vmul.f32 %v441, %v751
  %v754 = vmul.f32 %v442, %v752
  %v755 = vadd.f32 %v735, %v753
  %v756 = vadd.f32 %v736, %v754
  %v757 = vsub.f32 %v448, %v457
  %v758 = vsub.f32 %v449, %v458
  %v759 = vmul.f32 %v757, 1.442695
  %v760 = vpow.pop %v759
  %v761 = vmul.f32 %v758, 1.442695
  %v762 = vpow.pop %v761
  %v763 = vadd.f32 %v743, %v760
  %v764 = vadd.f32 %v744, %v762
  %v765 = vsub.f32 %v341, 15.0
  %v766 = vsub.f32 %v342, 15.0
  %v767 = vand.u32 2147483647, %v765
  %v768 = vand.u32 2147483647, %v766
  %v769 = vsub.f32 1.0, %v767
  %v770 = vsub.f32 1.0, %v768
  %v771 = vmax.f32 %v769, 0.0
  %v772 = vmax.f32 %v770, 0.0
  %v773 = vmul.f32 %v448, %v771
  %v774 = vmul.f32 %v449, %v772
  %v775 = vadd.f32 %v755, %v773
  %v776 = vadd.f32 %v756, %v774
  %v777 = vsub.f32 %v455, %v457
  %v778 = vsub.f32 %v456, %v458
  %v779 = vmul.f32 %v777, 1.442695
  %v780 = vpow.pop %v779
  %v781 = vmul.f32 %v778, 1.442695
  %v782 = vpow.pop %v781
  %v783 = vadd.f32 %v763, %v780
  %v784 = vadd.f32 %v764, %v782
  %v785 = vsub.f32 %v341, 16.0
  %v786 = vsub.f32 %v342, 16.0
  %v787 = vand.u32 2147483647, %v785
  %v788 = vand.u32 2147483647, %v786
  %v789 = vsub.f32 1.0, %v787
  %v790 = vsub.f32 1.0, %v788
  %v791 = vmax.f32 %v789, 0.0
  %v792 = vmax.f32 %v790, 0.0
  %v793 = vmul.f32 %v455, %v791
  %v794 = vmul.f32 %v456, %v792
  %v795 = vadd.f32 %v775, %v793
  %v796 = vadd.f32 %v776, %v794
  %v797 = vlog2.pop %v783
  %v798 = vmul.f32 %v797, 0.6931472
  %v799 = vlog2.pop %v784
  %v800 = vmul.f32 %v799, 0.6931472
  %v801 = vadd.f32 %v457, %v798
  %v802 = vadd.f32 %v458, %v800
  %v803 = vsub.f32 %v801, %v795
  %v804 = vsub.f32 %v802, %v796
  %v805 = vadd.f32 %v803, 0.0
  %v806 = vadd.f32 %v804, 0.0
  %v807 = vmax.f32 %v333, 0.0
  %v808 = vmax.f32 %v334, 0.0
  %v809 = vmin.f32 %v807, 15.99
  %v810 = vmin.f32 %v808, 15.99
  %s811 = scalar_lea.vmem %s54, 136
  %v812 = vld [vmem:[%s811] sm:$0xf]
  %v813 = vld [vmem:[%s811 + $0x4] sm:$0xf]
  %v814 = vunpack.c.l.bf16 %v812
  %v815 = vunpack.c.l.bf16 %v813
  %s816 = scalar_lea.vmem %s54, 144
  %v817 = vld [vmem:[%s816] sm:$0xf]
  %v818 = vld [vmem:[%s816 + $0x4] sm:$0xf]
  %v819 = vunpack.c.l.bf16 %v817
  %v820 = vunpack.c.l.bf16 %v818
  %v821 = vmax.f32 %v814, %v819
  %v822 = vmax.f32 %v815, %v820
  %s823 = scalar_lea.vmem %s54, 152
  %v824 = vld [vmem:[%s823] sm:$0xf]
  %v825 = vld [vmem:[%s823 + $0x4] sm:$0xf]
  %v826 = vunpack.c.l.bf16 %v824
  %v827 = vunpack.c.l.bf16 %v825
  %v828 = vmax.f32 %v821, %v826
  %v829 = vmax.f32 %v822, %v827
  %s830 = scalar_lea.vmem %s54, 160
  %v831 = vld [vmem:[%s830] sm:$0xf]
  %v832 = vld [vmem:[%s830 + $0x4] sm:$0xf]
  %v833 = vunpack.c.l.bf16 %v831
  %v834 = vunpack.c.l.bf16 %v832
  %v835 = vmax.f32 %v828, %v833
  %v836 = vmax.f32 %v829, %v834
  %s837 = scalar_lea.vmem %s54, 168
  %v838 = vld [vmem:[%s837] sm:$0xf]
  %v839 = vld [vmem:[%s837 + $0x4] sm:$0xf]
  %v840 = vunpack.c.l.bf16 %v838
  %v841 = vunpack.c.l.bf16 %v839
  %v842 = vmax.f32 %v835, %v840
  %v843 = vmax.f32 %v836, %v841
  %s844 = scalar_lea.vmem %s54, 176
  %v845 = vld [vmem:[%s844] sm:$0xf]
  %v846 = vld [vmem:[%s844 + $0x4] sm:$0xf]
  %v847 = vunpack.c.l.bf16 %v845
  %v848 = vunpack.c.l.bf16 %v846
  %v849 = vmax.f32 %v842, %v847
  %v850 = vmax.f32 %v843, %v848
  %s851 = scalar_lea.vmem %s54, 184
  %v852 = vld [vmem:[%s851] sm:$0xf]
  %v853 = vld [vmem:[%s851 + $0x4] sm:$0xf]
  %v854 = vunpack.c.l.bf16 %v852
  %v855 = vunpack.c.l.bf16 %v853
  %v856 = vmax.f32 %v849, %v854
  %v857 = vmax.f32 %v850, %v855
  %s858 = scalar_lea.vmem %s54, 192
  %v859 = vld [vmem:[%s858] sm:$0xf]
  %v860 = vld [vmem:[%s858 + $0x4] sm:$0xf]
  %v861 = vunpack.c.l.bf16 %v859
  %v862 = vunpack.c.l.bf16 %v860
  %v863 = vmax.f32 %v856, %v861
  %v864 = vmax.f32 %v857, %v862
  %s865 = scalar_lea.vmem %s54, 200
  %v866 = vld [vmem:[%s865] sm:$0xf]
  %v867 = vld [vmem:[%s865 + $0x4] sm:$0xf]
  %v868 = vunpack.c.l.bf16 %v866
  %v869 = vunpack.c.l.bf16 %v867
  %v870 = vmax.f32 %v863, %v868
  %v871 = vmax.f32 %v864, %v869
  %s872 = scalar_lea.vmem %s54, 208
  %v873 = vld [vmem:[%s872] sm:$0xf]
  %v874 = vld [vmem:[%s872 + $0x4] sm:$0xf]
  %v875 = vunpack.c.l.bf16 %v873
  %v876 = vunpack.c.l.bf16 %v874
  %v877 = vmax.f32 %v870, %v875
  %v878 = vmax.f32 %v871, %v876
  %s879 = scalar_lea.vmem %s54, 216
  %v880 = vld [vmem:[%s879] sm:$0xf]
  %v881 = vld [vmem:[%s879 + $0x4] sm:$0xf]
  %v882 = vunpack.c.l.bf16 %v880
  %v883 = vunpack.c.l.bf16 %v881
  %v884 = vmax.f32 %v877, %v882
  %v885 = vmax.f32 %v878, %v883
  %s886 = scalar_lea.vmem %s54, 224
  %v887 = vld [vmem:[%s886] sm:$0xf]
  %v888 = vld [vmem:[%s886 + $0x4] sm:$0xf]
  %v889 = vunpack.c.l.bf16 %v887
  %v890 = vunpack.c.l.bf16 %v888
  %v891 = vmax.f32 %v884, %v889
  %v892 = vmax.f32 %v885, %v890
  %s893 = scalar_lea.vmem %s54, 232
  %v894 = vld [vmem:[%s893] sm:$0xf]
  %v895 = vld [vmem:[%s893 + $0x4] sm:$0xf]
  %v896 = vunpack.c.l.bf16 %v894
  %v897 = vunpack.c.l.bf16 %v895
  %v898 = vmax.f32 %v891, %v896
  %v899 = vmax.f32 %v892, %v897
  %s900 = scalar_lea.vmem %s54, 240
  %v901 = vld [vmem:[%s900] sm:$0xf]
  %v902 = vld [vmem:[%s900 + $0x4] sm:$0xf]
  %v903 = vunpack.c.l.bf16 %v901
  %v904 = vunpack.c.l.bf16 %v902
  %v905 = vmax.f32 %v898, %v903
  %v906 = vmax.f32 %v899, %v904
  %s907 = scalar_lea.vmem %s54, 248
  %v908 = vld [vmem:[%s907] sm:$0xf]
  %v909 = vld [vmem:[%s907 + $0x4] sm:$0xf]
  %v910 = vunpack.c.l.bf16 %v908
  %v911 = vunpack.c.l.bf16 %v909
  %v912 = vmax.f32 %v905, %v910
  %v913 = vmax.f32 %v906, %v911
  %s914 = scalar_lea.vmem %s54, 256
  %v915 = vld [vmem:[%s914] sm:$0xf]
  %v916 = vld [vmem:[%s914 + $0x4] sm:$0xf]
  %v917 = vunpack.c.l.bf16 %v915
  %v918 = vunpack.c.l.bf16 %v916
  %v919 = vmax.f32 %v912, %v917
  %v920 = vmax.f32 %v913, %v918
  %s921 = scalar_lea.vmem %s54, 264
  %v922 = vld [vmem:[%s921] sm:$0xf]
  %v923 = vld [vmem:[%s921 + $0x4] sm:$0xf]
  %v924 = vunpack.c.l.bf16 %v922
  %v925 = vunpack.c.l.bf16 %v923
  %v926 = vmax.f32 %v919, %v924
  %v927 = vmax.f32 %v920, %v925
  %v928 = vsub.f32 %v814, %v926
  %v929 = vsub.f32 %v815, %v927
  %v930 = vmul.f32 %v928, 1.442695
  %v931 = vpow.pop %v930
  %v932 = vmul.f32 %v929, 1.442695
  %v933 = vpow.pop %v932
  %v934 = vadd.f32 %v931, 0.0
  %v935 = vadd.f32 %v933, 0.0
  %v936 = vand.u32 2147483647, %v809
  %v937 = vand.u32 2147483647, %v810
  %v938 = vsub.f32 1.0, %v936
  %v939 = vsub.f32 1.0, %v937
  %v940 = vmax.f32 %v938, 0.0
  %v941 = vmax.f32 %v939, 0.0
  %v942 = vmul.f32 %v814, %v940
  %v943 = vmul.f32 %v815, %v941
  %v944 = vadd.f32 %v942, 0.0
  %v945 = vadd.f32 %v943, 0.0
  %v946 = vsub.f32 %v819, %v926
  %v947 = vsub.f32 %v820, %v927
  %v948 = vmul.f32 %v946, 1.442695
  %v949 = vpow.pop %v948
  %v950 = vmul.f32 %v947, 1.442695
  %v951 = vpow.pop %v950
  %v952 = vadd.f32 %v934, %v949
  %v953 = vadd.f32 %v935, %v951
  %v954 = vsub.f32 %v809, 1.0
  %v955 = vsub.f32 %v810, 1.0
  %v956 = vand.u32 2147483647, %v954
  %v957 = vand.u32 2147483647, %v955
  %v958 = vsub.f32 1.0, %v956
  %v959 = vsub.f32 1.0, %v957
  %v960 = vmax.f32 %v958, 0.0
  %v961 = vmax.f32 %v959, 0.0
  %v962 = vmul.f32 %v819, %v960
  %v963 = vmul.f32 %v820, %v961
  %v964 = vadd.f32 %v944, %v962
  %v965 = vadd.f32 %v945, %v963
  %v966 = vsub.f32 %v826, %v926
  %v967 = vsub.f32 %v827, %v927
  %v968 = vmul.f32 %v966, 1.442695
  %v969 = vpow.pop %v968
  %v970 = vmul.f32 %v967, 1.442695
  %v971 = vpow.pop %v970
  %v972 = vadd.f32 %v952, %v969
  %v973 = vadd.f32 %v953, %v971
  %v974 = vsub.f32 %v809, 2.0
  %v975 = vsub.f32 %v810, 2.0
  %v976 = vand.u32 2147483647, %v974
  %v977 = vand.u32 2147483647, %v975
  %v978 = vsub.f32 1.0, %v976
  %v979 = vsub.f32 1.0, %v977
  %v980 = vmax.f32 %v978, 0.0
  %v981 = vmax.f32 %v979, 0.0
  %v982 = vmul.f32 %v826, %v980
  %v983 = vmul.f32 %v827, %v981
  %v984 = vadd.f32 %v964, %v982
  %v985 = vadd.f32 %v965, %v983
  %v986 = vsub.f32 %v833, %v926
  %v987 = vsub.f32 %v834, %v927
  %v988 = vmul.f32 %v986, 1.442695
  %v989 = vpow.pop %v988
  %v990 = vmul.f32 %v987, 1.442695
  %v991 = vpow.pop %v990
  %v992 = vadd.f32 %v972, %v989
  %v993 = vadd.f32 %v973, %v991
  %v994 = vsub.f32 %v809, 3.0
  %v995 = vsub.f32 %v810, 3.0
  %v996 = vand.u32 2147483647, %v994
  %v997 = vand.u32 2147483647, %v995
  %v998 = vsub.f32 1.0, %v996
  %v999 = vsub.f32 1.0, %v997
  %v1000 = vmax.f32 %v998, 0.0
  %v1001 = vmax.f32 %v999, 0.0
  %v1002 = vmul.f32 %v833, %v1000
  %v1003 = vmul.f32 %v834, %v1001
  %v1004 = vadd.f32 %v984, %v1002
  %v1005 = vadd.f32 %v985, %v1003
  %v1006 = vsub.f32 %v840, %v926
  %v1007 = vsub.f32 %v841, %v927
  %v1008 = vmul.f32 %v1006, 1.442695
  %v1009 = vpow.pop %v1008
  %v1010 = vmul.f32 %v1007, 1.442695
  %v1011 = vpow.pop %v1010
  %v1012 = vadd.f32 %v992, %v1009
  %v1013 = vadd.f32 %v993, %v1011
  %v1014 = vsub.f32 %v809, 4.0
  %v1015 = vsub.f32 %v810, 4.0
  %v1016 = vand.u32 2147483647, %v1014
  %v1017 = vand.u32 2147483647, %v1015
  %v1018 = vsub.f32 1.0, %v1016
  %v1019 = vsub.f32 1.0, %v1017
  %v1020 = vmax.f32 %v1018, 0.0
  %v1021 = vmax.f32 %v1019, 0.0
  %v1022 = vmul.f32 %v840, %v1020
  %v1023 = vmul.f32 %v841, %v1021
  %v1024 = vadd.f32 %v1004, %v1022
  %v1025 = vadd.f32 %v1005, %v1023
  %v1026 = vsub.f32 %v847, %v926
  %v1027 = vsub.f32 %v848, %v927
  %v1028 = vmul.f32 %v1026, 1.442695
  %v1029 = vpow.pop %v1028
  %v1030 = vmul.f32 %v1027, 1.442695
  %v1031 = vpow.pop %v1030
  %v1032 = vadd.f32 %v1012, %v1029
  %v1033 = vadd.f32 %v1013, %v1031
  %v1034 = vsub.f32 %v809, 5.0
  %v1035 = vsub.f32 %v810, 5.0
  %v1036 = vand.u32 2147483647, %v1034
  %v1037 = vand.u32 2147483647, %v1035
  %v1038 = vsub.f32 1.0, %v1036
  %v1039 = vsub.f32 1.0, %v1037
  %v1040 = vmax.f32 %v1038, 0.0
  %v1041 = vmax.f32 %v1039, 0.0
  %v1042 = vmul.f32 %v847, %v1040
  %v1043 = vmul.f32 %v848, %v1041
  %v1044 = vadd.f32 %v1024, %v1042
  %v1045 = vadd.f32 %v1025, %v1043
  %v1046 = vsub.f32 %v854, %v926
  %v1047 = vsub.f32 %v855, %v927
  %v1048 = vmul.f32 %v1046, 1.442695
  %v1049 = vpow.pop %v1048
  %v1050 = vmul.f32 %v1047, 1.442695
  %v1051 = vpow.pop %v1050
  %v1052 = vadd.f32 %v1032, %v1049
  %v1053 = vadd.f32 %v1033, %v1051
  %v1054 = vsub.f32 %v809, 6.0
  %v1055 = vsub.f32 %v810, 6.0
  %v1056 = vand.u32 2147483647, %v1054
  %v1057 = vand.u32 2147483647, %v1055
  %v1058 = vsub.f32 1.0, %v1056
  %v1059 = vsub.f32 1.0, %v1057
  %v1060 = vmax.f32 %v1058, 0.0
  %v1061 = vmax.f32 %v1059, 0.0
  %v1062 = vmul.f32 %v854, %v1060
  %v1063 = vmul.f32 %v855, %v1061
  %v1064 = vadd.f32 %v1044, %v1062
  %v1065 = vadd.f32 %v1045, %v1063
  %v1066 = vsub.f32 %v861, %v926
  %v1067 = vsub.f32 %v862, %v927
  %v1068 = vmul.f32 %v1066, 1.442695
  %v1069 = vpow.pop %v1068
  %v1070 = vmul.f32 %v1067, 1.442695
  %v1071 = vpow.pop %v1070
  %v1072 = vadd.f32 %v1052, %v1069
  %v1073 = vadd.f32 %v1053, %v1071
  %v1074 = vsub.f32 %v809, 7.0
  %v1075 = vsub.f32 %v810, 7.0
  %v1076 = vand.u32 2147483647, %v1074
  %v1077 = vand.u32 2147483647, %v1075
  %v1078 = vsub.f32 1.0, %v1076
  %v1079 = vsub.f32 1.0, %v1077
  %v1080 = vmax.f32 %v1078, 0.0
  %v1081 = vmax.f32 %v1079, 0.0
  %v1082 = vmul.f32 %v861, %v1080
  %v1083 = vmul.f32 %v862, %v1081
  %v1084 = vadd.f32 %v1064, %v1082
  %v1085 = vadd.f32 %v1065, %v1083
  %v1086 = vsub.f32 %v868, %v926
  %v1087 = vsub.f32 %v869, %v927
  %v1088 = vmul.f32 %v1086, 1.442695
  %v1089 = vpow.pop %v1088
  %v1090 = vmul.f32 %v1087, 1.442695
  %v1091 = vpow.pop %v1090
  %v1092 = vadd.f32 %v1072, %v1089
  %v1093 = vadd.f32 %v1073, %v1091
  %v1094 = vsub.f32 %v809, 8.0
  %v1095 = vsub.f32 %v810, 8.0
  %v1096 = vand.u32 2147483647, %v1094
  %v1097 = vand.u32 2147483647, %v1095
  %v1098 = vsub.f32 1.0, %v1096
  %v1099 = vsub.f32 1.0, %v1097
  %v1100 = vmax.f32 %v1098, 0.0
  %v1101 = vmax.f32 %v1099, 0.0
  %v1102 = vmul.f32 %v868, %v1100
  %v1103 = vmul.f32 %v869, %v1101
  %v1104 = vadd.f32 %v1084, %v1102
  %v1105 = vadd.f32 %v1085, %v1103
  %v1106 = vsub.f32 %v875, %v926
  %v1107 = vsub.f32 %v876, %v927
  %v1108 = vmul.f32 %v1106, 1.442695
  %v1109 = vpow.pop %v1108
  %v1110 = vmul.f32 %v1107, 1.442695
  %v1111 = vpow.pop %v1110
  %v1112 = vadd.f32 %v1092, %v1109
  %v1113 = vadd.f32 %v1093, %v1111
  %v1114 = vsub.f32 %v809, 9.0
  %v1115 = vsub.f32 %v810, 9.0
  %v1116 = vand.u32 2147483647, %v1114
  %v1117 = vand.u32 2147483647, %v1115
  %v1118 = vsub.f32 1.0, %v1116
  %v1119 = vsub.f32 1.0, %v1117
  %v1120 = vmax.f32 %v1118, 0.0
  %v1121 = vmax.f32 %v1119, 0.0
  %v1122 = vmul.f32 %v875, %v1120
  %v1123 = vmul.f32 %v876, %v1121
  %v1124 = vadd.f32 %v1104, %v1122
  %v1125 = vadd.f32 %v1105, %v1123
  %v1126 = vsub.f32 %v882, %v926
  %v1127 = vsub.f32 %v883, %v927
  %v1128 = vmul.f32 %v1126, 1.442695
  %v1129 = vpow.pop %v1128
  %v1130 = vmul.f32 %v1127, 1.442695
  %v1131 = vpow.pop %v1130
  %v1132 = vadd.f32 %v1112, %v1129
  %v1133 = vadd.f32 %v1113, %v1131
  %v1134 = vsub.f32 %v809, 10.0
  %v1135 = vsub.f32 %v810, 10.0
  %v1136 = vand.u32 2147483647, %v1134
  %v1137 = vand.u32 2147483647, %v1135
  %v1138 = vsub.f32 1.0, %v1136
  %v1139 = vsub.f32 1.0, %v1137
  %v1140 = vmax.f32 %v1138, 0.0
  %v1141 = vmax.f32 %v1139, 0.0
  %v1142 = vmul.f32 %v882, %v1140
  %v1143 = vmul.f32 %v883, %v1141
  %v1144 = vadd.f32 %v1124, %v1142
  %v1145 = vadd.f32 %v1125, %v1143
  %v1146 = vsub.f32 %v889, %v926
  %v1147 = vsub.f32 %v890, %v927
  %v1148 = vmul.f32 %v1146, 1.442695
  %v1149 = vpow.pop %v1148
  %v1150 = vmul.f32 %v1147, 1.442695
  %v1151 = vpow.pop %v1150
  %v1152 = vadd.f32 %v1132, %v1149
  %v1153 = vadd.f32 %v1133, %v1151
  %v1154 = vsub.f32 %v809, 11.0
  %v1155 = vsub.f32 %v810, 11.0
  %v1156 = vand.u32 2147483647, %v1154
  %v1157 = vand.u32 2147483647, %v1155
  %v1158 = vsub.f32 1.0, %v1156
  %v1159 = vsub.f32 1.0, %v1157
  %v1160 = vmax.f32 %v1158, 0.0
  %v1161 = vmax.f32 %v1159, 0.0
  %v1162 = vmul.f32 %v889, %v1160
  %v1163 = vmul.f32 %v890, %v1161
  %v1164 = vadd.f32 %v1144, %v1162
  %v1165 = vadd.f32 %v1145, %v1163
  %v1166 = vsub.f32 %v896, %v926
  %v1167 = vsub.f32 %v897, %v927
  %v1168 = vmul.f32 %v1166, 1.442695
  %v1169 = vpow.pop %v1168
  %v1170 = vmul.f32 %v1167, 1.442695
  %v1171 = vpow.pop %v1170
  %v1172 = vadd.f32 %v1152, %v1169
  %v1173 = vadd.f32 %v1153, %v1171
  %v1174 = vsub.f32 %v809, 12.0
  %v1175 = vsub.f32 %v810, 12.0
  %v1176 = vand.u32 2147483647, %v1174
  %v1177 = vand.u32 2147483647, %v1175
  %v1178 = vsub.f32 1.0, %v1176
  %v1179 = vsub.f32 1.0, %v1177
  %v1180 = vmax.f32 %v1178, 0.0
  %v1181 = vmax.f32 %v1179, 0.0
  %v1182 = vmul.f32 %v896, %v1180
  %v1183 = vmul.f32 %v897, %v1181
  %v1184 = vadd.f32 %v1164, %v1182
  %v1185 = vadd.f32 %v1165, %v1183
  %v1186 = vsub.f32 %v903, %v926
  %v1187 = vsub.f32 %v904, %v927
  %v1188 = vmul.f32 %v1186, 1.442695
  %v1189 = vpow.pop %v1188
  %v1190 = vmul.f32 %v1187, 1.442695
  %v1191 = vpow.pop %v1190
  %v1192 = vadd.f32 %v1172, %v1189
  %v1193 = vadd.f32 %v1173, %v1191
  %v1194 = vsub.f32 %v809, 13.0
  %v1195 = vsub.f32 %v810, 13.0
  %v1196 = vand.u32 2147483647, %v1194
  %v1197 = vand.u32 2147483647, %v1195
  %v1198 = vsub.f32 1.0, %v1196
  %v1199 = vsub.f32 1.0, %v1197
  %v1200 = vmax.f32 %v1198, 0.0
  %v1201 = vmax.f32 %v1199, 0.0
  %v1202 = vmul.f32 %v903, %v1200
  %v1203 = vmul.f32 %v904, %v1201
  %v1204 = vadd.f32 %v1184, %v1202
  %v1205 = vadd.f32 %v1185, %v1203
  %v1206 = vsub.f32 %v910, %v926
  %v1207 = vsub.f32 %v911, %v927
  %v1208 = vmul.f32 %v1206, 1.442695
  %v1209 = vpow.pop %v1208
  %v1210 = vmul.f32 %v1207, 1.442695
  %v1211 = vpow.pop %v1210
  %v1212 = vadd.f32 %v1192, %v1209
  %v1213 = vadd.f32 %v1193, %v1211
  %v1214 = vsub.f32 %v809, 14.0
  %v1215 = vsub.f32 %v810, 14.0
  %v1216 = vand.u32 2147483647, %v1214
  %v1217 = vand.u32 2147483647, %v1215
  %v1218 = vsub.f32 1.0, %v1216
  %v1219 = vsub.f32 1.0, %v1217
  %v1220 = vmax.f32 %v1218, 0.0
  %v1221 = vmax.f32 %v1219, 0.0
  %v1222 = vmul.f32 %v910, %v1220
  %v1223 = vmul.f32 %v911, %v1221
  %v1224 = vadd.f32 %v1204, %v1222
  %v1225 = vadd.f32 %v1205, %v1223
  %v1226 = vsub.f32 %v917, %v926
  %v1227 = vsub.f32 %v918, %v927
  %v1228 = vmul.f32 %v1226, 1.442695
  %v1229 = vpow.pop %v1228
  %v1230 = vmul.f32 %v1227, 1.442695
  %v1231 = vpow.pop %v1230
  %v1232 = vadd.f32 %v1212, %v1229
  %v1233 = vadd.f32 %v1213, %v1231
  %v1234 = vsub.f32 %v809, 15.0
  %v1235 = vsub.f32 %v810, 15.0
  %v1236 = vand.u32 2147483647, %v1234
  %v1237 = vand.u32 2147483647, %v1235
  %v1238 = vsub.f32 1.0, %v1236
  %v1239 = vsub.f32 1.0, %v1237
  %v1240 = vmax.f32 %v1238, 0.0
  %v1241 = vmax.f32 %v1239, 0.0
  %v1242 = vmul.f32 %v917, %v1240
  %v1243 = vmul.f32 %v918, %v1241
  %v1244 = vadd.f32 %v1224, %v1242
  %v1245 = vadd.f32 %v1225, %v1243
  %v1246 = vsub.f32 %v924, %v926
  %v1247 = vsub.f32 %v925, %v927
  %v1248 = vmul.f32 %v1246, 1.442695
  %v1249 = vpow.pop %v1248
  %v1250 = vmul.f32 %v1247, 1.442695
  %v1251 = vpow.pop %v1250
  %v1252 = vadd.f32 %v1232, %v1249
  %v1253 = vadd.f32 %v1233, %v1251
  %v1254 = vsub.f32 %v809, 16.0
  %v1255 = vsub.f32 %v810, 16.0
  %v1256 = vand.u32 2147483647, %v1254
  %v1257 = vand.u32 2147483647, %v1255
  %v1258 = vsub.f32 1.0, %v1256
  %v1259 = vsub.f32 1.0, %v1257
  %v1260 = vmax.f32 %v1258, 0.0
  %v1261 = vmax.f32 %v1259, 0.0
  %v1262 = vmul.f32 %v924, %v1260
  %v1263 = vmul.f32 %v925, %v1261
  %v1264 = vadd.f32 %v1244, %v1262
  %v1265 = vadd.f32 %v1245, %v1263
  %v1266 = vlog2.pop %v1252
  %v1267 = vmul.f32 %v1266, 0.6931472
  %v1268 = vlog2.pop %v1253
  %v1269 = vmul.f32 %v1268, 0.6931472
  %v1270 = vadd.f32 %v926, %v1267
  %v1271 = vadd.f32 %v927, %v1269
  %v1272 = vsub.f32 %v1270, %v1264
  %v1273 = vsub.f32 %v1271, %v1265
  %v1274 = vadd.f32 %v805, %v1272
  %v1275 = vadd.f32 %v806, %v1273
  %v1276 = vmax.f32 %v335, 0.0
  %v1277 = vmax.f32 %v336, 0.0
  %v1278 = vmin.f32 %v1276, 15.99
  %v1279 = vmin.f32 %v1277, 15.99
  %s1280 = scalar_lea.vmem %s54, 272
  %v1281 = vld [vmem:[%s1280] sm:$0xf]
  %v1282 = vld [vmem:[%s1280 + $0x4] sm:$0xf]
  %v1283 = vunpack.c.l.bf16 %v1281
  %v1284 = vunpack.c.l.bf16 %v1282
  %s1285 = scalar_lea.vmem %s54, 280
  %v1286 = vld [vmem:[%s1285] sm:$0xf]
  %v1287 = vld [vmem:[%s1285 + $0x4] sm:$0xf]
  %v1288 = vunpack.c.l.bf16 %v1286
  %v1289 = vunpack.c.l.bf16 %v1287
  %v1290 = vmax.f32 %v1283, %v1288
  %v1291 = vmax.f32 %v1284, %v1289
  %s1292 = scalar_lea.vmem %s54, 288
  %v1293 = vld [vmem:[%s1292] sm:$0xf]
  %v1294 = vld [vmem:[%s1292 + $0x4] sm:$0xf]
  %v1295 = vunpack.c.l.bf16 %v1293
  %v1296 = vunpack.c.l.bf16 %v1294
  %v1297 = vmax.f32 %v1290, %v1295
  %v1298 = vmax.f32 %v1291, %v1296
  %s1299 = scalar_lea.vmem %s54, 296
  %v1300 = vld [vmem:[%s1299] sm:$0xf]
  %v1301 = vld [vmem:[%s1299 + $0x4] sm:$0xf]
  %v1302 = vunpack.c.l.bf16 %v1300
  %v1303 = vunpack.c.l.bf16 %v1301
  %v1304 = vmax.f32 %v1297, %v1302
  %v1305 = vmax.f32 %v1298, %v1303
  %s1306 = scalar_lea.vmem %s54, 304
  %v1307 = vld [vmem:[%s1306] sm:$0xf]
  %v1308 = vld [vmem:[%s1306 + $0x4] sm:$0xf]
  %v1309 = vunpack.c.l.bf16 %v1307
  %v1310 = vunpack.c.l.bf16 %v1308
  %v1311 = vmax.f32 %v1304, %v1309
  %v1312 = vmax.f32 %v1305, %v1310
  %s1313 = scalar_lea.vmem %s54, 312
  %v1314 = vld [vmem:[%s1313] sm:$0xf]
  %v1315 = vld [vmem:[%s1313 + $0x4] sm:$0xf]
  %v1316 = vunpack.c.l.bf16 %v1314
  %v1317 = vunpack.c.l.bf16 %v1315
  %v1318 = vmax.f32 %v1311, %v1316
  %v1319 = vmax.f32 %v1312, %v1317
  %s1320 = scalar_lea.vmem %s54, 320
  %v1321 = vld [vmem:[%s1320] sm:$0xf]
  %v1322 = vld [vmem:[%s1320 + $0x4] sm:$0xf]
  %v1323 = vunpack.c.l.bf16 %v1321
  %v1324 = vunpack.c.l.bf16 %v1322
  %v1325 = vmax.f32 %v1318, %v1323
  %v1326 = vmax.f32 %v1319, %v1324
  %s1327 = scalar_lea.vmem %s54, 328
  %v1328 = vld [vmem:[%s1327] sm:$0xf]
  %v1329 = vld [vmem:[%s1327 + $0x4] sm:$0xf]
  %v1330 = vunpack.c.l.bf16 %v1328
  %v1331 = vunpack.c.l.bf16 %v1329
  %v1332 = vmax.f32 %v1325, %v1330
  %v1333 = vmax.f32 %v1326, %v1331
  %s1334 = scalar_lea.vmem %s54, 336
  %v1335 = vld [vmem:[%s1334] sm:$0xf]
  %v1336 = vld [vmem:[%s1334 + $0x4] sm:$0xf]
  %v1337 = vunpack.c.l.bf16 %v1335
  %v1338 = vunpack.c.l.bf16 %v1336
  %v1339 = vmax.f32 %v1332, %v1337
  %v1340 = vmax.f32 %v1333, %v1338
  %s1341 = scalar_lea.vmem %s54, 344
  %v1342 = vld [vmem:[%s1341] sm:$0xf]
  %v1343 = vld [vmem:[%s1341 + $0x4] sm:$0xf]
  %v1344 = vunpack.c.l.bf16 %v1342
  %v1345 = vunpack.c.l.bf16 %v1343
  %v1346 = vmax.f32 %v1339, %v1344
  %v1347 = vmax.f32 %v1340, %v1345
  %s1348 = scalar_lea.vmem %s54, 352
  %v1349 = vld [vmem:[%s1348] sm:$0xf]
  %v1350 = vld [vmem:[%s1348 + $0x4] sm:$0xf]
  %v1351 = vunpack.c.l.bf16 %v1349
  %v1352 = vunpack.c.l.bf16 %v1350
  %v1353 = vmax.f32 %v1346, %v1351
  %v1354 = vmax.f32 %v1347, %v1352
  %s1355 = scalar_lea.vmem %s54, 360
  %v1356 = vld [vmem:[%s1355] sm:$0xf]
  %v1357 = vld [vmem:[%s1355 + $0x4] sm:$0xf]
  %v1358 = vunpack.c.l.bf16 %v1356
  %v1359 = vunpack.c.l.bf16 %v1357
  %v1360 = vmax.f32 %v1353, %v1358
  %v1361 = vmax.f32 %v1354, %v1359
  %s1362 = scalar_lea.vmem %s54, 368
  %v1363 = vld [vmem:[%s1362] sm:$0xf]
  %v1364 = vld [vmem:[%s1362 + $0x4] sm:$0xf]
  %v1365 = vunpack.c.l.bf16 %v1363
  %v1366 = vunpack.c.l.bf16 %v1364
  %v1367 = vmax.f32 %v1360, %v1365
  %v1368 = vmax.f32 %v1361, %v1366
  %s1369 = scalar_lea.vmem %s54, 376
  %v1370 = vld [vmem:[%s1369] sm:$0xf]
  %v1371 = vld [vmem:[%s1369 + $0x4] sm:$0xf]
  %v1372 = vunpack.c.l.bf16 %v1370
  %v1373 = vunpack.c.l.bf16 %v1371
  %v1374 = vmax.f32 %v1367, %v1372
  %v1375 = vmax.f32 %v1368, %v1373
  %s1376 = scalar_lea.vmem %s54, 384
  %v1377 = vld [vmem:[%s1376] sm:$0xf]
  %v1378 = vld [vmem:[%s1376 + $0x4] sm:$0xf]
  %v1379 = vunpack.c.l.bf16 %v1377
  %v1380 = vunpack.c.l.bf16 %v1378
  %v1381 = vmax.f32 %v1374, %v1379
  %v1382 = vmax.f32 %v1375, %v1380
  %s1383 = scalar_lea.vmem %s54, 392
  %v1384 = vld [vmem:[%s1383] sm:$0xf]
  %v1385 = vld [vmem:[%s1383 + $0x4] sm:$0xf]
  %v1386 = vunpack.c.l.bf16 %v1384
  %v1387 = vunpack.c.l.bf16 %v1385
  %v1388 = vmax.f32 %v1381, %v1386
  %v1389 = vmax.f32 %v1382, %v1387
  %s1390 = scalar_lea.vmem %s54, 400
  %v1391 = vld [vmem:[%s1390] sm:$0xf]
  %v1392 = vld [vmem:[%s1390 + $0x4] sm:$0xf]
  %v1393 = vunpack.c.l.bf16 %v1391
  %v1394 = vunpack.c.l.bf16 %v1392
  %v1395 = vmax.f32 %v1388, %v1393
  %v1396 = vmax.f32 %v1389, %v1394
  %v1397 = vsub.f32 %v1283, %v1395
  %v1398 = vsub.f32 %v1284, %v1396
  %v1399 = vmul.f32 %v1397, 1.442695
  %v1400 = vpow.pop %v1399
  %v1401 = vmul.f32 %v1398, 1.442695
  %v1402 = vpow.pop %v1401
  %v1403 = vadd.f32 %v1400, 0.0
  %v1404 = vadd.f32 %v1402, 0.0
  %v1405 = vand.u32 2147483647, %v1278
  %v1406 = vand.u32 2147483647, %v1279
  %v1407 = vsub.f32 1.0, %v1405
  %v1408 = vsub.f32 1.0, %v1406
  %v1409 = vmax.f32 %v1407, 0.0
  %v1410 = vmax.f32 %v1408, 0.0
  %v1411 = vmul.f32 %v1283, %v1409
  %v1412 = vmul.f32 %v1284, %v1410
  %v1413 = vadd.f32 %v1411, 0.0
  %v1414 = vadd.f32 %v1412, 0.0
  %v1415 = vsub.f32 %v1288, %v1395
  %v1416 = vsub.f32 %v1289, %v1396
  %v1417 = vmul.f32 %v1415, 1.442695
  %v1418 = vpow.pop %v1417
  %v1419 = vmul.f32 %v1416, 1.442695
  %v1420 = vpow.pop %v1419
  %v1421 = vadd.f32 %v1403, %v1418
  %v1422 = vadd.f32 %v1404, %v1420
  %v1423 = vsub.f32 %v1278, 1.0
  %v1424 = vsub.f32 %v1279, 1.0
  %v1425 = vand.u32 2147483647, %v1423
  %v1426 = vand.u32 2147483647, %v1424
  %v1427 = vsub.f32 1.0, %v1425
  %v1428 = vsub.f32 1.0, %v1426
  %v1429 = vmax.f32 %v1427, 0.0
  %v1430 = vmax.f32 %v1428, 0.0
  %v1431 = vmul.f32 %v1288, %v1429
  %v1432 = vmul.f32 %v1289, %v1430
  %v1433 = vadd.f32 %v1413, %v1431
  %v1434 = vadd.f32 %v1414, %v1432
  %v1435 = vsub.f32 %v1295, %v1395
  %v1436 = vsub.f32 %v1296, %v1396
  %v1437 = vmul.f32 %v1435, 1.442695
  %v1438 = vpow.pop %v1437
  %v1439 = vmul.f32 %v1436, 1.442695
  %v1440 = vpow.pop %v1439
  %v1441 = vadd.f32 %v1421, %v1438
  %v1442 = vadd.f32 %v1422, %v1440
  %v1443 = vsub.f32 %v1278, 2.0
  %v1444 = vsub.f32 %v1279, 2.0
  %v1445 = vand.u32 2147483647, %v1443
  %v1446 = vand.u32 2147483647, %v1444
  %v1447 = vsub.f32 1.0, %v1445
  %v1448 = vsub.f32 1.0, %v1446
  %v1449 = vmax.f32 %v1447, 0.0
  %v1450 = vmax.f32 %v1448, 0.0
  %v1451 = vmul.f32 %v1295, %v1449
  %v1452 = vmul.f32 %v1296, %v1450
  %v1453 = vadd.f32 %v1433, %v1451
  %v1454 = vadd.f32 %v1434, %v1452
  %v1455 = vsub.f32 %v1302, %v1395
  %v1456 = vsub.f32 %v1303, %v1396
  %v1457 = vmul.f32 %v1455, 1.442695
  %v1458 = vpow.pop %v1457
  %v1459 = vmul.f32 %v1456, 1.442695
  %v1460 = vpow.pop %v1459
  %v1461 = vadd.f32 %v1441, %v1458
  %v1462 = vadd.f32 %v1442, %v1460
  %v1463 = vsub.f32 %v1278, 3.0
  %v1464 = vsub.f32 %v1279, 3.0
  %v1465 = vand.u32 2147483647, %v1463
  %v1466 = vand.u32 2147483647, %v1464
  %v1467 = vsub.f32 1.0, %v1465
  %v1468 = vsub.f32 1.0, %v1466
  %v1469 = vmax.f32 %v1467, 0.0
  %v1470 = vmax.f32 %v1468, 0.0
  %v1471 = vmul.f32 %v1302, %v1469
  %v1472 = vmul.f32 %v1303, %v1470
  %v1473 = vadd.f32 %v1453, %v1471
  %v1474 = vadd.f32 %v1454, %v1472
  %v1475 = vsub.f32 %v1309, %v1395
  %v1476 = vsub.f32 %v1310, %v1396
  %v1477 = vmul.f32 %v1475, 1.442695
  %v1478 = vpow.pop %v1477
  %v1479 = vmul.f32 %v1476, 1.442695
  %v1480 = vpow.pop %v1479
  %v1481 = vadd.f32 %v1461, %v1478
  %v1482 = vadd.f32 %v1462, %v1480
  %v1483 = vsub.f32 %v1278, 4.0
  %v1484 = vsub.f32 %v1279, 4.0
  %v1485 = vand.u32 2147483647, %v1483
  %v1486 = vand.u32 2147483647, %v1484
  %v1487 = vsub.f32 1.0, %v1485
  %v1488 = vsub.f32 1.0, %v1486
  %v1489 = vmax.f32 %v1487, 0.0
  %v1490 = vmax.f32 %v1488, 0.0
  %v1491 = vmul.f32 %v1309, %v1489
  %v1492 = vmul.f32 %v1310, %v1490
  %v1493 = vadd.f32 %v1473, %v1491
  %v1494 = vadd.f32 %v1474, %v1492
  %v1495 = vsub.f32 %v1316, %v1395
  %v1496 = vsub.f32 %v1317, %v1396
  %v1497 = vmul.f32 %v1495, 1.442695
  %v1498 = vpow.pop %v1497
  %v1499 = vmul.f32 %v1496, 1.442695
  %v1500 = vpow.pop %v1499
  %v1501 = vadd.f32 %v1481, %v1498
  %v1502 = vadd.f32 %v1482, %v1500
  %v1503 = vsub.f32 %v1278, 5.0
  %v1504 = vsub.f32 %v1279, 5.0
  %v1505 = vand.u32 2147483647, %v1503
  %v1506 = vand.u32 2147483647, %v1504
  %v1507 = vsub.f32 1.0, %v1505
  %v1508 = vsub.f32 1.0, %v1506
  %v1509 = vmax.f32 %v1507, 0.0
  %v1510 = vmax.f32 %v1508, 0.0
  %v1511 = vmul.f32 %v1316, %v1509
  %v1512 = vmul.f32 %v1317, %v1510
  %v1513 = vadd.f32 %v1493, %v1511
  %v1514 = vadd.f32 %v1494, %v1512
  %v1515 = vsub.f32 %v1323, %v1395
  %v1516 = vsub.f32 %v1324, %v1396
  %v1517 = vmul.f32 %v1515, 1.442695
  %v1518 = vpow.pop %v1517
  %v1519 = vmul.f32 %v1516, 1.442695
  %v1520 = vpow.pop %v1519
  %v1521 = vadd.f32 %v1501, %v1518
  %v1522 = vadd.f32 %v1502, %v1520
  %v1523 = vsub.f32 %v1278, 6.0
  %v1524 = vsub.f32 %v1279, 6.0
  %v1525 = vand.u32 2147483647, %v1523
  %v1526 = vand.u32 2147483647, %v1524
  %v1527 = vsub.f32 1.0, %v1525
  %v1528 = vsub.f32 1.0, %v1526
  %v1529 = vmax.f32 %v1527, 0.0
  %v1530 = vmax.f32 %v1528, 0.0
  %v1531 = vmul.f32 %v1323, %v1529
  %v1532 = vmul.f32 %v1324, %v1530
  %v1533 = vadd.f32 %v1513, %v1531
  %v1534 = vadd.f32 %v1514, %v1532
  %v1535 = vsub.f32 %v1330, %v1395
  %v1536 = vsub.f32 %v1331, %v1396
  %v1537 = vmul.f32 %v1535, 1.442695
  %v1538 = vpow.pop %v1537
  %v1539 = vmul.f32 %v1536, 1.442695
  %v1540 = vpow.pop %v1539
  %v1541 = vadd.f32 %v1521, %v1538
  %v1542 = vadd.f32 %v1522, %v1540
  %v1543 = vsub.f32 %v1278, 7.0
  %v1544 = vsub.f32 %v1279, 7.0
  %v1545 = vand.u32 2147483647, %v1543
  %v1546 = vand.u32 2147483647, %v1544
  %v1547 = vsub.f32 1.0, %v1545
  %v1548 = vsub.f32 1.0, %v1546
  %v1549 = vmax.f32 %v1547, 0.0
  %v1550 = vmax.f32 %v1548, 0.0
  %v1551 = vmul.f32 %v1330, %v1549
  %v1552 = vmul.f32 %v1331, %v1550
  %v1553 = vadd.f32 %v1533, %v1551
  %v1554 = vadd.f32 %v1534, %v1552
  %v1555 = vsub.f32 %v1337, %v1395
  %v1556 = vsub.f32 %v1338, %v1396
  %v1557 = vmul.f32 %v1555, 1.442695
  %v1558 = vpow.pop %v1557
  %v1559 = vmul.f32 %v1556, 1.442695
  %v1560 = vpow.pop %v1559
  %v1561 = vadd.f32 %v1541, %v1558
  %v1562 = vadd.f32 %v1542, %v1560
  %v1563 = vsub.f32 %v1278, 8.0
  %v1564 = vsub.f32 %v1279, 8.0
  %v1565 = vand.u32 2147483647, %v1563
  %v1566 = vand.u32 2147483647, %v1564
  %v1567 = vsub.f32 1.0, %v1565
  %v1568 = vsub.f32 1.0, %v1566
  %v1569 = vmax.f32 %v1567, 0.0
  %v1570 = vmax.f32 %v1568, 0.0
  %v1571 = vmul.f32 %v1337, %v1569
  %v1572 = vmul.f32 %v1338, %v1570
  %v1573 = vadd.f32 %v1553, %v1571
  %v1574 = vadd.f32 %v1554, %v1572
  %v1575 = vsub.f32 %v1344, %v1395
  %v1576 = vsub.f32 %v1345, %v1396
  %v1577 = vmul.f32 %v1575, 1.442695
  %v1578 = vpow.pop %v1577
  %v1579 = vmul.f32 %v1576, 1.442695
  %v1580 = vpow.pop %v1579
  %v1581 = vadd.f32 %v1561, %v1578
  %v1582 = vadd.f32 %v1562, %v1580
  %v1583 = vsub.f32 %v1278, 9.0
  %v1584 = vsub.f32 %v1279, 9.0
  %v1585 = vand.u32 2147483647, %v1583
  %v1586 = vand.u32 2147483647, %v1584
  %v1587 = vsub.f32 1.0, %v1585
  %v1588 = vsub.f32 1.0, %v1586
  %v1589 = vmax.f32 %v1587, 0.0
  %v1590 = vmax.f32 %v1588, 0.0
  %v1591 = vmul.f32 %v1344, %v1589
  %v1592 = vmul.f32 %v1345, %v1590
  %v1593 = vadd.f32 %v1573, %v1591
  %v1594 = vadd.f32 %v1574, %v1592
  %v1595 = vsub.f32 %v1351, %v1395
  %v1596 = vsub.f32 %v1352, %v1396
  %v1597 = vmul.f32 %v1595, 1.442695
  %v1598 = vpow.pop %v1597
  %v1599 = vmul.f32 %v1596, 1.442695
  %v1600 = vpow.pop %v1599
  %v1601 = vadd.f32 %v1581, %v1598
  %v1602 = vadd.f32 %v1582, %v1600
  %v1603 = vsub.f32 %v1278, 10.0
  %v1604 = vsub.f32 %v1279, 10.0
  %v1605 = vand.u32 2147483647, %v1603
  %v1606 = vand.u32 2147483647, %v1604
  %v1607 = vsub.f32 1.0, %v1605
  %v1608 = vsub.f32 1.0, %v1606
  %v1609 = vmax.f32 %v1607, 0.0
  %v1610 = vmax.f32 %v1608, 0.0
  %v1611 = vmul.f32 %v1351, %v1609
  %v1612 = vmul.f32 %v1352, %v1610
  %v1613 = vadd.f32 %v1593, %v1611
  %v1614 = vadd.f32 %v1594, %v1612
  %v1615 = vsub.f32 %v1358, %v1395
  %v1616 = vsub.f32 %v1359, %v1396
  %v1617 = vmul.f32 %v1615, 1.442695
  %v1618 = vpow.pop %v1617
  %v1619 = vmul.f32 %v1616, 1.442695
  %v1620 = vpow.pop %v1619
  %v1621 = vadd.f32 %v1601, %v1618
  %v1622 = vadd.f32 %v1602, %v1620
  %v1623 = vsub.f32 %v1278, 11.0
  %v1624 = vsub.f32 %v1279, 11.0
  %v1625 = vand.u32 2147483647, %v1623
  %v1626 = vand.u32 2147483647, %v1624
  %v1627 = vsub.f32 1.0, %v1625
  %v1628 = vsub.f32 1.0, %v1626
  %v1629 = vmax.f32 %v1627, 0.0
  %v1630 = vmax.f32 %v1628, 0.0
  %v1631 = vmul.f32 %v1358, %v1629
  %v1632 = vmul.f32 %v1359, %v1630
  %v1633 = vadd.f32 %v1613, %v1631
  %v1634 = vadd.f32 %v1614, %v1632
  %v1635 = vsub.f32 %v1365, %v1395
  %v1636 = vsub.f32 %v1366, %v1396
  %v1637 = vmul.f32 %v1635, 1.442695
  %v1638 = vpow.pop %v1637
  %v1639 = vmul.f32 %v1636, 1.442695
  %v1640 = vpow.pop %v1639
  %v1641 = vadd.f32 %v1621, %v1638
  %v1642 = vadd.f32 %v1622, %v1640
  %v1643 = vsub.f32 %v1278, 12.0
  %v1644 = vsub.f32 %v1279, 12.0
  %v1645 = vand.u32 2147483647, %v1643
  %v1646 = vand.u32 2147483647, %v1644
  %v1647 = vsub.f32 1.0, %v1645
  %v1648 = vsub.f32 1.0, %v1646
  %v1649 = vmax.f32 %v1647, 0.0
  %v1650 = vmax.f32 %v1648, 0.0
  %v1651 = vmul.f32 %v1365, %v1649
  %v1652 = vmul.f32 %v1366, %v1650
  %v1653 = vadd.f32 %v1633, %v1651
  %v1654 = vadd.f32 %v1634, %v1652
  %v1655 = vsub.f32 %v1372, %v1395
  %v1656 = vsub.f32 %v1373, %v1396
  %v1657 = vmul.f32 %v1655, 1.442695
  %v1658 = vpow.pop %v1657
  %v1659 = vmul.f32 %v1656, 1.442695
  %v1660 = vpow.pop %v1659
  %v1661 = vadd.f32 %v1641, %v1658
  %v1662 = vadd.f32 %v1642, %v1660
  %v1663 = vsub.f32 %v1278, 13.0
  %v1664 = vsub.f32 %v1279, 13.0
  %v1665 = vand.u32 2147483647, %v1663
  %v1666 = vand.u32 2147483647, %v1664
  %v1667 = vsub.f32 1.0, %v1665
  %v1668 = vsub.f32 1.0, %v1666
  %v1669 = vmax.f32 %v1667, 0.0
  %v1670 = vmax.f32 %v1668, 0.0
  %v1671 = vmul.f32 %v1372, %v1669
  %v1672 = vmul.f32 %v1373, %v1670
  %v1673 = vadd.f32 %v1653, %v1671
  %v1674 = vadd.f32 %v1654, %v1672
  %v1675 = vsub.f32 %v1379, %v1395
  %v1676 = vsub.f32 %v1380, %v1396
  %v1677 = vmul.f32 %v1675, 1.442695
  %v1678 = vpow.pop %v1677
  %v1679 = vmul.f32 %v1676, 1.442695
  %v1680 = vpow.pop %v1679
  %v1681 = vadd.f32 %v1661, %v1678
  %v1682 = vadd.f32 %v1662, %v1680
  %v1683 = vsub.f32 %v1278, 14.0
  %v1684 = vsub.f32 %v1279, 14.0
  %v1685 = vand.u32 2147483647, %v1683
  %v1686 = vand.u32 2147483647, %v1684
  %v1687 = vsub.f32 1.0, %v1685
  %v1688 = vsub.f32 1.0, %v1686
  %v1689 = vmax.f32 %v1687, 0.0
  %v1690 = vmax.f32 %v1688, 0.0
  %v1691 = vmul.f32 %v1379, %v1689
  %v1692 = vmul.f32 %v1380, %v1690
  %v1693 = vadd.f32 %v1673, %v1691
  %v1694 = vadd.f32 %v1674, %v1692
  %v1695 = vsub.f32 %v1386, %v1395
  %v1696 = vsub.f32 %v1387, %v1396
  %v1697 = vmul.f32 %v1695, 1.442695
  %v1698 = vpow.pop %v1697
  %v1699 = vmul.f32 %v1696, 1.442695
  %v1700 = vpow.pop %v1699
  %v1701 = vadd.f32 %v1681, %v1698
  %v1702 = vadd.f32 %v1682, %v1700
  %v1703 = vsub.f32 %v1278, 15.0
  %v1704 = vsub.f32 %v1279, 15.0
  %v1705 = vand.u32 2147483647, %v1703
  %v1706 = vand.u32 2147483647, %v1704
  %v1707 = vsub.f32 1.0, %v1705
  %v1708 = vsub.f32 1.0, %v1706
  %v1709 = vmax.f32 %v1707, 0.0
  %v1710 = vmax.f32 %v1708, 0.0
  %v1711 = vmul.f32 %v1386, %v1709
  %v1712 = vmul.f32 %v1387, %v1710
  %v1713 = vadd.f32 %v1693, %v1711
  %v1714 = vadd.f32 %v1694, %v1712
  %v1715 = vsub.f32 %v1393, %v1395
  %v1716 = vsub.f32 %v1394, %v1396
  %v1717 = vmul.f32 %v1715, 1.442695
  %v1718 = vpow.pop %v1717
  %v1719 = vmul.f32 %v1716, 1.442695
  %v1720 = vpow.pop %v1719
  %v1721 = vadd.f32 %v1701, %v1718
  %v1722 = vadd.f32 %v1702, %v1720
  %v1723 = vsub.f32 %v1278, 16.0
  %v1724 = vsub.f32 %v1279, 16.0
  %v1725 = vand.u32 2147483647, %v1723
  %v1726 = vand.u32 2147483647, %v1724
  %v1727 = vsub.f32 1.0, %v1725
  %v1728 = vsub.f32 1.0, %v1726
  %v1729 = vmax.f32 %v1727, 0.0
  %v1730 = vmax.f32 %v1728, 0.0
  %v1731 = vmul.f32 %v1393, %v1729
  %v1732 = vmul.f32 %v1394, %v1730
  %v1733 = vadd.f32 %v1713, %v1731
  %v1734 = vadd.f32 %v1714, %v1732
  %v1735 = vlog2.pop %v1721
  %v1736 = vmul.f32 %v1735, 0.6931472
  %v1737 = vlog2.pop %v1722
  %v1738 = vmul.f32 %v1737, 0.6931472
  %v1739 = vadd.f32 %v1395, %v1736
  %v1740 = vadd.f32 %v1396, %v1738
  %v1741 = vsub.f32 %v1739, %v1733
  %v1742 = vsub.f32 %v1740, %v1734
  %v1743 = vadd.f32 %v1274, %v1741
  %v1744 = vadd.f32 %v1275, %v1742
  %v1745 = vmax.f32 %v337, 0.0
  %v1746 = vmax.f32 %v338, 0.0
  %v1747 = vmin.f32 %v1745, 15.99
  %v1748 = vmin.f32 %v1746, 15.99
  %s1749 = scalar_lea.vmem %s54, 408
  %v1750 = vld [vmem:[%s1749] sm:$0xf]
  %v1751 = vld [vmem:[%s1749 + $0x4] sm:$0xf]
  %v1752 = vunpack.c.l.bf16 %v1750
  %v1753 = vunpack.c.l.bf16 %v1751
  %s1754 = scalar_lea.vmem %s54, 416
  %v1755 = vld [vmem:[%s1754] sm:$0xf]
  %v1756 = vld [vmem:[%s1754 + $0x4] sm:$0xf]
  %v1757 = vunpack.c.l.bf16 %v1755
  %v1758 = vunpack.c.l.bf16 %v1756
  %v1759 = vmax.f32 %v1752, %v1757
  %v1760 = vmax.f32 %v1753, %v1758
  %s1761 = scalar_lea.vmem %s54, 424
  %v1762 = vld [vmem:[%s1761] sm:$0xf]
  %v1763 = vld [vmem:[%s1761 + $0x4] sm:$0xf]
  %v1764 = vunpack.c.l.bf16 %v1762
  %v1765 = vunpack.c.l.bf16 %v1763
  %v1766 = vmax.f32 %v1759, %v1764
  %v1767 = vmax.f32 %v1760, %v1765
  %s1768 = scalar_lea.vmem %s54, 432
  %v1769 = vld [vmem:[%s1768] sm:$0xf]
  %v1770 = vld [vmem:[%s1768 + $0x4] sm:$0xf]
  %v1771 = vunpack.c.l.bf16 %v1769
  %v1772 = vunpack.c.l.bf16 %v1770
  %v1773 = vmax.f32 %v1766, %v1771
  %v1774 = vmax.f32 %v1767, %v1772
  %s1775 = scalar_lea.vmem %s54, 440
  %v1776 = vld [vmem:[%s1775] sm:$0xf]
  %v1777 = vld [vmem:[%s1775 + $0x4] sm:$0xf]
  %v1778 = vunpack.c.l.bf16 %v1776
  %v1779 = vunpack.c.l.bf16 %v1777
  %v1780 = vmax.f32 %v1773, %v1778
  %v1781 = vmax.f32 %v1774, %v1779
  %s1782 = scalar_lea.vmem %s54, 448
  %v1783 = vld [vmem:[%s1782] sm:$0xf]
  %v1784 = vld [vmem:[%s1782 + $0x4] sm:$0xf]
  %v1785 = vunpack.c.l.bf16 %v1783
  %v1786 = vunpack.c.l.bf16 %v1784
  %v1787 = vmax.f32 %v1780, %v1785
  %v1788 = vmax.f32 %v1781, %v1786
  %s1789 = scalar_lea.vmem %s54, 456
  %v1790 = vld [vmem:[%s1789] sm:$0xf]
  %v1791 = vld [vmem:[%s1789 + $0x4] sm:$0xf]
  %v1792 = vunpack.c.l.bf16 %v1790
  %v1793 = vunpack.c.l.bf16 %v1791
  %v1794 = vmax.f32 %v1787, %v1792
  %v1795 = vmax.f32 %v1788, %v1793
  %s1796 = scalar_lea.vmem %s54, 464
  %v1797 = vld [vmem:[%s1796] sm:$0xf]
  %v1798 = vld [vmem:[%s1796 + $0x4] sm:$0xf]
  %v1799 = vunpack.c.l.bf16 %v1797
  %v1800 = vunpack.c.l.bf16 %v1798
  %v1801 = vmax.f32 %v1794, %v1799
  %v1802 = vmax.f32 %v1795, %v1800
  %s1803 = scalar_lea.vmem %s54, 472
  %v1804 = vld [vmem:[%s1803] sm:$0xf]
  %v1805 = vld [vmem:[%s1803 + $0x4] sm:$0xf]
  %v1806 = vunpack.c.l.bf16 %v1804
  %v1807 = vunpack.c.l.bf16 %v1805
  %v1808 = vmax.f32 %v1801, %v1806
  %v1809 = vmax.f32 %v1802, %v1807
  %s1810 = scalar_lea.vmem %s54, 480
  %v1811 = vld [vmem:[%s1810] sm:$0xf]
  %v1812 = vld [vmem:[%s1810 + $0x4] sm:$0xf]
  %v1813 = vunpack.c.l.bf16 %v1811
  %v1814 = vunpack.c.l.bf16 %v1812
  %v1815 = vmax.f32 %v1808, %v1813
  %v1816 = vmax.f32 %v1809, %v1814
  %s1817 = scalar_lea.vmem %s54, 488
  %v1818 = vld [vmem:[%s1817] sm:$0xf]
  %v1819 = vld [vmem:[%s1817 + $0x4] sm:$0xf]
  %v1820 = vunpack.c.l.bf16 %v1818
  %v1821 = vunpack.c.l.bf16 %v1819
  %v1822 = vmax.f32 %v1815, %v1820
  %v1823 = vmax.f32 %v1816, %v1821
  %s1824 = scalar_lea.vmem %s54, 496
  %v1825 = vld [vmem:[%s1824] sm:$0xf]
  %v1826 = vld [vmem:[%s1824 + $0x4] sm:$0xf]
  %v1827 = vunpack.c.l.bf16 %v1825
  %v1828 = vunpack.c.l.bf16 %v1826
  %v1829 = vmax.f32 %v1822, %v1827
  %v1830 = vmax.f32 %v1823, %v1828
  %s1831 = scalar_lea.vmem %s54, 504
  %v1832 = vld [vmem:[%s1831] sm:$0xf]
  %v1833 = vld [vmem:[%s1831 + $0x4] sm:$0xf]
  %v1834 = vunpack.c.l.bf16 %v1832
  %v1835 = vunpack.c.l.bf16 %v1833
  %v1836 = vmax.f32 %v1829, %v1834
  %v1837 = vmax.f32 %v1830, %v1835
  %s1838 = scalar_lea.vmem %s54, 512
  %v1839 = vld [vmem:[%s1838] sm:$0xf]
  %v1840 = vld [vmem:[%s1838 + $0x4] sm:$0xf]
  %v1841 = vunpack.c.l.bf16 %v1839
  %v1842 = vunpack.c.l.bf16 %v1840
  %v1843 = vmax.f32 %v1836, %v1841
  %v1844 = vmax.f32 %v1837, %v1842
  %s1845 = scalar_lea.vmem %s54, 520
  %v1846 = vld [vmem:[%s1845] sm:$0xf]
  %v1847 = vld [vmem:[%s1845 + $0x4] sm:$0xf]
  %v1848 = vunpack.c.l.bf16 %v1846
  %v1849 = vunpack.c.l.bf16 %v1847
  %v1850 = vmax.f32 %v1843, %v1848
  %v1851 = vmax.f32 %v1844, %v1849
  %s1852 = scalar_lea.vmem %s54, 528
  %v1853 = vld [vmem:[%s1852] sm:$0xf]
  %v1854 = vld [vmem:[%s1852 + $0x4] sm:$0xf]
  %v1855 = vunpack.c.l.bf16 %v1853
  %v1856 = vunpack.c.l.bf16 %v1854
  %v1857 = vmax.f32 %v1850, %v1855
  %v1858 = vmax.f32 %v1851, %v1856
  %s1859 = scalar_lea.vmem %s54, 536
  %v1860 = vld [vmem:[%s1859] sm:$0xf]
  %v1861 = vld [vmem:[%s1859 + $0x4] sm:$0xf]
  %v1862 = vunpack.c.l.bf16 %v1860
  %v1863 = vunpack.c.l.bf16 %v1861
  %v1864 = vmax.f32 %v1857, %v1862
  %v1865 = vmax.f32 %v1858, %v1863
  %v1866 = vsub.f32 %v1752, %v1864
  %v1867 = vsub.f32 %v1753, %v1865
  %v1868 = vmul.f32 %v1866, 1.442695
  %v1869 = vpow.pop %v1868
  %v1870 = vmul.f32 %v1867, 1.442695
  %v1871 = vpow.pop %v1870
  %v1872 = vadd.f32 %v1869, 0.0
  %v1873 = vadd.f32 %v1871, 0.0
  %v1874 = vand.u32 2147483647, %v1747
  %v1875 = vand.u32 2147483647, %v1748
  %v1876 = vsub.f32 1.0, %v1874
  %v1877 = vsub.f32 1.0, %v1875
  %v1878 = vmax.f32 %v1876, 0.0
  %v1879 = vmax.f32 %v1877, 0.0
  %v1880 = vmul.f32 %v1752, %v1878
  %v1881 = vmul.f32 %v1753, %v1879
  %v1882 = vadd.f32 %v1880, 0.0
  %v1883 = vadd.f32 %v1881, 0.0
  %v1884 = vsub.f32 %v1757, %v1864
  %v1885 = vsub.f32 %v1758, %v1865
  %v1886 = vmul.f32 %v1884, 1.442695
  %v1887 = vpow.pop %v1886
  %v1888 = vmul.f32 %v1885, 1.442695
  %v1889 = vpow.pop %v1888
  %v1890 = vadd.f32 %v1872, %v1887
  %v1891 = vadd.f32 %v1873, %v1889
  %v1892 = vsub.f32 %v1747, 1.0
  %v1893 = vsub.f32 %v1748, 1.0
  %v1894 = vand.u32 2147483647, %v1892
  %v1895 = vand.u32 2147483647, %v1893
  %v1896 = vsub.f32 1.0, %v1894
  %v1897 = vsub.f32 1.0, %v1895
  %v1898 = vmax.f32 %v1896, 0.0
  %v1899 = vmax.f32 %v1897, 0.0
  %v1900 = vmul.f32 %v1757, %v1898
  %v1901 = vmul.f32 %v1758, %v1899
  %v1902 = vadd.f32 %v1882, %v1900
  %v1903 = vadd.f32 %v1883, %v1901
  %v1904 = vsub.f32 %v1764, %v1864
  %v1905 = vsub.f32 %v1765, %v1865
  %v1906 = vmul.f32 %v1904, 1.442695
  %v1907 = vpow.pop %v1906
  %v1908 = vmul.f32 %v1905, 1.442695
  %v1909 = vpow.pop %v1908
  %v1910 = vadd.f32 %v1890, %v1907
  %v1911 = vadd.f32 %v1891, %v1909
  %v1912 = vsub.f32 %v1747, 2.0
  %v1913 = vsub.f32 %v1748, 2.0
  %v1914 = vand.u32 2147483647, %v1912
  %v1915 = vand.u32 2147483647, %v1913
  %v1916 = vsub.f32 1.0, %v1914
  %v1917 = vsub.f32 1.0, %v1915
  %v1918 = vmax.f32 %v1916, 0.0
  %v1919 = vmax.f32 %v1917, 0.0
  %v1920 = vmul.f32 %v1764, %v1918
  %v1921 = vmul.f32 %v1765, %v1919
  %v1922 = vadd.f32 %v1902, %v1920
  %v1923 = vadd.f32 %v1903, %v1921
  %v1924 = vsub.f32 %v1771, %v1864
  %v1925 = vsub.f32 %v1772, %v1865
  %v1926 = vmul.f32 %v1924, 1.442695
  %v1927 = vpow.pop %v1926
  %v1928 = vmul.f32 %v1925, 1.442695
  %v1929 = vpow.pop %v1928
  %v1930 = vadd.f32 %v1910, %v1927
  %v1931 = vadd.f32 %v1911, %v1929
  %v1932 = vsub.f32 %v1747, 3.0
  %v1933 = vsub.f32 %v1748, 3.0
  %v1934 = vand.u32 2147483647, %v1932
  %v1935 = vand.u32 2147483647, %v1933
  %v1936 = vsub.f32 1.0, %v1934
  %v1937 = vsub.f32 1.0, %v1935
  %v1938 = vmax.f32 %v1936, 0.0
  %v1939 = vmax.f32 %v1937, 0.0
  %v1940 = vmul.f32 %v1771, %v1938
  %v1941 = vmul.f32 %v1772, %v1939
  %v1942 = vadd.f32 %v1922, %v1940
  %v1943 = vadd.f32 %v1923, %v1941
  %v1944 = vsub.f32 %v1778, %v1864
  %v1945 = vsub.f32 %v1779, %v1865
  %v1946 = vmul.f32 %v1944, 1.442695
  %v1947 = vpow.pop %v1946
  %v1948 = vmul.f32 %v1945, 1.442695
  %v1949 = vpow.pop %v1948
  %v1950 = vadd.f32 %v1930, %v1947
  %v1951 = vadd.f32 %v1931, %v1949
  %v1952 = vsub.f32 %v1747, 4.0
  %v1953 = vsub.f32 %v1748, 4.0
  %v1954 = vand.u32 2147483647, %v1952
  %v1955 = vand.u32 2147483647, %v1953
  %v1956 = vsub.f32 1.0, %v1954
  %v1957 = vsub.f32 1.0, %v1955
  %v1958 = vmax.f32 %v1956, 0.0
  %v1959 = vmax.f32 %v1957, 0.0
  %v1960 = vmul.f32 %v1778, %v1958
  %v1961 = vmul.f32 %v1779, %v1959
  %v1962 = vadd.f32 %v1942, %v1960
  %v1963 = vadd.f32 %v1943, %v1961
  %v1964 = vsub.f32 %v1785, %v1864
  %v1965 = vsub.f32 %v1786, %v1865
  %v1966 = vmul.f32 %v1964, 1.442695
  %v1967 = vpow.pop %v1966
  %v1968 = vmul.f32 %v1965, 1.442695
  %v1969 = vpow.pop %v1968
  %v1970 = vadd.f32 %v1950, %v1967
  %v1971 = vadd.f32 %v1951, %v1969
  %v1972 = vsub.f32 %v1747, 5.0
  %v1973 = vsub.f32 %v1748, 5.0
  %v1974 = vand.u32 2147483647, %v1972
  %v1975 = vand.u32 2147483647, %v1973
  %v1976 = vsub.f32 1.0, %v1974
  %v1977 = vsub.f32 1.0, %v1975
  %v1978 = vmax.f32 %v1976, 0.0
  %v1979 = vmax.f32 %v1977, 0.0
  %v1980 = vmul.f32 %v1785, %v1978
  %v1981 = vmul.f32 %v1786, %v1979
  %v1982 = vadd.f32 %v1962, %v1980
  %v1983 = vadd.f32 %v1963, %v1981
  %v1984 = vsub.f32 %v1792, %v1864
  %v1985 = vsub.f32 %v1793, %v1865
  %v1986 = vmul.f32 %v1984, 1.442695
  %v1987 = vpow.pop %v1986
  %v1988 = vmul.f32 %v1985, 1.442695
  %v1989 = vpow.pop %v1988
  %v1990 = vadd.f32 %v1970, %v1987
  %v1991 = vadd.f32 %v1971, %v1989
  %v1992 = vsub.f32 %v1747, 6.0
  %v1993 = vsub.f32 %v1748, 6.0
  %v1994 = vand.u32 2147483647, %v1992
  %v1995 = vand.u32 2147483647, %v1993
  %v1996 = vsub.f32 1.0, %v1994
  %v1997 = vsub.f32 1.0, %v1995
  %v1998 = vmax.f32 %v1996, 0.0
  %v1999 = vmax.f32 %v1997, 0.0
  %v2000 = vmul.f32 %v1792, %v1998
  %v2001 = vmul.f32 %v1793, %v1999
  %v2002 = vadd.f32 %v1982, %v2000
  %v2003 = vadd.f32 %v1983, %v2001
  %v2004 = vsub.f32 %v1799, %v1864
  %v2005 = vsub.f32 %v1800, %v1865
  %v2006 = vmul.f32 %v2004, 1.442695
  %v2007 = vpow.pop %v2006
  %v2008 = vmul.f32 %v2005, 1.442695
  %v2009 = vpow.pop %v2008
  %v2010 = vadd.f32 %v1990, %v2007
  %v2011 = vadd.f32 %v1991, %v2009
  %v2012 = vsub.f32 %v1747, 7.0
  %v2013 = vsub.f32 %v1748, 7.0
  %v2014 = vand.u32 2147483647, %v2012
  %v2015 = vand.u32 2147483647, %v2013
  %v2016 = vsub.f32 1.0, %v2014
  %v2017 = vsub.f32 1.0, %v2015
  %v2018 = vmax.f32 %v2016, 0.0
  %v2019 = vmax.f32 %v2017, 0.0
  %v2020 = vmul.f32 %v1799, %v2018
  %v2021 = vmul.f32 %v1800, %v2019
  %v2022 = vadd.f32 %v2002, %v2020
  %v2023 = vadd.f32 %v2003, %v2021
  %v2024 = vsub.f32 %v1806, %v1864
  %v2025 = vsub.f32 %v1807, %v1865
  %v2026 = vmul.f32 %v2024, 1.442695
  %v2027 = vpow.pop %v2026
  %v2028 = vmul.f32 %v2025, 1.442695
  %v2029 = vpow.pop %v2028
  %v2030 = vadd.f32 %v2010, %v2027
  %v2031 = vadd.f32 %v2011, %v2029
  %v2032 = vsub.f32 %v1747, 8.0
  %v2033 = vsub.f32 %v1748, 8.0
  %v2034 = vand.u32 2147483647, %v2032
  %v2035 = vand.u32 2147483647, %v2033
  %v2036 = vsub.f32 1.0, %v2034
  %v2037 = vsub.f32 1.0, %v2035
  %v2038 = vmax.f32 %v2036, 0.0
  %v2039 = vmax.f32 %v2037, 0.0
  %v2040 = vmul.f32 %v1806, %v2038
  %v2041 = vmul.f32 %v1807, %v2039
  %v2042 = vadd.f32 %v2022, %v2040
  %v2043 = vadd.f32 %v2023, %v2041
  %v2044 = vsub.f32 %v1813, %v1864
  %v2045 = vsub.f32 %v1814, %v1865
  %v2046 = vmul.f32 %v2044, 1.442695
  %v2047 = vpow.pop %v2046
  %v2048 = vmul.f32 %v2045, 1.442695
  %v2049 = vpow.pop %v2048
  %v2050 = vadd.f32 %v2030, %v2047
  %v2051 = vadd.f32 %v2031, %v2049
  %v2052 = vsub.f32 %v1747, 9.0
  %v2053 = vsub.f32 %v1748, 9.0
  %v2054 = vand.u32 2147483647, %v2052
  %v2055 = vand.u32 2147483647, %v2053
  %v2056 = vsub.f32 1.0, %v2054
  %v2057 = vsub.f32 1.0, %v2055
  %v2058 = vmax.f32 %v2056, 0.0
  %v2059 = vmax.f32 %v2057, 0.0
  %v2060 = vmul.f32 %v1813, %v2058
  %v2061 = vmul.f32 %v1814, %v2059
  %v2062 = vadd.f32 %v2042, %v2060
  %v2063 = vadd.f32 %v2043, %v2061
  %v2064 = vsub.f32 %v1820, %v1864
  %v2065 = vsub.f32 %v1821, %v1865
  %v2066 = vmul.f32 %v2064, 1.442695
  %v2067 = vpow.pop %v2066
  %v2068 = vmul.f32 %v2065, 1.442695
  %v2069 = vpow.pop %v2068
  %v2070 = vadd.f32 %v2050, %v2067
  %v2071 = vadd.f32 %v2051, %v2069
  %v2072 = vsub.f32 %v1747, 10.0
  %v2073 = vsub.f32 %v1748, 10.0
  %v2074 = vand.u32 2147483647, %v2072
  %v2075 = vand.u32 2147483647, %v2073
  %v2076 = vsub.f32 1.0, %v2074
  %v2077 = vsub.f32 1.0, %v2075
  %v2078 = vmax.f32 %v2076, 0.0
  %v2079 = vmax.f32 %v2077, 0.0
  %v2080 = vmul.f32 %v1820, %v2078
  %v2081 = vmul.f32 %v1821, %v2079
  %v2082 = vadd.f32 %v2062, %v2080
  %v2083 = vadd.f32 %v2063, %v2081
  %v2084 = vsub.f32 %v1827, %v1864
  %v2085 = vsub.f32 %v1828, %v1865
  %v2086 = vmul.f32 %v2084, 1.442695
  %v2087 = vpow.pop %v2086
  %v2088 = vmul.f32 %v2085, 1.442695
  %v2089 = vpow.pop %v2088
  %v2090 = vadd.f32 %v2070, %v2087
  %v2091 = vadd.f32 %v2071, %v2089
  %v2092 = vsub.f32 %v1747, 11.0
  %v2093 = vsub.f32 %v1748, 11.0
  %v2094 = vand.u32 2147483647, %v2092
  %v2095 = vand.u32 2147483647, %v2093
  %v2096 = vsub.f32 1.0, %v2094
  %v2097 = vsub.f32 1.0, %v2095
  %v2098 = vmax.f32 %v2096, 0.0
  %v2099 = vmax.f32 %v2097, 0.0
  %v2100 = vmul.f32 %v1827, %v2098
  %v2101 = vmul.f32 %v1828, %v2099
  %v2102 = vadd.f32 %v2082, %v2100
  %v2103 = vadd.f32 %v2083, %v2101
  %v2104 = vsub.f32 %v1834, %v1864
  %v2105 = vsub.f32 %v1835, %v1865
  %v2106 = vmul.f32 %v2104, 1.442695
  %v2107 = vpow.pop %v2106
  %v2108 = vmul.f32 %v2105, 1.442695
  %v2109 = vpow.pop %v2108
  %v2110 = vadd.f32 %v2090, %v2107
  %v2111 = vadd.f32 %v2091, %v2109
  %v2112 = vsub.f32 %v1747, 12.0
  %v2113 = vsub.f32 %v1748, 12.0
  %v2114 = vand.u32 2147483647, %v2112
  %v2115 = vand.u32 2147483647, %v2113
  %v2116 = vsub.f32 1.0, %v2114
  %v2117 = vsub.f32 1.0, %v2115
  %v2118 = vmax.f32 %v2116, 0.0
  %v2119 = vmax.f32 %v2117, 0.0
  %v2120 = vmul.f32 %v1834, %v2118
  %v2121 = vmul.f32 %v1835, %v2119
  %v2122 = vadd.f32 %v2102, %v2120
  %v2123 = vadd.f32 %v2103, %v2121
  %v2124 = vsub.f32 %v1841, %v1864
  %v2125 = vsub.f32 %v1842, %v1865
  %v2126 = vmul.f32 %v2124, 1.442695
  %v2127 = vpow.pop %v2126
  %v2128 = vmul.f32 %v2125, 1.442695
  %v2129 = vpow.pop %v2128
  %v2130 = vadd.f32 %v2110, %v2127
  %v2131 = vadd.f32 %v2111, %v2129
  %v2132 = vsub.f32 %v1747, 13.0
  %v2133 = vsub.f32 %v1748, 13.0
  %v2134 = vand.u32 2147483647, %v2132
  %v2135 = vand.u32 2147483647, %v2133
  %v2136 = vsub.f32 1.0, %v2134
  %v2137 = vsub.f32 1.0, %v2135
  %v2138 = vmax.f32 %v2136, 0.0
  %v2139 = vmax.f32 %v2137, 0.0
  %v2140 = vmul.f32 %v1841, %v2138
  %v2141 = vmul.f32 %v1842, %v2139
  %v2142 = vadd.f32 %v2122, %v2140
  %v2143 = vadd.f32 %v2123, %v2141
  %v2144 = vsub.f32 %v1848, %v1864
  %v2145 = vsub.f32 %v1849, %v1865
  %v2146 = vmul.f32 %v2144, 1.442695
  %v2147 = vpow.pop %v2146
  %v2148 = vmul.f32 %v2145, 1.442695
  %v2149 = vpow.pop %v2148
  %v2150 = vadd.f32 %v2130, %v2147
  %v2151 = vadd.f32 %v2131, %v2149
  %v2152 = vsub.f32 %v1747, 14.0
  %v2153 = vsub.f32 %v1748, 14.0
  %v2154 = vand.u32 2147483647, %v2152
  %v2155 = vand.u32 2147483647, %v2153
  %v2156 = vsub.f32 1.0, %v2154
  %v2157 = vsub.f32 1.0, %v2155
  %v2158 = vmax.f32 %v2156, 0.0
  %v2159 = vmax.f32 %v2157, 0.0
  %v2160 = vmul.f32 %v1848, %v2158
  %v2161 = vmul.f32 %v1849, %v2159
  %v2162 = vadd.f32 %v2142, %v2160
  %v2163 = vadd.f32 %v2143, %v2161
  %v2164 = vsub.f32 %v1855, %v1864
  %v2165 = vsub.f32 %v1856, %v1865
  %v2166 = vmul.f32 %v2164, 1.442695
  %v2167 = vpow.pop %v2166
  %v2168 = vmul.f32 %v2165, 1.442695
  %v2169 = vpow.pop %v2168
  %v2170 = vadd.f32 %v2150, %v2167
  %v2171 = vadd.f32 %v2151, %v2169
  %v2172 = vsub.f32 %v1747, 15.0
  %v2173 = vsub.f32 %v1748, 15.0
  %v2174 = vand.u32 2147483647, %v2172
  %v2175 = vand.u32 2147483647, %v2173
  %v2176 = vsub.f32 1.0, %v2174
  %v2177 = vsub.f32 1.0, %v2175
  %v2178 = vmax.f32 %v2176, 0.0
  %v2179 = vmax.f32 %v2177, 0.0
  %v2180 = vmul.f32 %v1855, %v2178
  %v2181 = vmul.f32 %v1856, %v2179
  %v2182 = vadd.f32 %v2162, %v2180
  %v2183 = vadd.f32 %v2163, %v2181
  %v2184 = vsub.f32 %v1862, %v1864
  %v2185 = vsub.f32 %v1863, %v1865
  %v2186 = vmul.f32 %v2184, 1.442695
  %v2187 = vpow.pop %v2186
  %v2188 = vmul.f32 %v2185, 1.442695
  %v2189 = vpow.pop %v2188
  %v2190 = vadd.f32 %v2170, %v2187
  %v2191 = vadd.f32 %v2171, %v2189
  %v2192 = vsub.f32 %v1747, 16.0
  %v2193 = vsub.f32 %v1748, 16.0
  %v2194 = vand.u32 2147483647, %v2192
  %v2195 = vand.u32 2147483647, %v2193
  %v2196 = vsub.f32 1.0, %v2194
  %v2197 = vsub.f32 1.0, %v2195
  %v2198 = vmax.f32 %v2196, 0.0
  %v2199 = vmax.f32 %v2197, 0.0
  %v2200 = vmul.f32 %v1862, %v2198
  %v2201 = vmul.f32 %v1863, %v2199
  %v2202 = vadd.f32 %v2182, %v2200
  %v2203 = vadd.f32 %v2183, %v2201
  %v2204 = vlog2.pop %v2190
  %v2205 = vmul.f32 %v2204, 0.6931472
  %v2206 = vlog2.pop %v2191
  %v2207 = vmul.f32 %v2206, 0.6931472
  %v2208 = vadd.f32 %v1864, %v2205
  %v2209 = vadd.f32 %v1865, %v2207
  %v2210 = vsub.f32 %v2208, %v2202
  %v2211 = vsub.f32 %v2209, %v2203
  %v2212 = vadd.f32 %v1743, %v2210
  %v2213 = vadd.f32 %v1744, %v2211
  %v2214 = vmul.f32 %v95, 0.25
  %v2215 = vmul.f32 %v96, 0.25
  %v2216 = vmul.f32 %v2212, %v2214
  %v2217 = vmul.f32 %v2213, %v2215
  %v2218 = vsel %vm97, %v2216, 0.0
  %v2219 = vsel %vm98, %v2217, 0.0
  %v2220 = vld [vmem:[#allocation2] sm:$0xff]
  %v2221 = vld [vmem:[#allocation2 + $0x8] sm:$0xff]
  %v2222 = vadd.f32 %v2220, %v329
  %v2223 = vadd.f32 %v2221, %v330
  %2224 = vst [vmem:[#allocation2] sm:$0xff] %v2222
  %2225 = vst [vmem:[#allocation2 + $0x8] sm:$0xff] %v2223
  %s2226 = scalar_lea.vmem [#allocation2], 16
  %v2227 = vld [vmem:[%s2226] sm:$0xff]
  %v2228 = vld [vmem:[%s2226 + $0x8] sm:$0xff]
  %v2229 = vadd.f32 %v2227, %v2218
  %v2230 = vadd.f32 %v2228, %v2219
  %2231 = vst [vmem:[%s2226] sm:$0xff] %v2229
  %2232 = vst [vmem:[%s2226 + $0x8] sm:$0xff] %v2230
  // Predicated region
  $region14: #{bbox_loss.1} parent=0 // pred_check
    %p2233 = pneg %p57
  $region15: #{bbox_loss.1} parent=0 // pred_check_branch
    %2235 = sbr.rel (%p2233) target = $region17
  $region16: #{bbox_loss.1} parent=0 // pred_region
    %v2236 = vld [vmem:[#allocation2] sm:$0xff]
    %v2237 = vld [vmem:[#allocation2 + $0x8] sm:$0xff]
    %v2238 = vadd.f32 %v2236, %v2237
    %v2239 = vrot.slane %v2238, 4
    %v2240 = vadd.f32 %v2238, %v2239
    %v2241 = vrot.slane %v2240, 2
    %v2242 = vadd.f32 %v2240, %v2241
    %v2243 = vrot.slane %v2242, 1
    %v2244 = vadd.f32 %v2242, %v2243
    %2245 = vst [vmem:[%s2] sm:$0x1] %v2244
    %v2246 = vld [vmem:[%s2226] sm:$0xff]
    %v2247 = vld [vmem:[%s2226 + $0x8] sm:$0xff]
    %v2248 = vadd.f32 %v2246, %v2247
    %v2249 = vrot.slane %v2248, 4
    %v2250 = vadd.f32 %v2248, %v2249
    %v2251 = vrot.slane %v2250, 2
    %v2252 = vadd.f32 %v2250, %v2251
    %v2253 = vrot.slane %v2252, 1
    %v2254 = vadd.f32 %v2252, %v2253
    %2255 = vst [vmem:[%s3] sm:$0x1] %v2254
  $region17: #{bbox_loss.1} parent=0 // pred_fallthru
    _
  // Predicated region
  $region18: #{bbox_loss.1} parent=0 // pred_check
    _
  $region19: #{bbox_loss.1} parent=0 // pred_check_branch
    %2257 = sbr.rel (0) target = $region21
  $region20: #{bbox_loss.1} parent=0 // pred_region
    _
  $region21: #{bbox_loss.1} parent=0 // pred_fallthru
    _
  // Predicated region
  $region22: #{bbox_loss.1} parent=0 // pred_check
    _
  $region23: #{bbox_loss.1} parent=0 // pred_check_branch
    %2259 = sbr.rel (0) target = $region25
  $region24: #{bbox_loss.1} parent=0 // pred_region
    _
  $region25: #{bbox_loss.1} parent=0 // pred_fallthru
    _
  // Predicated region
  $region26: #{bbox_loss.1} parent=0 // pred_check
    _
  $region27: #{bbox_loss.1} parent=0 // pred_check_branch
    %2261 = sbr.rel (0) target = $region29
  $region28: #{bbox_loss.1} parent=0 // pred_region
    _
  $region29: #{bbox_loss.1} parent=0 // pred_fallthru
    _
  // Predicated region
  $region30: #{bbox_loss.1} parent=0 // pred_check
    _
  $region31: #{bbox_loss.1} parent=0 // pred_check_branch
    %2263 = sbr.rel (0) target = $region33
  $region32: #{bbox_loss.1} parent=0 // pred_region
    _
  $region33: #{bbox_loss.1} parent=0 // pred_fallthru
    _

</llo_original>
